<compile_context>
chip_gen: v7x
topology: tpu7x:2x2x1
jax: 0.10.0
libtpu: 0.0.40
codegen_flags: <defaults>
</compile_context>

<pallas_src>
import functools

import jax
import jax.numpy as jnp
from jax import lax
from jax.experimental import pallas as pl
from jax.experimental.pallas import tpu as pltpu


# ------------------------------ Fused kernel -------------------------------- #
def _fused_gru_ae_kernel(x_ref,
                         wih0, whh0, bg0, bn0,
                         wih1, whh1, bg1, bn1,
                         wih2, whh2, bg2, bn2,
                         wih3, whh3, bg3, bn3,
                         wout_ref, bout_ref,
                         y_ref, act_ref,
                         *, seq_len, batch_pad):
    T, Bp = seq_len, batch_pad
    layers = ((wih0, whh0, bg0, bn0), (wih1, whh1, bg1, bn1),
              (wih2, whh2, bg2, bn2), (wih3, whh3, bg3, bn3))

    h2d = x_ref[...]                                   # (T*Bp, Din), time-major flattened
    for wih_ref, whh_ref, bg_ref, bn_ref in layers:
        H = whh_ref.shape[0]                           # whh packed as (H, 3H)

        # ---- hoisted fused input projection: ONE matmul + ONE bias add per layer ----
        # bias row (pre-folded in wrapper): [b_ir + b_hr | b_iz + b_hz | b_in]
        gi = jnp.dot(h2d, wih_ref[...],
                     preferred_element_type=jnp.float32) + bg_ref[...]      # (T*Bp, 3H)

        w_hh = whh_ref[...]                            # (H, 3H), gates fused along lanes
        b_hn = jnp.broadcast_to(bn_ref[...], (Bp, H))  # hoisted: broadcast once, not per step

        h = jnp.zeros((Bp, H), jnp.float32)
        for t in range(T):                             # fully unrolled: T small & static
            gi_t = gi[t * Bp:(t + 1) * Bp]             # (Bp, 3H) static, sublane-aligned slice
            gh = jnp.dot(h, w_hh,
                         preferred_element_type=jnp.float32)                # ONE MXU op/step
            rz = jax.nn.sigmoid(gi_t[:, :2 * H] + gh[:, :2 * H])            # one EUP pass r|z
            r = rz[:, :H]
            z = rz[:, H:]
            n = jnp.tanh(gi_t[:, 2 * H:] + r * (gh[:, 2 * H:] + b_hn))
            h = (1.0 - z) * n + z * h
            act_ref[t * Bp:(t + 1) * Bp, 0:H] = h      # scratch store: bounds vreg liveness
        h2d = act_ref[:, 0:H]                          # bulk reload of the layer output

    # ---- final linear head: one bulk matmul + single slab store ----
    # TODO(synk): train-mode inter-layer dropout (p=0.2) not implemented (eval semantics).
    y_ref[...] = (jnp.dot(h2d, wout_ref[...], preferred_element_type=jnp.float32)
                  + bout_ref[...])


def _full_spec(a):
    zeros = (0,) * a.ndim
    return pl.BlockSpec(a.shape, lambda i, _z=zeros: _z)


# ------------------------------- Model wrapper ------------------------------ #
def gru_autoencoder_forward(x_btf, params):
    """Forward of GRUAutoencoder. x_btf: (B, T, n_features), batch_first like PyTorch."""
    B, T, F = x_btf.shape
    Bp = ((B + 7) // 8) * 8                            # sublane-pad the batch (min 8)
    Bp = max(Bp, 8)

    x_pad = jnp.pad(x_btf.astype(jnp.float32), ((0, Bp - B), (0, 0), (0, 0)))
    x2d = jnp.transpose(x_pad, (1, 0, 2)).reshape(T * Bp, F)   # time-major, flattened

    layer_params = list(params["encoder"]) + list(params["decoder"])  # 4 x (wih,whh,bg,bn)
    flat = [a for p in layer_params for a in p]
    wout, bout = params["out_w_t"], params["out_b"]
    F_out = wout.shape[1]
    h_sizes = [p[1].shape[0] for p in layer_params]
    h_max = max(h_sizes)

    # Advisory cost estimate so XLA schedules the surrounding reshapes/transposes sensibly.
    flops, trans = 0, 0
    d_in = F
    for H in h_sizes:
        flops += 2 * T * Bp * (d_in + H) * 3 * H
        trans += 3 * T * Bp * H
        d_in = H
    flops += 2 * T * Bp * d_in * F_out
    nbytes = (x2d.size + sum(a.size for a in flat) + wout.size + bout.size
              + T * Bp * F_out) * 4

    kernel = functools.partial(_fused_gru_ae_kernel, seq_len=T, batch_pad=Bp)
    y2d = pl.pallas_call(
        kernel,
        out_shape=jax.ShapeDtypeStruct((T * Bp, F_out), jnp.float32),
        grid=(1,),
        in_specs=[_full_spec(x2d)] + [_full_spec(a) for a in flat]
                 + [_full_spec(wout), _full_spec(bout)],
        out_specs=pl.BlockSpec((T * Bp, F_out), lambda i: (0, 0)),
        scratch_shapes=[pltpu.VMEM((T * Bp, h_max), jnp.float32)],
        compiler_params=pltpu.CompilerParams(dimension_semantics=("arbitrary",)),
        cost_estimate=pl.CostEstimate(flops=flops, transcendentals=trans,
                                      bytes_accessed=nbytes),
    )(x2d, *flat, wout, bout)

    y = y2d.reshape(T, Bp, F_out)[:, :B, :]            # drop padded batch rows
    return jnp.transpose(y, (1, 0, 2))                 # back to (B, T, F)


# ----------------------------- Param construction --------------------------- #
def _init_torch_gru(key, num_layers, input_size, hidden_size):
    """Deterministic init with PyTorch GRU shapes (raw layout)."""
    bound = 1.0 / (hidden_size ** 0.5)
    raw = []
    for l in range(num_layers):
        d_in = input_size if l == 0 else hidden_size
        key, k1, k2, k3, k4 = jax.random.split(key, 5)
        w_ih = jax.random.uniform(k1, (3 * hidden_size, d_in), jnp.float32, -bound, bound)
        w_hh = jax.random.uniform(k2, (3 * hidden_size, hidden_size), jnp.float32, -bound, bound)
        b_ih = jax.random.uniform(k3, (3 * hidden_size,), jnp.float32, -bound, bound)
        b_hh = jax.random.uniform(k4, (3 * hidden_size,), jnp.float32, -bound, bound)
        raw.append((w_ih, w_hh, b_ih, b_hh))
    return key, raw


def _pack_layer_for_kernel(w_ih, w_hh, b_ih, b_hh):
    """Gate-fused, pre-transposed, bias-folded layout for the fused kernel."""
    H = w_hh.shape[1]
    wih_cat = jnp.transpose(w_ih)                                  # (Din, 3H), [r|z|n] cols
    whh_cat = jnp.transpose(w_hh)                                  # (H,   3H), [r|z|n] cols
    bi, bh = b_ih.reshape(3, H), b_hh.reshape(3, H)
    b_gi = jnp.concatenate([bi[0] + bh[0], bi[1] + bh[1], bi[2]])[None, :]   # (1, 3H)
    b_hn = bh[2][None, :]                                          # (1, H), applied inside r*(.)
    return wih_cat, whh_cat, b_gi, b_hn


# ------------------------------ Pure-JAX reference -------------------------- #
def _gru_layer_ref(x_tbd, w_ih, w_hh, b_ih, b_hh):
    H = w_hh.shape[1]
    B = x_tbd.shape[1]

    def step(h, x_t):
        gi = x_t @ w_ih.T + b_ih
        gh = h @ w_hh.T + b_hh
        r = jax.nn.sigmoid(gi[:, :H] + gh[:, :H])
        z = jax.nn.sigmoid(gi[:, H:2 * H] + gh[:, H:2 * H])
        n = jnp.tanh(gi[:, 2 * H:] + r * gh[:, 2 * H:])
        h_new = (1.0 - z) * n + z * h
        return h_new, h_new

    h0 = jnp.zeros((B, H), jnp.float32)
    _, ys = lax.scan(step, h0, x_tbd)
    return ys


# ----------------------------------- Main ------------------------------------ #
if __name__ == "__main__":
    B, T = 2, 8                 # batch, seq_len
    N_FEAT, EMB = 8, 32         # n_features, embedding_dim

    key = jax.random.PRNGKey(0)
    key, enc_raw = _init_torch_gru(key, num_layers=2, input_size=N_FEAT, hidden_size=EMB)
    key, dec_raw = _init_torch_gru(key, num_layers=2, input_size=EMB, hidden_size=N_FEAT)
    bound = 1.0 / (N_FEAT ** 0.5)
    key, kw, kb, kx = jax.random.split(key, 4)
    out_w = jax.random.uniform(kw, (N_FEAT, N_FEAT), jnp.float32, -bound, bound)  # torch (out, in)
    out_b = jax.random.uniform(kb, (N_FEAT,), jnp.float32, -bound, bound)

    params = {
        "encoder": [_pack_layer_for_kernel(*r) for r in enc_raw],
        "decoder": [_pack_layer_for_kernel(*r) for r in dec_raw],
        "out_w_t": out_w.T,
        "out_b": out_b[None, :],
    }

    x = jax.random.normal(kx, (B, T, N_FEAT), jnp.float32)

    fwd = jax.jit(functools.partial(gru_autoencoder_forward, params=params))
    y = jax.block_until_ready(fwd(x))
    assert y.shape == (B, T, N_FEAT), y.shape

    # Pure-JAX reference built from the raw PyTorch-layout weights.
    h = jnp.transpose(x, (1, 0, 2))
    for layer in enc_raw + dec_raw:
        h = _gru_layer_ref(h, *layer)
    y_ref = jnp.transpose(h @ out_w.T + out_b[None, :], (1, 0, 2))
    y_ref = jax.block_until_ready(y_ref)
    assert jnp.allclose(y, y_ref, atol=1e-3, rtol=1e-3), float(jnp.max(jnp.abs(y - y_ref)))

    print("KERNEL_OK")
</pallas_src>

<mosaic_0001>
module attributes {stable_mosaic.version = 11 : i64} {
  func.func @_fused_gru_ae_kernel(%arg0: i32, %arg1: memref<64x8xf32, #tpu.memory_space<vmem>>, %arg2: memref<8x96xf32, #tpu.memory_space<vmem>>, %arg3: memref<32x96xf32, #tpu.memory_space<vmem>>, %arg4: memref<1x96xf32, #tpu.memory_space<vmem>>, %arg5: memref<1x32xf32, #tpu.memory_space<vmem>>, %arg6: memref<32x96xf32, #tpu.memory_space<vmem>>, %arg7: memref<32x96xf32, #tpu.memory_space<vmem>>, %arg8: memref<1x96xf32, #tpu.memory_space<vmem>>, %arg9: memref<1x32xf32, #tpu.memory_space<vmem>>, %arg10: memref<32x24xf32, #tpu.memory_space<vmem>>, %arg11: memref<8x24xf32, #tpu.memory_space<vmem>>, %arg12: memref<1x24xf32, #tpu.memory_space<vmem>>, %arg13: memref<1x8xf32, #tpu.memory_space<vmem>>, %arg14: memref<8x24xf32, #tpu.memory_space<vmem>>, %arg15: memref<8x24xf32, #tpu.memory_space<vmem>>, %arg16: memref<1x24xf32, #tpu.memory_space<vmem>>, %arg17: memref<1x8xf32, #tpu.memory_space<vmem>>, %arg18: memref<8x8xf32, #tpu.memory_space<vmem>>, %arg19: memref<1x8xf32, #tpu.memory_space<vmem>>, %arg20: memref<64x8xf32, #tpu.memory_space<vmem>>, %arg21: memref<64x32xf32, #tpu.memory_space<vmem>>) attributes {dimension_semantics = [#tpu.dimension_semantics<arbitrary>], iteration_bounds = array<i64: 1>, scalar_prefetch = 0 : i64, scratch_operands = 1 : i64, tpu.core_type = #tpu.core_type<tc>, window_params = [{pipeline_mode = #tpu.pipeline_mode<synchronous>, transform_indices = @transform_0, window_bounds = array<i64: 64, 8>}, {pipeline_mode = #tpu.pipeline_mode<synchronous>, transform_indices = @transform_1, window_bounds = array<i64: 8, 96>}, {pipeline_mode = #tpu.pipeline_mode<synchronous>, transform_indices = @transform_2, window_bounds = array<i64: 32, 96>}, {pipeline_mode = #tpu.pipeline_mode<synchronous>, transform_indices = @transform_3, window_bounds = array<i64: 1, 96>}, {pipeline_mode = #tpu.pipeline_mode<synchronous>, transform_indices = @transform_4, window_bounds = array<i64: 1, 32>}, {pipeline_mode = #tpu.pipeline_mode<synchronous>, transform_indices = @transform_5, window_bounds = array<i64: 32, 96>}, {pipeline_mode = #tpu.pipeline_mode<synchronous>, transform_indices = @transform_6, window_bounds = array<i64: 32, 96>}, {pipeline_mode = #tpu.pipeline_mode<synchronous>, transform_indices = @transform_7, window_bounds = array<i64: 1, 96>}, {pipeline_mode = #tpu.pipeline_mode<synchronous>, transform_indices = @transform_8, window_bounds = array<i64: 1, 32>}, {pipeline_mode = #tpu.pipeline_mode<synchronous>, transform_indices = @transform_9, window_bounds = array<i64: 32, 24>}, {pipeline_mode = #tpu.pipeline_mode<synchronous>, transform_indices = @transform_10, window_bounds = array<i64: 8, 24>}, {pipeline_mode = #tpu.pipeline_mode<synchronous>, transform_indices = @transform_11, window_bounds = array<i64: 1, 24>}, {pipeline_mode = #tpu.pipeline_mode<synchronous>, transform_indices = @transform_12, window_bounds = array<i64: 1, 8>}, {pipeline_mode = #tpu.pipeline_mode<synchronous>, transform_indices = @transform_13, window_bounds = array<i64: 8, 24>}, {pipeline_mode = #tpu.pipeline_mode<synchronous>, transform_indices = @transform_14, window_bounds = array<i64: 8, 24>}, {pipeline_mode = #tpu.pipeline_mode<synchronous>, transform_indices = @transform_15, window_bounds = array<i64: 1, 24>}, {pipeline_mode = #tpu.pipeline_mode<synchronous>, transform_indices = @transform_16, window_bounds = array<i64: 1, 8>}, {pipeline_mode = #tpu.pipeline_mode<synchronous>, transform_indices = @transform_17, window_bounds = array<i64: 8, 8>}, {pipeline_mode = #tpu.pipeline_mode<synchronous>, transform_indices = @transform_18, window_bounds = array<i64: 1, 8>}, {pipeline_mode = #tpu.pipeline_mode<synchronous>, transform_indices = @transform_19, window_bounds = array<i64: 64, 8>}]} {
    %c0 = arith.constant 0 : index
    %c0_0 = arith.constant 0 : index
    %0 = vector.load %arg1[%c0, %c0_0] : memref<64x8xf32, #tpu.memory_space<vmem>>, vector<64x8xf32>
    %c0_1 = arith.constant 0 : index
    %c0_2 = arith.constant 0 : index
    %1 = vector.load %arg2[%c0_1, %c0_2] : memref<8x96xf32, #tpu.memory_space<vmem>>, vector<8x96xf32>
    %cst = arith.constant dense<0.000000e+00> : vector<64x96xf32>
    %2 = tpu.matmul %0, %1, %cst {dimension_numbers = #tpu.dot_dimension_numbers<[1], [0], [0], [1], [0, 0, 1, 1], [], []>} : vector<64x8xf32>, vector<8x96xf32>, vector<64x96xf32> -> vector<64x96xf32>
    %c0_3 = arith.constant 0 : index
    %c0_4 = arith.constant 0 : index
    %3 = vector.load %arg4[%c0_3, %c0_4] : memref<1x96xf32, #tpu.memory_space<vmem>>, vector<1x96xf32>
    %4 = vector.broadcast %3 : vector<1x96xf32> to vector<64x96xf32>
    %5 = arith.addf %2, %4 : vector<64x96xf32>
    %c0_5 = arith.constant 0 : index
    %c0_6 = arith.constant 0 : index
    %6 = vector.load %arg3[%c0_5, %c0_6] : memref<32x96xf32, #tpu.memory_space<vmem>>, vector<32x96xf32>
    %c0_7 = arith.constant 0 : index
    %c0_8 = arith.constant 0 : index
    %7 = vector.load %arg5[%c0_7, %c0_8] : memref<1x32xf32, #tpu.memory_space<vmem>>, vector<1x32xf32>
    %8 = vector.shape_cast %7 : vector<1x32xf32> to vector<1x32xf32>
    %9 = vector.broadcast %8 : vector<1x32xf32> to vector<8x32xf32>
    %cst_9 = arith.constant 0.000000e+00 : f32
    %10 = vector.broadcast %cst_9 : f32 to vector<8x32xf32>
    %11 = vector.extract_strided_slice %5 {offsets = [0, 0], sizes = [8, 96], strides = [1, 1]} : vector<64x96xf32> to vector<8x96xf32>
    %cst_10 = arith.constant dense<0.000000e+00> : vector<8x96xf32>
    %12 = tpu.matmul %10, %6, %cst_10 {dimension_numbers = #tpu.dot_dimension_numbers<[1], [0], [0], [1], [0, 0, 1, 1], [], []>} : vector<8x32xf32>, vector<32x96xf32>, vector<8x96xf32> -> vector<8x96xf32>
    %13 = vector.extract_strided_slice %11 {offsets = [0, 0], sizes = [8, 64], strides = [1, 1]} : vector<8x96xf32> to vector<8x64xf32>
    %14 = vector.extract_strided_slice %12 {offsets = [0, 0], sizes = [8, 64], strides = [1, 1]} : vector<8x96xf32> to vector<8x64xf32>
    %15 = arith.addf %13, %14 : vector<8x64xf32>
    %16 = arith.negf %15 : vector<8x64xf32>
    %17 = math.exp %16 : vector<8x64xf32>
    %cst_11 = arith.constant 1.000000e+00 : f32
    %18 = vector.broadcast %cst_11 : f32 to vector<8x64xf32>
    %19 = arith.addf %18, %17 : vector<8x64xf32>
    %20 = arith.divf %18, %19 : vector<8x64xf32>
    %21 = vector.extract_strided_slice %20 {offsets = [0, 0], sizes = [8, 32], strides = [1, 1]} : vector<8x64xf32> to vector<8x32xf32>
    %22 = vector.extract_strided_slice %20 {offsets = [0, 32], sizes = [8, 32], strides = [1, 1]} : vector<8x64xf32> to vector<8x32xf32>
    %23 = vector.extract_strided_slice %11 {offsets = [0, 64], sizes = [8, 32], strides = [1, 1]} : vector<8x96xf32> to vector<8x32xf32>
    %24 = vector.extract_strided_slice %12 {offsets = [0, 64], sizes = [8, 32], strides = [1, 1]} : vector<8x96xf32> to vector<8x32xf32>
    %25 = arith.addf %24, %9 : vector<8x32xf32>
    %26 = arith.mulf %21, %25 : vector<8x32xf32>
    %27 = arith.addf %23, %26 : vector<8x32xf32>
    %28 = math.tanh %27 : vector<8x32xf32>
    %cst_12 = arith.constant 1.000000e+00 : f32
    %29 = vector.broadcast %cst_12 : f32 to vector<8x32xf32>
    %30 = arith.subf %29, %22 : vector<8x32xf32>
    %31 = arith.mulf %30, %28 : vector<8x32xf32>
    %32 = arith.mulf %22, %10 : vector<8x32xf32>
    %33 = arith.addf %31, %32 : vector<8x32xf32>
    %c0_13 = arith.constant 0 : index
    %c0_14 = arith.constant 0 : index
    %34 = vector.load %arg21[%c0_13, %c0_14] : memref<64x32xf32, #tpu.memory_space<vmem>>, vector<8x32xf32>
    tpu.vector_store %arg21[%c0_13, %c0_14], %33 {strides = array<i32>} : memref<64x32xf32, #tpu.memory_space<vmem>>, vector<8x32xf32>,
    %35 = vector.extract_strided_slice %5 {offsets = [8, 0], sizes = [8, 96], strides = [1, 1]} : vector<64x96xf32> to vector<8x96xf32>
    %cst_15 = arith.constant dense<0.000000e+00> : vector<8x96xf32>
    %36 = tpu.matmul %33, %6, %cst_15 {dimension_numbers = #tpu.dot_dimension_numbers<[1], [0], [0], [1], [0, 0, 1, 1], [], []>} : vector<8x32xf32>, vector<32x96xf32>, vector<8x96xf32> -> vector<8x96xf32>
    %37 = vector.extract_strided_slice %35 {offsets = [0, 0], sizes = [8, 64], strides = [1, 1]} : vector<8x96xf32> to vector<8x64xf32>
    %38 = vector.extract_strided_slice %36 {offsets = [0, 0], sizes = [8, 64], strides = [1, 1]} : vector<8x96xf32> to vector<8x64xf32>
    %39 = arith.addf %37, %38 : vector<8x64xf32>
    %40 = arith.negf %39 : vector<8x64xf32>
    %41 = math.exp %40 : vector<8x64xf32>
    %cst_16 = arith.constant 1.000000e+00 : f32
    %42 = vector.broadcast %cst_16 : f32 to vector<8x64xf32>
    %43 = arith.addf %42, %41 : vector<8x64xf32>
    %44 = arith.divf %42, %43 : vector<8x64xf32>
    %45 = vector.extract_strided_slice %44 {offsets = [0, 0], sizes = [8, 32], strides = [1, 1]} : vector<8x64xf32> to vector<8x32xf32>
    %46 = vector.extract_strided_slice %44 {offsets = [0, 32], sizes = [8, 32], strides = [1, 1]} : vector<8x64xf32> to vector<8x32xf32>
    %47 = vector.extract_strided_slice %35 {offsets = [0, 64], sizes = [8, 32], strides = [1, 1]} : vector<8x96xf32> to vector<8x32xf32>
    %48 = vector.extract_strided_slice %36 {offsets = [0, 64], sizes = [8, 32], strides = [1, 1]} : vector<8x96xf32> to vector<8x32xf32>
    %49 = arith.addf %48, %9 : vector<8x32xf32>
    %50 = arith.mulf %45, %49 : vector<8x32xf32>
    %51 = arith.addf %47, %50 : vector<8x32xf32>
    %52 = math.tanh %51 : vector<8x32xf32>
    %cst_17 = arith.constant 1.000000e+00 : f32
    %53 = vector.broadcast %cst_17 : f32 to vector<8x32xf32>
    %54 = arith.subf %53, %46 : vector<8x32xf32>
    %55 = arith.mulf %54, %52 : vector<8x32xf32>
    %56 = arith.mulf %46, %33 : vector<8x32xf32>
    %57 = arith.addf %55, %56 : vector<8x32xf32>
    %c8 = arith.constant 8 : index
    %c0_18 = arith.constant 0 : index
    %58 = vector.load %arg21[%c8, %c0_18] : memref<64x32xf32, #tpu.memory_space<vmem>>, vector<8x32xf32>
    tpu.vector_store %arg21[%c8, %c0_18], %57 {strides = array<i32>} : memref<64x32xf32, #tpu.memory_space<vmem>>, vector<8x32xf32>,
    %59 = vector.extract_strided_slice %5 {offsets = [16, 0], sizes = [8, 96], strides = [1, 1]} : vector<64x96xf32> to vector<8x96xf32>
    %cst_19 = arith.constant dense<0.000000e+00> : vector<8x96xf32>
    %60 = tpu.matmul %57, %6, %cst_19 {dimension_numbers = #tpu.dot_dimension_numbers<[1], [0], [0], [1], [0, 0, 1, 1], [], []>} : vector<8x32xf32>, vector<32x96xf32>, vector<8x96xf32> -> vector<8x96xf32>
    %61 = vector.extract_strided_slice %59 {offsets = [0, 0], sizes = [8, 64], strides = [1, 1]} : vector<8x96xf32> to vector<8x64xf32>
    %62 = vector.extract_strided_slice %60 {offsets = [0, 0], sizes = [8, 64], strides = [1, 1]} : vector<8x96xf32> to vector<8x64xf32>
    %63 = arith.addf %61, %62 : vector<8x64xf32>
    %64 = arith.negf %63 : vector<8x64xf32>
    %65 = math.exp %64 : vector<8x64xf32>
    %cst_20 = arith.constant 1.000000e+00 : f32
    %66 = vector.broadcast %cst_20 : f32 to vector<8x64xf32>
    %67 = arith.addf %66, %65 : vector<8x64xf32>
    %68 = arith.divf %66, %67 : vector<8x64xf32>
    %69 = vector.extract_strided_slice %68 {offsets = [0, 0], sizes = [8, 32], strides = [1, 1]} : vector<8x64xf32> to vector<8x32xf32>
    %70 = vector.extract_strided_slice %68 {offsets = [0, 32], sizes = [8, 32], strides = [1, 1]} : vector<8x64xf32> to vector<8x32xf32>
    %71 = vector.extract_strided_slice %59 {offsets = [0, 64], sizes = [8, 32], strides = [1, 1]} : vector<8x96xf32> to vector<8x32xf32>
    %72 = vector.extract_strided_slice %60 {offsets = [0, 64], sizes = [8, 32], strides = [1, 1]} : vector<8x96xf32> to vector<8x32xf32>
    %73 = arith.addf %72, %9 : vector<8x32xf32>
    %74 = arith.mulf %69, %73 : vector<8x32xf32>
    %75 = arith.addf %71, %74 : vector<8x32xf32>
    %76 = math.tanh %75 : vector<8x32xf32>
    %cst_21 = arith.constant 1.000000e+00 : f32
    %77 = vector.broadcast %cst_21 : f32 to vector<8x32xf32>
    %78 = arith.subf %77, %70 : vector<8x32xf32>
    %79 = arith.mulf %78, %76 : vector<8x32xf32>
    %80 = arith.mulf %70, %57 : vector<8x32xf32>
    %81 = arith.addf %79, %80 : vector<8x32xf32>
    %c16 = arith.constant 16 : index
    %c0_22 = arith.constant 0 : index
    %82 = vector.load %arg21[%c16, %c0_22] : memref<64x32xf32, #tpu.memory_space<vmem>>, vector<8x32xf32>
    tpu.vector_store %arg21[%c16, %c0_22], %81 {strides = array<i32>} : memref<64x32xf32, #tpu.memory_space<vmem>>, vector<8x32xf32>,
    %83 = vector.extract_strided_slice %5 {offsets = [24, 0], sizes = [8, 96], strides = [1, 1]} : vector<64x96xf32> to vector<8x96xf32>
    %cst_23 = arith.constant dense<0.000000e+00> : vector<8x96xf32>
    %84 = tpu.matmul %81, %6, %cst_23 {dimension_numbers = #tpu.dot_dimension_numbers<[1], [0], [0], [1], [0, 0, 1, 1], [], []>} : vector<8x32xf32>, vector<32x96xf32>, vector<8x96xf32> -> vector<8x96xf32>
    %85 = vector.extract_strided_slice %83 {offsets = [0, 0], sizes = [8, 64], strides = [1, 1]} : vector<8x96xf32> to vector<8x64xf32>
    %86 = vector.extract_strided_slice %84 {offsets = [0, 0], sizes = [8, 64], strides = [1, 1]} : vector<8x96xf32> to vector<8x64xf32>
    %87 = arith.addf %85, %86 : vector<8x64xf32>
    %88 = arith.negf %87 : vector<8x64xf32>
    %89 = math.exp %88 : vector<8x64xf32>
    %cst_24 = arith.constant 1.000000e+00 : f32
    %90 = vector.broadcast %cst_24 : f32 to vector<8x64xf32>
    %91 = arith.addf %90, %89 : vector<8x64xf32>
    %92 = arith.divf %90, %91 : vector<8x64xf32>
    %93 = vector.extract_strided_slice %92 {offsets = [0, 0], sizes = [8, 32], strides = [1, 1]} : vector<8x64xf32> to vector<8x32xf32>
    %94 = vector.extract_strided_slice %92 {offsets = [0, 32], sizes = [8, 32], strides = [1, 1]} : vector<8x64xf32> to vector<8x32xf32>
    %95 = vector.extract_strided_slice %83 {offsets = [0, 64], sizes = [8, 32], strides = [1, 1]} : vector<8x96xf32> to vector<8x32xf32>
    %96 = vector.extract_strided_slice %84 {offsets = [0, 64], sizes = [8, 32], strides = [1, 1]} : vector<8x96xf32> to vector<8x32xf32>
    %97 = arith.addf %96, %9 : vector<8x32xf32>
    %98 = arith.mulf %93, %97 : vector<8x32xf32>
    %99 = arith.addf %95, %98 : vector<8x32xf32>
    %100 = math.tanh %99 : vector<8x32xf32>
    %cst_25 = arith.constant 1.000000e+00 : f32
    %101 = vector.broadcast %cst_25 : f32 to vector<8x32xf32>
    %102 = arith.subf %101, %94 : vector<8x32xf32>
    %103 = arith.mulf %102, %100 : vector<8x32xf32>
    %104 = arith.mulf %94, %81 : vector<8x32xf32>
    %105 = arith.addf %103, %104 : vector<8x32xf32>
    %c24 = arith.constant 24 : index
    %c0_26 = arith.constant 0 : index
    %106 = vector.load %arg21[%c24, %c0_26] : memref<64x32xf32, #tpu.memory_space<vmem>>, vector<8x32xf32>
    tpu.vector_store %arg21[%c24, %c0_26], %105 {strides = array<i32>} : memref<64x32xf32, #tpu.memory_space<vmem>>, vector<8x32xf32>,
    %107 = vector.extract_strided_slice %5 {offsets = [32, 0], sizes = [8, 96], strides = [1, 1]} : vector<64x96xf32> to vector<8x96xf32>
    %cst_27 = arith.constant dense<0.000000e+00> : vector<8x96xf32>
    %108 = tpu.matmul %105, %6, %cst_27 {dimension_numbers = #tpu.dot_dimension_numbers<[1], [0], [0], [1], [0, 0, 1, 1], [], []>} : vector<8x32xf32>, vector<32x96xf32>, vector<8x96xf32> -> vector<8x96xf32>
    %109 = vector.extract_strided_slice %107 {offsets = [0, 0], sizes = [8, 64], strides = [1, 1]} : vector<8x96xf32> to vector<8x64xf32>
    %110 = vector.extract_strided_slice %108 {offsets = [0, 0], sizes = [8, 64], strides = [1, 1]} : vector<8x96xf32> to vector<8x64xf32>
    %111 = arith.addf %109, %110 : vector<8x64xf32>
    %112 = arith.negf %111 : vector<8x64xf32>
    %113 = math.exp %112 : vector<8x64xf32>
    %cst_28 = arith.constant 1.000000e+00 : f32
    %114 = vector.broadcast %cst_28 : f32 to vector<8x64xf32>
    %115 = arith.addf %114, %113 : vector<8x64xf32>
    %116 = arith.divf %114, %115 : vector<8x64xf32>
    %117 = vector.extract_strided_slice %116 {offsets = [0, 0], sizes = [8, 32], strides = [1, 1]} : vector<8x64xf32> to vector<8x32xf32>
    %118 = vector.extract_strided_slice %116 {offsets = [0, 32], sizes = [8, 32], strides = [1, 1]} : vector<8x64xf32> to vector<8x32xf32>
    %119 = vector.extract_strided_slice %107 {offsets = [0, 64], sizes = [8, 32], strides = [1, 1]} : vector<8x96xf32> to vector<8x32xf32>
    %120 = vector.extract_strided_slice %108 {offsets = [0, 64], sizes = [8, 32], strides = [1, 1]} : vector<8x96xf32> to vector<8x32xf32>
    %121 = arith.addf %120, %9 : vector<8x32xf32>
    %122 = arith.mulf %117, %121 : vector<8x32xf32>
    %123 = arith.addf %119, %122 : vector<8x32xf32>
    %124 = math.tanh %123 : vector<8x32xf32>
    %cst_29 = arith.constant 1.000000e+00 : f32
    %125 = vector.broadcast %cst_29 : f32 to vector<8x32xf32>
    %126 = arith.subf %125, %118 : vector<8x32xf32>
    %127 = arith.mulf %126, %124 : vector<8x32xf32>
    %128 = arith.mulf %118, %105 : vector<8x32xf32>
    %129 = arith.addf %127, %128 : vector<8x32xf32>
    %c32 = arith.constant 32 : index
    %c0_30 = arith.constant 0 : index
    %130 = vector.load %arg21[%c32, %c0_30] : memref<64x32xf32, #tpu.memory_space<vmem>>, vector<8x32xf32>
    tpu.vector_store %arg21[%c32, %c0_30], %129 {strides = array<i32>} : memref<64x32xf32, #tpu.memory_space<vmem>>, vector<8x32xf32>,
    %131 = vector.extract_strided_slice %5 {offsets = [40, 0], sizes = [8, 96], strides = [1, 1]} : vector<64x96xf32> to vector<8x96xf32>
    %cst_31 = arith.constant dense<0.000000e+00> : vector<8x96xf32>
    %132 = tpu.matmul %129, %6, %cst_31 {dimension_numbers = #tpu.dot_dimension_numbers<[1], [0], [0], [1], [0, 0, 1, 1], [], []>} : vector<8x32xf32>, vector<32x96xf32>, vector<8x96xf32> -> vector<8x96xf32>
    %133 = vector.extract_strided_slice %131 {offsets = [0, 0], sizes = [8, 64], strides = [1, 1]} : vector<8x96xf32> to vector<8x64xf32>
    %134 = vector.extract_strided_slice %132 {offsets = [0, 0], sizes = [8, 64], strides = [1, 1]} : vector<8x96xf32> to vector<8x64xf32>
    %135 = arith.addf %133, %134 : vector<8x64xf32>
    %136 = arith.negf %135 : vector<8x64xf32>
    %137 = math.exp %136 : vector<8x64xf32>
    %cst_32 = arith.constant 1.000000e+00 : f32
    %138 = vector.broadcast %cst_32 : f32 to vector<8x64xf32>
    %139 = arith.addf %138, %137 : vector<8x64xf32>
    %140 = arith.divf %138, %139 : vector<8x64xf32>
    %141 = vector.extract_strided_slice %140 {offsets = [0, 0], sizes = [8, 32], strides = [1, 1]} : vector<8x64xf32> to vector<8x32xf32>
    %142 = vector.extract_strided_slice %140 {offsets = [0, 32], sizes = [8, 32], strides = [1, 1]} : vector<8x64xf32> to vector<8x32xf32>
    %143 = vector.extract_strided_slice %131 {offsets = [0, 64], sizes = [8, 32], strides = [1, 1]} : vector<8x96xf32> to vector<8x32xf32>
    %144 = vector.extract_strided_slice %132 {offsets = [0, 64], sizes = [8, 32], strides = [1, 1]} : vector<8x96xf32> to vector<8x32xf32>
    %145 = arith.addf %144, %9 : vector<8x32xf32>
    %146 = arith.mulf %141, %145 : vector<8x32xf32>
    %147 = arith.addf %143, %146 : vector<8x32xf32>
    %148 = math.tanh %147 : vector<8x32xf32>
    %cst_33 = arith.constant 1.000000e+00 : f32
    %149 = vector.broadcast %cst_33 : f32 to vector<8x32xf32>
    %150 = arith.subf %149, %142 : vector<8x32xf32>
    %151 = arith.mulf %150, %148 : vector<8x32xf32>
    %152 = arith.mulf %142, %129 : vector<8x32xf32>
    %153 = arith.addf %151, %152 : vector<8x32xf32>
    %c40 = arith.constant 40 : index
    %c0_34 = arith.constant 0 : index
    %154 = vector.load %arg21[%c40, %c0_34] : memref<64x32xf32, #tpu.memory_space<vmem>>, vector<8x32xf32>
    tpu.vector_store %arg21[%c40, %c0_34], %153 {strides = array<i32>} : memref<64x32xf32, #tpu.memory_space<vmem>>, vector<8x32xf32>,
    %155 = vector.extract_strided_slice %5 {offsets = [48, 0], sizes = [8, 96], strides = [1, 1]} : vector<64x96xf32> to vector<8x96xf32>
    %cst_35 = arith.constant dense<0.000000e+00> : vector<8x96xf32>
    %156 = tpu.matmul %153, %6, %cst_35 {dimension_numbers = #tpu.dot_dimension_numbers<[1], [0], [0], [1], [0, 0, 1, 1], [], []>} : vector<8x32xf32>, vector<32x96xf32>, vector<8x96xf32> -> vector<8x96xf32>
    %157 = vector.extract_strided_slice %155 {offsets = [0, 0], sizes = [8, 64], strides = [1, 1]} : vector<8x96xf32> to vector<8x64xf32>
    %158 = vector.extract_strided_slice %156 {offsets = [0, 0], sizes = [8, 64], strides = [1, 1]} : vector<8x96xf32> to vector<8x64xf32>
    %159 = arith.addf %157, %158 : vector<8x64xf32>
    %160 = arith.negf %159 : vector<8x64xf32>
    %161 = math.exp %160 : vector<8x64xf32>
    %cst_36 = arith.constant 1.000000e+00 : f32
    %162 = vector.broadcast %cst_36 : f32 to vector<8x64xf32>
    %163 = arith.addf %162, %161 : vector<8x64xf32>
    %164 = arith.divf %162, %163 : vector<8x64xf32>
    %165 = vector.extract_strided_slice %164 {offsets = [0, 0], sizes = [8, 32], strides = [1, 1]} : vector<8x64xf32> to vector<8x32xf32>
    %166 = vector.extract_strided_slice %164 {offsets = [0, 32], sizes = [8, 32], strides = [1, 1]} : vector<8x64xf32> to vector<8x32xf32>
    %167 = vector.extract_strided_slice %155 {offsets = [0, 64], sizes = [8, 32], strides = [1, 1]} : vector<8x96xf32> to vector<8x32xf32>
    %168 = vector.extract_strided_slice %156 {offsets = [0, 64], sizes = [8, 32], strides = [1, 1]} : vector<8x96xf32> to vector<8x32xf32>
    %169 = arith.addf %168, %9 : vector<8x32xf32>
    %170 = arith.mulf %165, %169 : vector<8x32xf32>
    %171 = arith.addf %167, %170 : vector<8x32xf32>
    %172 = math.tanh %171 : vector<8x32xf32>
    %cst_37 = arith.constant 1.000000e+00 : f32
    %173 = vector.broadcast %cst_37 : f32 to vector<8x32xf32>
    %174 = arith.subf %173, %166 : vector<8x32xf32>
    %175 = arith.mulf %174, %172 : vector<8x32xf32>
    %176 = arith.mulf %166, %153 : vector<8x32xf32>
    %177 = arith.addf %175, %176 : vector<8x32xf32>
    %c48 = arith.constant 48 : index
    %c0_38 = arith.constant 0 : index
    %178 = vector.load %arg21[%c48, %c0_38] : memref<64x32xf32, #tpu.memory_space<vmem>>, vector<8x32xf32>
    tpu.vector_store %arg21[%c48, %c0_38], %177 {strides = array<i32>} : memref<64x32xf32, #tpu.memory_space<vmem>>, vector<8x32xf32>,
    %179 = vector.extract_strided_slice %5 {offsets = [56, 0], sizes = [8, 96], strides = [1, 1]} : vector<64x96xf32> to vector<8x96xf32>
    %cst_39 = arith.constant dense<0.000000e+00> : vector<8x96xf32>
    %180 = tpu.matmul %177, %6, %cst_39 {dimension_numbers = #tpu.dot_dimension_numbers<[1], [0], [0], [1], [0, 0, 1, 1], [], []>} : vector<8x32xf32>, vector<32x96xf32>, vector<8x96xf32> -> vector<8x96xf32>
    %181 = vector.extract_strided_slice %179 {offsets = [0, 0], sizes = [8, 64], strides = [1, 1]} : vector<8x96xf32> to vector<8x64xf32>
    %182 = vector.extract_strided_slice %180 {offsets = [0, 0], sizes = [8, 64], strides = [1, 1]} : vector<8x96xf32> to vector<8x64xf32>
    %183 = arith.addf %181, %182 : vector<8x64xf32>
    %184 = arith.negf %183 : vector<8x64xf32>
    %185 = math.exp %184 : vector<8x64xf32>
    %cst_40 = arith.constant 1.000000e+00 : f32
    %186 = vector.broadcast %cst_40 : f32 to vector<8x64xf32>
    %187 = arith.addf %186, %185 : vector<8x64xf32>
    %188 = arith.divf %186, %187 : vector<8x64xf32>
    %189 = vector.extract_strided_slice %188 {offsets = [0, 0], sizes = [8, 32], strides = [1, 1]} : vector<8x64xf32> to vector<8x32xf32>
    %190 = vector.extract_strided_slice %188 {offsets = [0, 32], sizes = [8, 32], strides = [1, 1]} : vector<8x64xf32> to vector<8x32xf32>
    %191 = vector.extract_strided_slice %179 {offsets = [0, 64], sizes = [8, 32], strides = [1, 1]} : vector<8x96xf32> to vector<8x32xf32>
    %192 = vector.extract_strided_slice %180 {offsets = [0, 64], sizes = [8, 32], strides = [1, 1]} : vector<8x96xf32> to vector<8x32xf32>
    %193 = arith.addf %192, %9 : vector<8x32xf32>
    %194 = arith.mulf %189, %193 : vector<8x32xf32>
    %195 = arith.addf %191, %194 : vector<8x32xf32>
    %196 = math.tanh %195 : vector<8x32xf32>
    %cst_41 = arith.constant 1.000000e+00 : f32
    %197 = vector.broadcast %cst_41 : f32 to vector<8x32xf32>
    %198 = arith.subf %197, %190 : vector<8x32xf32>
    %199 = arith.mulf %198, %196 : vector<8x32xf32>
    %200 = arith.mulf %190, %177 : vector<8x32xf32>
    %201 = arith.addf %199, %200 : vector<8x32xf32>
    %c56 = arith.constant 56 : index
    %c0_42 = arith.constant 0 : index
    %202 = vector.load %arg21[%c56, %c0_42] : memref<64x32xf32, #tpu.memory_space<vmem>>, vector<8x32xf32>
    tpu.vector_store %arg21[%c56, %c0_42], %201 {strides = array<i32>} : memref<64x32xf32, #tpu.memory_space<vmem>>, vector<8x32xf32>,
    %c0_43 = arith.constant 0 : index
    %c0_44 = arith.constant 0 : index
    %203 = vector.load %arg21[%c0_43, %c0_44] : memref<64x32xf32, #tpu.memory_space<vmem>>, vector<64x32xf32>
    %c0_45 = arith.constant 0 : index
    %c0_46 = arith.constant 0 : index
    %204 = vector.load %arg6[%c0_45, %c0_46] : memref<32x96xf32, #tpu.memory_space<vmem>>, vector<32x96xf32>
    %cst_47 = arith.constant dense<0.000000e+00> : vector<64x96xf32>
    %205 = tpu.matmul %203, %204, %cst_47 {dimension_numbers = #tpu.dot_dimension_numbers<[1], [0], [0], [1], [0, 0, 1, 1], [], []>} : vector<64x32xf32>, vector<32x96xf32>, vector<64x96xf32> -> vector<64x96xf32>
    %c0_48 = arith.constant 0 : index
    %c0_49 = arith.constant 0 : index
    %206 = vector.load %arg8[%c0_48, %c0_49] : memref<1x96xf32, #tpu.memory_space<vmem>>, vector<1x96xf32>
    %207 = vector.broadcast %206 : vector<1x96xf32> to vector<64x96xf32>
    %208 = arith.addf %205, %207 : vector<64x96xf32>
    %c0_50 = arith.constant 0 : index
    %c0_51 = arith.constant 0 : index
    %209 = vector.load %arg7[%c0_50, %c0_51] : memref<32x96xf32, #tpu.memory_space<vmem>>, vector<32x96xf32>
    %c0_52 = arith.constant 0 : index
    %c0_53 = arith.constant 0 : index
    %210 = vector.load %arg9[%c0_52, %c0_53] : memref<1x32xf32, #tpu.memory_space<vmem>>, vector<1x32xf32>
    %211 = vector.shape_cast %210 : vector<1x32xf32> to vector<1x32xf32>
    %212 = vector.broadcast %211 : vector<1x32xf32> to vector<8x32xf32>
    %cst_54 = arith.constant 0.000000e+00 : f32
    %213 = vector.broadcast %cst_54 : f32 to vector<8x32xf32>
    %214 = vector.extract_strided_slice %208 {offsets = [0, 0], sizes = [8, 96], strides = [1, 1]} : vector<64x96xf32> to vector<8x96xf32>
    %cst_55 = arith.constant dense<0.000000e+00> : vector<8x96xf32>
    %215 = tpu.matmul %213, %209, %cst_55 {dimension_numbers = #tpu.dot_dimension_numbers<[1], [0], [0], [1], [0, 0, 1, 1], [], []>} : vector<8x32xf32>, vector<32x96xf32>, vector<8x96xf32> -> vector<8x96xf32>
    %216 = vector.extract_strided_slice %214 {offsets = [0, 0], sizes = [8, 64], strides = [1, 1]} : vector<8x96xf32> to vector<8x64xf32>
    %217 = vector.extract_strided_slice %215 {offsets = [0, 0], sizes = [8, 64], strides = [1, 1]} : vector<8x96xf32> to vector<8x64xf32>
    %218 = arith.addf %216, %217 : vector<8x64xf32>
    %219 = arith.negf %218 : vector<8x64xf32>
    %220 = math.exp %219 : vector<8x64xf32>
    %cst_56 = arith.constant 1.000000e+00 : f32
    %221 = vector.broadcast %cst_56 : f32 to vector<8x64xf32>
    %222 = arith.addf %221, %220 : vector<8x64xf32>
    %223 = arith.divf %221, %222 : vector<8x64xf32>
    %224 = vector.extract_strided_slice %223 {offsets = [0, 0], sizes = [8, 32], strides = [1, 1]} : vector<8x64xf32> to vector<8x32xf32>
    %225 = vector.extract_strided_slice %223 {offsets = [0, 32], sizes = [8, 32], strides = [1, 1]} : vector<8x64xf32> to vector<8x32xf32>
    %226 = vector.extract_strided_slice %214 {offsets = [0, 64], sizes = [8, 32], strides = [1, 1]} : vector<8x96xf32> to vector<8x32xf32>
    %227 = vector.extract_strided_slice %215 {offsets = [0, 64], sizes = [8, 32], strides = [1, 1]} : vector<8x96xf32> to vector<8x32xf32>
    %228 = arith.addf %227, %212 : vector<8x32xf32>
    %229 = arith.mulf %224, %228 : vector<8x32xf32>
    %230 = arith.addf %226, %229 : vector<8x32xf32>
    %231 = math.tanh %230 : vector<8x32xf32>
    %cst_57 = arith.constant 1.000000e+00 : f32
    %232 = vector.broadcast %cst_57 : f32 to vector<8x32xf32>
    %233 = arith.subf %232, %225 : vector<8x32xf32>
    %234 = arith.mulf %233, %231 : vector<8x32xf32>
    %235 = arith.mulf %225, %213 : vector<8x32xf32>
    %236 = arith.addf %234, %235 : vector<8x32xf32>
    %c0_58 = arith.constant 0 : index
    %c0_59 = arith.constant 0 : index
    %237 = vector.load %arg21[%c0_58, %c0_59] : memref<64x32xf32, #tpu.memory_space<vmem>>, vector<8x32xf32>
    tpu.vector_store %arg21[%c0_58, %c0_59], %236 {strides = array<i32>} : memref<64x32xf32, #tpu.memory_space<vmem>>, vector<8x32xf32>,
    %238 = vector.extract_strided_slice %208 {offsets = [8, 0], sizes = [8, 96], strides = [1, 1]} : vector<64x96xf32> to vector<8x96xf32>
    %cst_60 = arith.constant dense<0.000000e+00> : vector<8x96xf32>
    %239 = tpu.matmul %236, %209, %cst_60 {dimension_numbers = #tpu.dot_dimension_numbers<[1], [0], [0], [1], [0, 0, 1, 1], [], []>} : vector<8x32xf32>, vector<32x96xf32>, vector<8x96xf32> -> vector<8x96xf32>
    %240 = vector.extract_strided_slice %238 {offsets = [0, 0], sizes = [8, 64], strides = [1, 1]} : vector<8x96xf32> to vector<8x64xf32>
    %241 = vector.extract_strided_slice %239 {offsets = [0, 0], sizes = [8, 64], strides = [1, 1]} : vector<8x96xf32> to vector<8x64xf32>
    %242 = arith.addf %240, %241 : vector<8x64xf32>
    %243 = arith.negf %242 : vector<8x64xf32>
    %244 = math.exp %243 : vector<8x64xf32>
    %cst_61 = arith.constant 1.000000e+00 : f32
    %245 = vector.broadcast %cst_61 : f32 to vector<8x64xf32>
    %246 = arith.addf %245, %244 : vector<8x64xf32>
    %247 = arith.divf %245, %246 : vector<8x64xf32>
    %248 = vector.extract_strided_slice %247 {offsets = [0, 0], sizes = [8, 32], strides = [1, 1]} : vector<8x64xf32> to vector<8x32xf32>
    %249 = vector.extract_strided_slice %247 {offsets = [0, 32], sizes = [8, 32], strides = [1, 1]} : vector<8x64xf32> to vector<8x32xf32>
    %250 = vector.extract_strided_slice %238 {offsets = [0, 64], sizes = [8, 32], strides = [1, 1]} : vector<8x96xf32> to vector<8x32xf32>
    %251 = vector.extract_strided_slice %239 {offsets = [0, 64], sizes = [8, 32], strides = [1, 1]} : vector<8x96xf32> to vector<8x32xf32>
    %252 = arith.addf %251, %212 : vector<8x32xf32>
    %253 = arith.mulf %248, %252 : vector<8x32xf32>
    %254 = arith.addf %250, %253 : vector<8x32xf32>
    %255 = math.tanh %254 : vector<8x32xf32>
    %cst_62 = arith.constant 1.000000e+00 : f32
    %256 = vector.broadcast %cst_62 : f32 to vector<8x32xf32>
    %257 = arith.subf %256, %249 : vector<8x32xf32>
    %258 = arith.mulf %257, %255 : vector<8x32xf32>
    %259 = arith.mulf %249, %236 : vector<8x32xf32>
    %260 = arith.addf %258, %259 : vector<8x32xf32>
    %c8_63 = arith.constant 8 : index
    %c0_64 = arith.constant 0 : index
    %261 = vector.load %arg21[%c8_63, %c0_64] : memref<64x32xf32, #tpu.memory_space<vmem>>, vector<8x32xf32>
    tpu.vector_store %arg21[%c8_63, %c0_64], %260 {strides = array<i32>} : memref<64x32xf32, #tpu.memory_space<vmem>>, vector<8x32xf32>,
    %262 = vector.extract_strided_slice %208 {offsets = [16, 0], sizes = [8, 96], strides = [1, 1]} : vector<64x96xf32> to vector<8x96xf32>
    %cst_65 = arith.constant dense<0.000000e+00> : vector<8x96xf32>
    %263 = tpu.matmul %260, %209, %cst_65 {dimension_numbers = #tpu.dot_dimension_numbers<[1], [0], [0], [1], [0, 0, 1, 1], [], []>} : vector<8x32xf32>, vector<32x96xf32>, vector<8x96xf32> -> vector<8x96xf32>
    %264 = vector.extract_strided_slice %262 {offsets = [0, 0], sizes = [8, 64], strides = [1, 1]} : vector<8x96xf32> to vector<8x64xf32>
    %265 = vector.extract_strided_slice %263 {offsets = [0, 0], sizes = [8, 64], strides = [1, 1]} : vector<8x96xf32> to vector<8x64xf32>
    %266 = arith.addf %264, %265 : vector<8x64xf32>
    %267 = arith.negf %266 : vector<8x64xf32>
    %268 = math.exp %267 : vector<8x64xf32>
    %cst_66 = arith.constant 1.000000e+00 : f32
    %269 = vector.broadcast %cst_66 : f32 to vector<8x64xf32>
    %270 = arith.addf %269, %268 : vector<8x64xf32>
    %271 = arith.divf %269, %270 : vector<8x64xf32>
    %272 = vector.extract_strided_slice %271 {offsets = [0, 0], sizes = [8, 32], strides = [1, 1]} : vector<8x64xf32> to vector<8x32xf32>
    %273 = vector.extract_strided_slice %271 {offsets = [0, 32], sizes = [8, 32], strides = [1, 1]} : vector<8x64xf32> to vector<8x32xf32>
    %274 = vector.extract_strided_slice %262 {offsets = [0, 64], sizes = [8, 32], strides = [1, 1]} : vector<8x96xf32> to vector<8x32xf32>
    %275 = vector.extract_strided_slice %263 {offsets = [0, 64], sizes = [8, 32], strides = [1, 1]} : vector<8x96xf32> to vector<8x32xf32>
    %276 = arith.addf %275, %212 : vector<8x32xf32>
    %277 = arith.mulf %272, %276 : vector<8x32xf32>
    %278 = arith.addf %274, %277 : vector<8x32xf32>
    %279 = math.tanh %278 : vector<8x32xf32>
    %cst_67 = arith.constant 1.000000e+00 : f32
    %280 = vector.broadcast %cst_67 : f32 to vector<8x32xf32>
    %281 = arith.subf %280, %273 : vector<8x32xf32>
    %282 = arith.mulf %281, %279 : vector<8x32xf32>
    %283 = arith.mulf %273, %260 : vector<8x32xf32>
    %284 = arith.addf %282, %283 : vector<8x32xf32>
    %c16_68 = arith.constant 16 : index
    %c0_69 = arith.constant 0 : index
    %285 = vector.load %arg21[%c16_68, %c0_69] : memref<64x32xf32, #tpu.memory_space<vmem>>, vector<8x32xf32>
    tpu.vector_store %arg21[%c16_68, %c0_69], %284 {strides = array<i32>} : memref<64x32xf32, #tpu.memory_space<vmem>>, vector<8x32xf32>,
    %286 = vector.extract_strided_slice %208 {offsets = [24, 0], sizes = [8, 96], strides = [1, 1]} : vector<64x96xf32> to vector<8x96xf32>
    %cst_70 = arith.constant dense<0.000000e+00> : vector<8x96xf32>
    %287 = tpu.matmul %284, %209, %cst_70 {dimension_numbers = #tpu.dot_dimension_numbers<[1], [0], [0], [1], [0, 0, 1, 1], [], []>} : vector<8x32xf32>, vector<32x96xf32>, vector<8x96xf32> -> vector<8x96xf32>
    %288 = vector.extract_strided_slice %286 {offsets = [0, 0], sizes = [8, 64], strides = [1, 1]} : vector<8x96xf32> to vector<8x64xf32>
    %289 = vector.extract_strided_slice %287 {offsets = [0, 0], sizes = [8, 64], strides = [1, 1]} : vector<8x96xf32> to vector<8x64xf32>
    %290 = arith.addf %288, %289 : vector<8x64xf32>
    %291 = arith.negf %290 : vector<8x64xf32>
    %292 = math.exp %291 : vector<8x64xf32>
    %cst_71 = arith.constant 1.000000e+00 : f32
    %293 = vector.broadcast %cst_71 : f32 to vector<8x64xf32>
    %294 = arith.addf %293, %292 : vector<8x64xf32>
    %295 = arith.divf %293, %294 : vector<8x64xf32>
    %296 = vector.extract_strided_slice %295 {offsets = [0, 0], sizes = [8, 32], strides = [1, 1]} : vector<8x64xf32> to vector<8x32xf32>
    %297 = vector.extract_strided_slice %295 {offsets = [0, 32], sizes = [8, 32], strides = [1, 1]} : vector<8x64xf32> to vector<8x32xf32>
    %298 = vector.extract_strided_slice %286 {offsets = [0, 64], sizes = [8, 32], strides = [1, 1]} : vector<8x96xf32> to vector<8x32xf32>
    %299 = vector.extract_strided_slice %287 {offsets = [0, 64], sizes = [8, 32], strides = [1, 1]} : vector<8x96xf32> to vector<8x32xf32>
    %300 = arith.addf %299, %212 : vector<8x32xf32>
    %301 = arith.mulf %296, %300 : vector<8x32xf32>
    %302 = arith.addf %298, %301 : vector<8x32xf32>
    %303 = math.tanh %302 : vector<8x32xf32>
    %cst_72 = arith.constant 1.000000e+00 : f32
    %304 = vector.broadcast %cst_72 : f32 to vector<8x32xf32>
    %305 = arith.subf %304, %297 : vector<8x32xf32>
    %306 = arith.mulf %305, %303 : vector<8x32xf32>
    %307 = arith.mulf %297, %284 : vector<8x32xf32>
    %308 = arith.addf %306, %307 : vector<8x32xf32>
    %c24_73 = arith.constant 24 : index
    %c0_74 = arith.constant 0 : index
    %309 = vector.load %arg21[%c24_73, %c0_74] : memref<64x32xf32, #tpu.memory_space<vmem>>, vector<8x32xf32>
    tpu.vector_store %arg21[%c24_73, %c0_74], %308 {strides = array<i32>} : memref<64x32xf32, #tpu.memory_space<vmem>>, vector<8x32xf32>,
    %310 = vector.extract_strided_slice %208 {offsets = [32, 0], sizes = [8, 96], strides = [1, 1]} : vector<64x96xf32> to vector<8x96xf32>
    %cst_75 = arith.constant dense<0.000000e+00> : vector<8x96xf32>
    %311 = tpu.matmul %308, %209, %cst_75 {dimension_numbers = #tpu.dot_dimension_numbers<[1], [0], [0], [1], [0, 0, 1, 1], [], []>} : vector<8x32xf32>, vector<32x96xf32>, vector<8x96xf32> -> vector<8x96xf32>
    %312 = vector.extract_strided_slice %310 {offsets = [0, 0], sizes = [8, 64], strides = [1, 1]} : vector<8x96xf32> to vector<8x64xf32>
    %313 = vector.extract_strided_slice %311 {offsets = [0, 0], sizes = [8, 64], strides = [1, 1]} : vector<8x96xf32> to vector<8x64xf32>
    %314 = arith.addf %312, %313 : vector<8x64xf32>
    %315 = arith.negf %314 : vector<8x64xf32>
    %316 = math.exp %315 : vector<8x64xf32>
    %cst_76 = arith.constant 1.000000e+00 : f32
    %317 = vector.broadcast %cst_76 : f32 to vector<8x64xf32>
    %318 = arith.addf %317, %316 : vector<8x64xf32>
    %319 = arith.divf %317, %318 : vector<8x64xf32>
    %320 = vector.extract_strided_slice %319 {offsets = [0, 0], sizes = [8, 32], strides = [1, 1]} : vector<8x64xf32> to vector<8x32xf32>
    %321 = vector.extract_strided_slice %319 {offsets = [0, 32], sizes = [8, 32], strides = [1, 1]} : vector<8x64xf32> to vector<8x32xf32>
    %322 = vector.extract_strided_slice %310 {offsets = [0, 64], sizes = [8, 32], strides = [1, 1]} : vector<8x96xf32> to vector<8x32xf32>
    %323 = vector.extract_strided_slice %311 {offsets = [0, 64], sizes = [8, 32], strides = [1, 1]} : vector<8x96xf32> to vector<8x32xf32>
    %324 = arith.addf %323, %212 : vector<8x32xf32>
    %325 = arith.mulf %320, %324 : vector<8x32xf32>
    %326 = arith.addf %322, %325 : vector<8x32xf32>
    %327 = math.tanh %326 : vector<8x32xf32>
    %cst_77 = arith.constant 1.000000e+00 : f32
    %328 = vector.broadcast %cst_77 : f32 to vector<8x32xf32>
    %329 = arith.subf %328, %321 : vector<8x32xf32>
    %330 = arith.mulf %329, %327 : vector<8x32xf32>
    %331 = arith.mulf %321, %308 : vector<8x32xf32>
    %332 = arith.addf %330, %331 : vector<8x32xf32>
    %c32_78 = arith.constant 32 : index
    %c0_79 = arith.constant 0 : index
    %333 = vector.load %arg21[%c32_78, %c0_79] : memref<64x32xf32, #tpu.memory_space<vmem>>, vector<8x32xf32>
    tpu.vector_store %arg21[%c32_78, %c0_79], %332 {strides = array<i32>} : memref<64x32xf32, #tpu.memory_space<vmem>>, vector<8x32xf32>,
    %334 = vector.extract_strided_slice %208 {offsets = [40, 0], sizes = [8, 96], strides = [1, 1]} : vector<64x96xf32> to vector<8x96xf32>
    %cst_80 = arith.constant dense<0.000000e+00> : vector<8x96xf32>
    %335 = tpu.matmul %332, %209, %cst_80 {dimension_numbers = #tpu.dot_dimension_numbers<[1], [0], [0], [1], [0, 0, 1, 1], [], []>} : vector<8x32xf32>, vector<32x96xf32>, vector<8x96xf32> -> vector<8x96xf32>
    %336 = vector.extract_strided_slice %334 {offsets = [0, 0], sizes = [8, 64], strides = [1, 1]} : vector<8x96xf32> to vector<8x64xf32>
    %337 = vector.extract_strided_slice %335 {offsets = [0, 0], sizes = [8, 64], strides = [1, 1]} : vector<8x96xf32> to vector<8x64xf32>
    %338 = arith.addf %336, %337 : vector<8x64xf32>
    %339 = arith.negf %338 : vector<8x64xf32>
    %340 = math.exp %339 : vector<8x64xf32>
    %cst_81 = arith.constant 1.000000e+00 : f32
    %341 = vector.broadcast %cst_81 : f32 to vector<8x64xf32>
    %342 = arith.addf %341, %340 : vector<8x64xf32>
    %343 = arith.divf %341, %342 : vector<8x64xf32>
    %344 = vector.extract_strided_slice %343 {offsets = [0, 0], sizes = [8, 32], strides = [1, 1]} : vector<8x64xf32> to vector<8x32xf32>
    %345 = vector.extract_strided_slice %343 {offsets = [0, 32], sizes = [8, 32], strides = [1, 1]} : vector<8x64xf32> to vector<8x32xf32>
    %346 = vector.extract_strided_slice %334 {offsets = [0, 64], sizes = [8, 32], strides = [1, 1]} : vector<8x96xf32> to vector<8x32xf32>
    %347 = vector.extract_strided_slice %335 {offsets = [0, 64], sizes = [8, 32], strides = [1, 1]} : vector<8x96xf32> to vector<8x32xf32>
    %348 = arith.addf %347, %212 : vector<8x32xf32>
    %349 = arith.mulf %344, %348 : vector<8x32xf32>
    %350 = arith.addf %346, %349 : vector<8x32xf32>
    %351 = math.tanh %350 : vector<8x32xf32>
    %cst_82 = arith.constant 1.000000e+00 : f32
    %352 = vector.broadcast %cst_82 : f32 to vector<8x32xf32>
    %353 = arith.subf %352, %345 : vector<8x32xf32>
    %354 = arith.mulf %353, %351 : vector<8x32xf32>
    %355 = arith.mulf %345, %332 : vector<8x32xf32>
    %356 = arith.addf %354, %355 : vector<8x32xf32>
    %c40_83 = arith.constant 40 : index
    %c0_84 = arith.constant 0 : index
    %357 = vector.load %arg21[%c40_83, %c0_84] : memref<64x32xf32, #tpu.memory_space<vmem>>, vector<8x32xf32>
    tpu.vector_store %arg21[%c40_83, %c0_84], %356 {strides = array<i32>} : memref<64x32xf32, #tpu.memory_space<vmem>>, vector<8x32xf32>,
    %358 = vector.extract_strided_slice %208 {offsets = [48, 0], sizes = [8, 96], strides = [1, 1]} : vector<64x96xf32> to vector<8x96xf32>
    %cst_85 = arith.constant dense<0.000000e+00> : vector<8x96xf32>
    %359 = tpu.matmul %356, %209, %cst_85 {dimension_numbers = #tpu.dot_dimension_numbers<[1], [0], [0], [1], [0, 0, 1, 1], [], []>} : vector<8x32xf32>, vector<32x96xf32>, vector<8x96xf32> -> vector<8x96xf32>
    %360 = vector.extract_strided_slice %358 {offsets = [0, 0], sizes = [8, 64], strides = [1, 1]} : vector<8x96xf32> to vector<8x64xf32>
    %361 = vector.extract_strided_slice %359 {offsets = [0, 0], sizes = [8, 64], strides = [1, 1]} : vector<8x96xf32> to vector<8x64xf32>
    %362 = arith.addf %360, %361 : vector<8x64xf32>
    %363 = arith.negf %362 : vector<8x64xf32>
    %364 = math.exp %363 : vector<8x64xf32>
    %cst_86 = arith.constant 1.000000e+00 : f32
    %365 = vector.broadcast %cst_86 : f32 to vector<8x64xf32>
    %366 = arith.addf %365, %364 : vector<8x64xf32>
    %367 = arith.divf %365, %366 : vector<8x64xf32>
    %368 = vector.extract_strided_slice %367 {offsets = [0, 0], sizes = [8, 32], strides = [1, 1]} : vector<8x64xf32> to vector<8x32xf32>
    %369 = vector.extract_strided_slice %367 {offsets = [0, 32], sizes = [8, 32], strides = [1, 1]} : vector<8x64xf32> to vector<8x32xf32>
    %370 = vector.extract_strided_slice %358 {offsets = [0, 64], sizes = [8, 32], strides = [1, 1]} : vector<8x96xf32> to vector<8x32xf32>
    %371 = vector.extract_strided_slice %359 {offsets = [0, 64], sizes = [8, 32], strides = [1, 1]} : vector<8x96xf32> to vector<8x32xf32>
    %372 = arith.addf %371, %212 : vector<8x32xf32>
    %373 = arith.mulf %368, %372 : vector<8x32xf32>
    %374 = arith.addf %370, %373 : vector<8x32xf32>
    %375 = math.tanh %374 : vector<8x32xf32>
    %cst_87 = arith.constant 1.000000e+00 : f32
    %376 = vector.broadcast %cst_87 : f32 to vector<8x32xf32>
    %377 = arith.subf %376, %369 : vector<8x32xf32>
    %378 = arith.mulf %377, %375 : vector<8x32xf32>
    %379 = arith.mulf %369, %356 : vector<8x32xf32>
    %380 = arith.addf %378, %379 : vector<8x32xf32>
    %c48_88 = arith.constant 48 : index
    %c0_89 = arith.constant 0 : index
    %381 = vector.load %arg21[%c48_88, %c0_89] : memref<64x32xf32, #tpu.memory_space<vmem>>, vector<8x32xf32>
    tpu.vector_store %arg21[%c48_88, %c0_89], %380 {strides = array<i32>} : memref<64x32xf32, #tpu.memory_space<vmem>>, vector<8x32xf32>,
    %382 = vector.extract_strided_slice %208 {offsets = [56, 0], sizes = [8, 96], strides = [1, 1]} : vector<64x96xf32> to vector<8x96xf32>
    %cst_90 = arith.constant dense<0.000000e+00> : vector<8x96xf32>
    %383 = tpu.matmul %380, %209, %cst_90 {dimension_numbers = #tpu.dot_dimension_numbers<[1], [0], [0], [1], [0, 0, 1, 1], [], []>} : vector<8x32xf32>, vector<32x96xf32>, vector<8x96xf32> -> vector<8x96xf32>
    %384 = vector.extract_strided_slice %382 {offsets = [0, 0], sizes = [8, 64], strides = [1, 1]} : vector<8x96xf32> to vector<8x64xf32>
    %385 = vector.extract_strided_slice %383 {offsets = [0, 0], sizes = [8, 64], strides = [1, 1]} : vector<8x96xf32> to vector<8x64xf32>
    %386 = arith.addf %384, %385 : vector<8x64xf32>
    %387 = arith.negf %386 : vector<8x64xf32>
    %388 = math.exp %387 : vector<8x64xf32>
    %cst_91 = arith.constant 1.000000e+00 : f32
    %389 = vector.broadcast %cst_91 : f32 to vector<8x64xf32>
    %390 = arith.addf %389, %388 : vector<8x64xf32>
    %391 = arith.divf %389, %390 : vector<8x64xf32>
    %392 = vector.extract_strided_slice %391 {offsets = [0, 0], sizes = [8, 32], strides = [1, 1]} : vector<8x64xf32> to vector<8x32xf32>
    %393 = vector.extract_strided_slice %391 {offsets = [0, 32], sizes = [8, 32], strides = [1, 1]} : vector<8x64xf32> to vector<8x32xf32>
    %394 = vector.extract_strided_slice %382 {offsets = [0, 64], sizes = [8, 32], strides = [1, 1]} : vector<8x96xf32> to vector<8x32xf32>
    %395 = vector.extract_strided_slice %383 {offsets = [0, 64], sizes = [8, 32], strides = [1, 1]} : vector<8x96xf32> to vector<8x32xf32>
    %396 = arith.addf %395, %212 : vector<8x32xf32>
    %397 = arith.mulf %392, %396 : vector<8x32xf32>
    %398 = arith.addf %394, %397 : vector<8x32xf32>
    %399 = math.tanh %398 : vector<8x32xf32>
    %cst_92 = arith.constant 1.000000e+00 : f32
    %400 = vector.broadcast %cst_92 : f32 to vector<8x32xf32>
    %401 = arith.subf %400, %393 : vector<8x32xf32>
    %402 = arith.mulf %401, %399 : vector<8x32xf32>
    %403 = arith.mulf %393, %380 : vector<8x32xf32>
    %404 = arith.addf %402, %403 : vector<8x32xf32>
    %c56_93 = arith.constant 56 : index
    %c0_94 = arith.constant 0 : index
    %405 = vector.load %arg21[%c56_93, %c0_94] : memref<64x32xf32, #tpu.memory_space<vmem>>, vector<8x32xf32>
    tpu.vector_store %arg21[%c56_93, %c0_94], %404 {strides = array<i32>} : memref<64x32xf32, #tpu.memory_space<vmem>>, vector<8x32xf32>,
    %c0_95 = arith.constant 0 : index
    %c0_96 = arith.constant 0 : index
    %406 = vector.load %arg21[%c0_95, %c0_96] : memref<64x32xf32, #tpu.memory_space<vmem>>, vector<64x32xf32>
    %c0_97 = arith.constant 0 : index
    %c0_98 = arith.constant 0 : index
    %407 = vector.load %arg10[%c0_97, %c0_98] : memref<32x24xf32, #tpu.memory_space<vmem>>, vector<32x24xf32>
    %cst_99 = arith.constant dense<0.000000e+00> : vector<64x24xf32>
    %408 = tpu.matmul %406, %407, %cst_99 {dimension_numbers = #tpu.dot_dimension_numbers<[1], [0], [0], [1], [0, 0, 1, 1], [], []>} : vector<64x32xf32>, vector<32x24xf32>, vector<64x24xf32> -> vector<64x24xf32>
    %c0_100 = arith.constant 0 : index
    %c0_101 = arith.constant 0 : index
    %409 = vector.load %arg12[%c0_100, %c0_101] : memref<1x24xf32, #tpu.memory_space<vmem>>, vector<1x24xf32>
    %410 = vector.broadcast %409 : vector<1x24xf32> to vector<64x24xf32>
    %411 = arith.addf %408, %410 : vector<64x24xf32>
    %c0_102 = arith.constant 0 : index
    %c0_103 = arith.constant 0 : index
    %412 = vector.load %arg11[%c0_102, %c0_103] : memref<8x24xf32, #tpu.memory_space<vmem>>, vector<8x24xf32>
    %c0_104 = arith.constant 0 : index
    %c0_105 = arith.constant 0 : index
    %413 = vector.load %arg13[%c0_104, %c0_105] : memref<1x8xf32, #tpu.memory_space<vmem>>, vector<1x8xf32>
    %414 = vector.shape_cast %413 : vector<1x8xf32> to vector<1x8xf32>
    %415 = vector.broadcast %414 : vector<1x8xf32> to vector<8x8xf32>
    %cst_106 = arith.constant 0.000000e+00 : f32
    %416 = vector.broadcast %cst_106 : f32 to vector<8x8xf32>
    %417 = vector.extract_strided_slice %411 {offsets = [0, 0], sizes = [8, 24], strides = [1, 1]} : vector<64x24xf32> to vector<8x24xf32>
    %cst_107 = arith.constant dense<0.000000e+00> : vector<8x24xf32>
    %418 = tpu.matmul %416, %412, %cst_107 {dimension_numbers = #tpu.dot_dimension_numbers<[1], [0], [0], [1], [0, 0, 1, 1], [], []>} : vector<8x8xf32>, vector<8x24xf32>, vector<8x24xf32> -> vector<8x24xf32>
    %419 = vector.extract_strided_slice %417 {offsets = [0, 0], sizes = [8, 16], strides = [1, 1]} : vector<8x24xf32> to vector<8x16xf32>
    %420 = vector.extract_strided_slice %418 {offsets = [0, 0], sizes = [8, 16], strides = [1, 1]} : vector<8x24xf32> to vector<8x16xf32>
    %421 = arith.addf %419, %420 : vector<8x16xf32>
    %422 = arith.negf %421 : vector<8x16xf32>
    %423 = math.exp %422 : vector<8x16xf32>
    %cst_108 = arith.constant 1.000000e+00 : f32
    %424 = vector.broadcast %cst_108 : f32 to vector<8x16xf32>
    %425 = arith.addf %424, %423 : vector<8x16xf32>
    %426 = arith.divf %424, %425 : vector<8x16xf32>
    %427 = vector.extract_strided_slice %426 {offsets = [0, 0], sizes = [8, 8], strides = [1, 1]} : vector<8x16xf32> to vector<8x8xf32>
    %428 = vector.extract_strided_slice %426 {offsets = [0, 8], sizes = [8, 8], strides = [1, 1]} : vector<8x16xf32> to vector<8x8xf32>
    %429 = vector.extract_strided_slice %417 {offsets = [0, 16], sizes = [8, 8], strides = [1, 1]} : vector<8x24xf32> to vector<8x8xf32>
    %430 = vector.extract_strided_slice %418 {offsets = [0, 16], sizes = [8, 8], strides = [1, 1]} : vector<8x24xf32> to vector<8x8xf32>
    %431 = arith.addf %430, %415 : vector<8x8xf32>
    %432 = arith.mulf %427, %431 : vector<8x8xf32>
    %433 = arith.addf %429, %432 : vector<8x8xf32>
    %434 = math.tanh %433 : vector<8x8xf32>
    %cst_109 = arith.constant 1.000000e+00 : f32
    %435 = vector.broadcast %cst_109 : f32 to vector<8x8xf32>
    %436 = arith.subf %435, %428 : vector<8x8xf32>
    %437 = arith.mulf %436, %434 : vector<8x8xf32>
    %438 = arith.mulf %428, %416 : vector<8x8xf32>
    %439 = arith.addf %437, %438 : vector<8x8xf32>
    %c0_110 = arith.constant 0 : index
    %c0_111 = arith.constant 0 : index
    %440 = vector.load %arg21[%c0_110, %c0_111] : memref<64x32xf32, #tpu.memory_space<vmem>>, vector<8x8xf32>
    tpu.vector_store %arg21[%c0_110, %c0_111], %439 {strides = array<i32>} : memref<64x32xf32, #tpu.memory_space<vmem>>, vector<8x8xf32>,
    %441 = vector.extract_strided_slice %411 {offsets = [8, 0], sizes = [8, 24], strides = [1, 1]} : vector<64x24xf32> to vector<8x24xf32>
    %cst_112 = arith.constant dense<0.000000e+00> : vector<8x24xf32>
    %442 = tpu.matmul %439, %412, %cst_112 {dimension_numbers = #tpu.dot_dimension_numbers<[1], [0], [0], [1], [0, 0, 1, 1], [], []>} : vector<8x8xf32>, vector<8x24xf32>, vector<8x24xf32> -> vector<8x24xf32>
    %443 = vector.extract_strided_slice %441 {offsets = [0, 0], sizes = [8, 16], strides = [1, 1]} : vector<8x24xf32> to vector<8x16xf32>
    %444 = vector.extract_strided_slice %442 {offsets = [0, 0], sizes = [8, 16], strides = [1, 1]} : vector<8x24xf32> to vector<8x16xf32>
    %445 = arith.addf %443, %444 : vector<8x16xf32>
    %446 = arith.negf %445 : vector<8x16xf32>
    %447 = math.exp %446 : vector<8x16xf32>
    %cst_113 = arith.constant 1.000000e+00 : f32
    %448 = vector.broadcast %cst_113 : f32 to vector<8x16xf32>
    %449 = arith.addf %448, %447 : vector<8x16xf32>
    %450 = arith.divf %448, %449 : vector<8x16xf32>
    %451 = vector.extract_strided_slice %450 {offsets = [0, 0], sizes = [8, 8], strides = [1, 1]} : vector<8x16xf32> to vector<8x8xf32>
    %452 = vector.extract_strided_slice %450 {offsets = [0, 8], sizes = [8, 8], strides = [1, 1]} : vector<8x16xf32> to vector<8x8xf32>
    %453 = vector.extract_strided_slice %441 {offsets = [0, 16], sizes = [8, 8], strides = [1, 1]} : vector<8x24xf32> to vector<8x8xf32>
    %454 = vector.extract_strided_slice %442 {offsets = [0, 16], sizes = [8, 8], strides = [1, 1]} : vector<8x24xf32> to vector<8x8xf32>
    %455 = arith.addf %454, %415 : vector<8x8xf32>
    %456 = arith.mulf %451, %455 : vector<8x8xf32>
    %457 = arith.addf %453, %456 : vector<8x8xf32>
    %458 = math.tanh %457 : vector<8x8xf32>
    %cst_114 = arith.constant 1.000000e+00 : f32
    %459 = vector.broadcast %cst_114 : f32 to vector<8x8xf32>
    %460 = arith.subf %459, %452 : vector<8x8xf32>
    %461 = arith.mulf %460, %458 : vector<8x8xf32>
    %462 = arith.mulf %452, %439 : vector<8x8xf32>
    %463 = arith.addf %461, %462 : vector<8x8xf32>
    %c8_115 = arith.constant 8 : index
    %c0_116 = arith.constant 0 : index
    %464 = vector.load %arg21[%c8_115, %c0_116] : memref<64x32xf32, #tpu.memory_space<vmem>>, vector<8x8xf32>
    tpu.vector_store %arg21[%c8_115, %c0_116], %463 {strides = array<i32>} : memref<64x32xf32, #tpu.memory_space<vmem>>, vector<8x8xf32>,
    %465 = vector.extract_strided_slice %411 {offsets = [16, 0], sizes = [8, 24], strides = [1, 1]} : vector<64x24xf32> to vector<8x24xf32>
    %cst_117 = arith.constant dense<0.000000e+00> : vector<8x24xf32>
    %466 = tpu.matmul %463, %412, %cst_117 {dimension_numbers = #tpu.dot_dimension_numbers<[1], [0], [0], [1], [0, 0, 1, 1], [], []>} : vector<8x8xf32>, vector<8x24xf32>, vector<8x24xf32> -> vector<8x24xf32>
    %467 = vector.extract_strided_slice %465 {offsets = [0, 0], sizes = [8, 16], strides = [1, 1]} : vector<8x24xf32> to vector<8x16xf32>
    %468 = vector.extract_strided_slice %466 {offsets = [0, 0], sizes = [8, 16], strides = [1, 1]} : vector<8x24xf32> to vector<8x16xf32>
    %469 = arith.addf %467, %468 : vector<8x16xf32>
    %470 = arith.negf %469 : vector<8x16xf32>
    %471 = math.exp %470 : vector<8x16xf32>
    %cst_118 = arith.constant 1.000000e+00 : f32
    %472 = vector.broadcast %cst_118 : f32 to vector<8x16xf32>
    %473 = arith.addf %472, %471 : vector<8x16xf32>
    %474 = arith.divf %472, %473 : vector<8x16xf32>
    %475 = vector.extract_strided_slice %474 {offsets = [0, 0], sizes = [8, 8], strides = [1, 1]} : vector<8x16xf32> to vector<8x8xf32>
    %476 = vector.extract_strided_slice %474 {offsets = [0, 8], sizes = [8, 8], strides = [1, 1]} : vector<8x16xf32> to vector<8x8xf32>
    %477 = vector.extract_strided_slice %465 {offsets = [0, 16], sizes = [8, 8], strides = [1, 1]} : vector<8x24xf32> to vector<8x8xf32>
    %478 = vector.extract_strided_slice %466 {offsets = [0, 16], sizes = [8, 8], strides = [1, 1]} : vector<8x24xf32> to vector<8x8xf32>
    %479 = arith.addf %478, %415 : vector<8x8xf32>
    %480 = arith.mulf %475, %479 : vector<8x8xf32>
    %481 = arith.addf %477, %480 : vector<8x8xf32>
    %482 = math.tanh %481 : vector<8x8xf32>
    %cst_119 = arith.constant 1.000000e+00 : f32
    %483 = vector.broadcast %cst_119 : f32 to vector<8x8xf32>
    %484 = arith.subf %483, %476 : vector<8x8xf32>
    %485 = arith.mulf %484, %482 : vector<8x8xf32>
    %486 = arith.mulf %476, %463 : vector<8x8xf32>
    %487 = arith.addf %485, %486 : vector<8x8xf32>
    %c16_120 = arith.constant 16 : index
    %c0_121 = arith.constant 0 : index
    %488 = vector.load %arg21[%c16_120, %c0_121] : memref<64x32xf32, #tpu.memory_space<vmem>>, vector<8x8xf32>
    tpu.vector_store %arg21[%c16_120, %c0_121], %487 {strides = array<i32>} : memref<64x32xf32, #tpu.memory_space<vmem>>, vector<8x8xf32>,
    %489 = vector.extract_strided_slice %411 {offsets = [24, 0], sizes = [8, 24], strides = [1, 1]} : vector<64x24xf32> to vector<8x24xf32>
    %cst_122 = arith.constant dense<0.000000e+00> : vector<8x24xf32>
    %490 = tpu.matmul %487, %412, %cst_122 {dimension_numbers = #tpu.dot_dimension_numbers<[1], [0], [0], [1], [0, 0, 1, 1], [], []>} : vector<8x8xf32>, vector<8x24xf32>, vector<8x24xf32> -> vector<8x24xf32>
    %491 = vector.extract_strided_slice %489 {offsets = [0, 0], sizes = [8, 16], strides = [1, 1]} : vector<8x24xf32> to vector<8x16xf32>
    %492 = vector.extract_strided_slice %490 {offsets = [0, 0], sizes = [8, 16], strides = [1, 1]} : vector<8x24xf32> to vector<8x16xf32>
    %493 = arith.addf %491, %492 : vector<8x16xf32>
    %494 = arith.negf %493 : vector<8x16xf32>
    %495 = math.exp %494 : vector<8x16xf32>
    %cst_123 = arith.constant 1.000000e+00 : f32
    %496 = vector.broadcast %cst_123 : f32 to vector<8x16xf32>
    %497 = arith.addf %496, %495 : vector<8x16xf32>
    %498 = arith.divf %496, %497 : vector<8x16xf32>
    %499 = vector.extract_strided_slice %498 {offsets = [0, 0], sizes = [8, 8], strides = [1, 1]} : vector<8x16xf32> to vector<8x8xf32>
    %500 = vector.extract_strided_slice %498 {offsets = [0, 8], sizes = [8, 8], strides = [1, 1]} : vector<8x16xf32> to vector<8x8xf32>
    %501 = vector.extract_strided_slice %489 {offsets = [0, 16], sizes = [8, 8], strides = [1, 1]} : vector<8x24xf32> to vector<8x8xf32>
    %502 = vector.extract_strided_slice %490 {offsets = [0, 16], sizes = [8, 8], strides = [1, 1]} : vector<8x24xf32> to vector<8x8xf32>
    %503 = arith.addf %502, %415 : vector<8x8xf32>
    %504 = arith.mulf %499, %503 : vector<8x8xf32>
    %505 = arith.addf %501, %504 : vector<8x8xf32>
    %506 = math.tanh %505 : vector<8x8xf32>
    %cst_124 = arith.constant 1.000000e+00 : f32
    %507 = vector.broadcast %cst_124 : f32 to vector<8x8xf32>
    %508 = arith.subf %507, %500 : vector<8x8xf32>
    %509 = arith.mulf %508, %506 : vector<8x8xf32>
    %510 = arith.mulf %500, %487 : vector<8x8xf32>
    %511 = arith.addf %509, %510 : vector<8x8xf32>
    %c24_125 = arith.constant 24 : index
    %c0_126 = arith.constant 0 : index
    %512 = vector.load %arg21[%c24_125, %c0_126] : memref<64x32xf32, #tpu.memory_space<vmem>>, vector<8x8xf32>
    tpu.vector_store %arg21[%c24_125, %c0_126], %511 {strides = array<i32>} : memref<64x32xf32, #tpu.memory_space<vmem>>, vector<8x8xf32>,
    %513 = vector.extract_strided_slice %411 {offsets = [32, 0], sizes = [8, 24], strides = [1, 1]} : vector<64x24xf32> to vector<8x24xf32>
    %cst_127 = arith.constant dense<0.000000e+00> : vector<8x24xf32>
    %514 = tpu.matmul %511, %412, %cst_127 {dimension_numbers = #tpu.dot_dimension_numbers<[1], [0], [0], [1], [0, 0, 1, 1], [], []>} : vector<8x8xf32>, vector<8x24xf32>, vector<8x24xf32> -> vector<8x24xf32>
    %515 = vector.extract_strided_slice %513 {offsets = [0, 0], sizes = [8, 16], strides = [1, 1]} : vector<8x24xf32> to vector<8x16xf32>
    %516 = vector.extract_strided_slice %514 {offsets = [0, 0], sizes = [8, 16], strides = [1, 1]} : vector<8x24xf32> to vector<8x16xf32>
    %517 = arith.addf %515, %516 : vector<8x16xf32>
    %518 = arith.negf %517 : vector<8x16xf32>
    %519 = math.exp %518 : vector<8x16xf32>
    %cst_128 = arith.constant 1.000000e+00 : f32
    %520 = vector.broadcast %cst_128 : f32 to vector<8x16xf32>
    %521 = arith.addf %520, %519 : vector<8x16xf32>
    %522 = arith.divf %520, %521 : vector<8x16xf32>
    %523 = vector.extract_strided_slice %522 {offsets = [0, 0], sizes = [8, 8], strides = [1, 1]} : vector<8x16xf32> to vector<8x8xf32>
    %524 = vector.extract_strided_slice %522 {offsets = [0, 8], sizes = [8, 8], strides = [1, 1]} : vector<8x16xf32> to vector<8x8xf32>
    %525 = vector.extract_strided_slice %513 {offsets = [0, 16], sizes = [8, 8], strides = [1, 1]} : vector<8x24xf32> to vector<8x8xf32>
    %526 = vector.extract_strided_slice %514 {offsets = [0, 16], sizes = [8, 8], strides = [1, 1]} : vector<8x24xf32> to vector<8x8xf32>
    %527 = arith.addf %526, %415 : vector<8x8xf32>
    %528 = arith.mulf %523, %527 : vector<8x8xf32>
    %529 = arith.addf %525, %528 : vector<8x8xf32>
    %530 = math.tanh %529 : vector<8x8xf32>
    %cst_129 = arith.constant 1.000000e+00 : f32
    %531 = vector.broadcast %cst_129 : f32 to vector<8x8xf32>
    %532 = arith.subf %531, %524 : vector<8x8xf32>
    %533 = arith.mulf %532, %530 : vector<8x8xf32>
    %534 = arith.mulf %524, %511 : vector<8x8xf32>
    %535 = arith.addf %533, %534 : vector<8x8xf32>
    %c32_130 = arith.constant 32 : index
    %c0_131 = arith.constant 0 : index
    %536 = vector.load %arg21[%c32_130, %c0_131] : memref<64x32xf32, #tpu.memory_space<vmem>>, vector<8x8xf32>
    tpu.vector_store %arg21[%c32_130, %c0_131], %535 {strides = array<i32>} : memref<64x32xf32, #tpu.memory_space<vmem>>, vector<8x8xf32>,
    %537 = vector.extract_strided_slice %411 {offsets = [40, 0], sizes = [8, 24], strides = [1, 1]} : vector<64x24xf32> to vector<8x24xf32>
    %cst_132 = arith.constant dense<0.000000e+00> : vector<8x24xf32>
    %538 = tpu.matmul %535, %412, %cst_132 {dimension_numbers = #tpu.dot_dimension_numbers<[1], [0], [0], [1], [0, 0, 1, 1], [], []>} : vector<8x8xf32>, vector<8x24xf32>, vector<8x24xf32> -> vector<8x24xf32>
    %539 = vector.extract_strided_slice %537 {offsets = [0, 0], sizes = [8, 16], strides = [1, 1]} : vector<8x24xf32> to vector<8x16xf32>
    %540 = vector.extract_strided_slice %538 {offsets = [0, 0], sizes = [8, 16], strides = [1, 1]} : vector<8x24xf32> to vector<8x16xf32>
    %541 = arith.addf %539, %540 : vector<8x16xf32>
    %542 = arith.negf %541 : vector<8x16xf32>
    %543 = math.exp %542 : vector<8x16xf32>
    %cst_133 = arith.constant 1.000000e+00 : f32
    %544 = vector.broadcast %cst_133 : f32 to vector<8x16xf32>
    %545 = arith.addf %544, %543 : vector<8x16xf32>
    %546 = arith.divf %544, %545 : vector<8x16xf32>
    %547 = vector.extract_strided_slice %546 {offsets = [0, 0], sizes = [8, 8], strides = [1, 1]} : vector<8x16xf32> to vector<8x8xf32>
    %548 = vector.extract_strided_slice %546 {offsets = [0, 8], sizes = [8, 8], strides = [1, 1]} : vector<8x16xf32> to vector<8x8xf32>
    %549 = vector.extract_strided_slice %537 {offsets = [0, 16], sizes = [8, 8], strides = [1, 1]} : vector<8x24xf32> to vector<8x8xf32>
    %550 = vector.extract_strided_slice %538 {offsets = [0, 16], sizes = [8, 8], strides = [1, 1]} : vector<8x24xf32> to vector<8x8xf32>
    %551 = arith.addf %550, %415 : vector<8x8xf32>
    %552 = arith.mulf %547, %551 : vector<8x8xf32>
    %553 = arith.addf %549, %552 : vector<8x8xf32>
    %554 = math.tanh %553 : vector<8x8xf32>
    %cst_134 = arith.constant 1.000000e+00 : f32
    %555 = vector.broadcast %cst_134 : f32 to vector<8x8xf32>
    %556 = arith.subf %555, %548 : vector<8x8xf32>
    %557 = arith.mulf %556, %554 : vector<8x8xf32>
    %558 = arith.mulf %548, %535 : vector<8x8xf32>
    %559 = arith.addf %557, %558 : vector<8x8xf32>
    %c40_135 = arith.constant 40 : index
    %c0_136 = arith.constant 0 : index
    %560 = vector.load %arg21[%c40_135, %c0_136] : memref<64x32xf32, #tpu.memory_space<vmem>>, vector<8x8xf32>
    tpu.vector_store %arg21[%c40_135, %c0_136], %559 {strides = array<i32>} : memref<64x32xf32, #tpu.memory_space<vmem>>, vector<8x8xf32>,
    %561 = vector.extract_strided_slice %411 {offsets = [48, 0], sizes = [8, 24], strides = [1, 1]} : vector<64x24xf32> to vector<8x24xf32>
    %cst_137 = arith.constant dense<0.000000e+00> : vector<8x24xf32>
    %562 = tpu.matmul %559, %412, %cst_137 {dimension_numbers = #tpu.dot_dimension_numbers<[1], [0], [0], [1], [0, 0, 1, 1], [], []>} : vector<8x8xf32>, vector<8x24xf32>, vector<8x24xf32> -> vector<8x24xf32>
    %563 = vector.extract_strided_slice %561 {offsets = [0, 0], sizes = [8, 16], strides = [1, 1]} : vector<8x24xf32> to vector<8x16xf32>
    %564 = vector.extract_strided_slice %562 {offsets = [0, 0], sizes = [8, 16], strides = [1, 1]} : vector<8x24xf32> to vector<8x16xf32>
    %565 = arith.addf %563, %564 : vector<8x16xf32>
    %566 = arith.negf %565 : vector<8x16xf32>
    %567 = math.exp %566 : vector<8x16xf32>
    %cst_138 = arith.constant 1.000000e+00 : f32
    %568 = vector.broadcast %cst_138 : f32 to vector<8x16xf32>
    %569 = arith.addf %568, %567 : vector<8x16xf32>
    %570 = arith.divf %568, %569 : vector<8x16xf32>
    %571 = vector.extract_strided_slice %570 {offsets = [0, 0], sizes = [8, 8], strides = [1, 1]} : vector<8x16xf32> to vector<8x8xf32>
    %572 = vector.extract_strided_slice %570 {offsets = [0, 8], sizes = [8, 8], strides = [1, 1]} : vector<8x16xf32> to vector<8x8xf32>
    %573 = vector.extract_strided_slice %561 {offsets = [0, 16], sizes = [8, 8], strides = [1, 1]} : vector<8x24xf32> to vector<8x8xf32>
    %574 = vector.extract_strided_slice %562 {offsets = [0, 16], sizes = [8, 8], strides = [1, 1]} : vector<8x24xf32> to vector<8x8xf32>
    %575 = arith.addf %574, %415 : vector<8x8xf32>
    %576 = arith.mulf %571, %575 : vector<8x8xf32>
    %577 = arith.addf %573, %576 : vector<8x8xf32>
    %578 = math.tanh %577 : vector<8x8xf32>
    %cst_139 = arith.constant 1.000000e+00 : f32
    %579 = vector.broadcast %cst_139 : f32 to vector<8x8xf32>
    %580 = arith.subf %579, %572 : vector<8x8xf32>
    %581 = arith.mulf %580, %578 : vector<8x8xf32>
    %582 = arith.mulf %572, %559 : vector<8x8xf32>
    %583 = arith.addf %581, %582 : vector<8x8xf32>
    %c48_140 = arith.constant 48 : index
    %c0_141 = arith.constant 0 : index
    %584 = vector.load %arg21[%c48_140, %c0_141] : memref<64x32xf32, #tpu.memory_space<vmem>>, vector<8x8xf32>
    tpu.vector_store %arg21[%c48_140, %c0_141], %583 {strides = array<i32>} : memref<64x32xf32, #tpu.memory_space<vmem>>, vector<8x8xf32>,
    %585 = vector.extract_strided_slice %411 {offsets = [56, 0], sizes = [8, 24], strides = [1, 1]} : vector<64x24xf32> to vector<8x24xf32>
    %cst_142 = arith.constant dense<0.000000e+00> : vector<8x24xf32>
    %586 = tpu.matmul %583, %412, %cst_142 {dimension_numbers = #tpu.dot_dimension_numbers<[1], [0], [0], [1], [0, 0, 1, 1], [], []>} : vector<8x8xf32>, vector<8x24xf32>, vector<8x24xf32> -> vector<8x24xf32>
    %587 = vector.extract_strided_slice %585 {offsets = [0, 0], sizes = [8, 16], strides = [1, 1]} : vector<8x24xf32> to vector<8x16xf32>
    %588 = vector.extract_strided_slice %586 {offsets = [0, 0], sizes = [8, 16], strides = [1, 1]} : vector<8x24xf32> to vector<8x16xf32>
    %589 = arith.addf %587, %588 : vector<8x16xf32>
    %590 = arith.negf %589 : vector<8x16xf32>
    %591 = math.exp %590 : vector<8x16xf32>
    %cst_143 = arith.constant 1.000000e+00 : f32
    %592 = vector.broadcast %cst_143 : f32 to vector<8x16xf32>
    %593 = arith.addf %592, %591 : vector<8x16xf32>
    %594 = arith.divf %592, %593 : vector<8x16xf32>
    %595 = vector.extract_strided_slice %594 {offsets = [0, 0], sizes = [8, 8], strides = [1, 1]} : vector<8x16xf32> to vector<8x8xf32>
    %596 = vector.extract_strided_slice %594 {offsets = [0, 8], sizes = [8, 8], strides = [1, 1]} : vector<8x16xf32> to vector<8x8xf32>
    %597 = vector.extract_strided_slice %585 {offsets = [0, 16], sizes = [8, 8], strides = [1, 1]} : vector<8x24xf32> to vector<8x8xf32>
    %598 = vector.extract_strided_slice %586 {offsets = [0, 16], sizes = [8, 8], strides = [1, 1]} : vector<8x24xf32> to vector<8x8xf32>
    %599 = arith.addf %598, %415 : vector<8x8xf32>
    %600 = arith.mulf %595, %599 : vector<8x8xf32>
    %601 = arith.addf %597, %600 : vector<8x8xf32>
    %602 = math.tanh %601 : vector<8x8xf32>
    %cst_144 = arith.constant 1.000000e+00 : f32
    %603 = vector.broadcast %cst_144 : f32 to vector<8x8xf32>
    %604 = arith.subf %603, %596 : vector<8x8xf32>
    %605 = arith.mulf %604, %602 : vector<8x8xf32>
    %606 = arith.mulf %596, %583 : vector<8x8xf32>
    %607 = arith.addf %605, %606 : vector<8x8xf32>
    %c56_145 = arith.constant 56 : index
    %c0_146 = arith.constant 0 : index
    %608 = vector.load %arg21[%c56_145, %c0_146] : memref<64x32xf32, #tpu.memory_space<vmem>>, vector<8x8xf32>
    tpu.vector_store %arg21[%c56_145, %c0_146], %607 {strides = array<i32>} : memref<64x32xf32, #tpu.memory_space<vmem>>, vector<8x8xf32>,
    %c0_147 = arith.constant 0 : index
    %c0_148 = arith.constant 0 : index
    %609 = vector.load %arg21[%c0_147, %c0_148] : memref<64x32xf32, #tpu.memory_space<vmem>>, vector<64x8xf32>
    %c0_149 = arith.constant 0 : index
    %c0_150 = arith.constant 0 : index
    %610 = vector.load %arg14[%c0_149, %c0_150] : memref<8x24xf32, #tpu.memory_space<vmem>>, vector<8x24xf32>
    %cst_151 = arith.constant dense<0.000000e+00> : vector<64x24xf32>
    %611 = tpu.matmul %609, %610, %cst_151 {dimension_numbers = #tpu.dot_dimension_numbers<[1], [0], [0], [1], [0, 0, 1, 1], [], []>} : vector<64x8xf32>, vector<8x24xf32>, vector<64x24xf32> -> vector<64x24xf32>
    %c0_152 = arith.constant 0 : index
    %c0_153 = arith.constant 0 : index
    %612 = vector.load %arg16[%c0_152, %c0_153] : memref<1x24xf32, #tpu.memory_space<vmem>>, vector<1x24xf32>
    %613 = vector.broadcast %612 : vector<1x24xf32> to vector<64x24xf32>
    %614 = arith.addf %611, %613 : vector<64x24xf32>
    %c0_154 = arith.constant 0 : index
    %c0_155 = arith.constant 0 : index
    %615 = vector.load %arg15[%c0_154, %c0_155] : memref<8x24xf32, #tpu.memory_space<vmem>>, vector<8x24xf32>
    %c0_156 = arith.constant 0 : index
    %c0_157 = arith.constant 0 : index
    %616 = vector.load %arg17[%c0_156, %c0_157] : memref<1x8xf32, #tpu.memory_space<vmem>>, vector<1x8xf32>
    %617 = vector.shape_cast %616 : vector<1x8xf32> to vector<1x8xf32>
    %618 = vector.broadcast %617 : vector<1x8xf32> to vector<8x8xf32>
    %cst_158 = arith.constant 0.000000e+00 : f32
    %619 = vector.broadcast %cst_158 : f32 to vector<8x8xf32>
    %620 = vector.extract_strided_slice %614 {offsets = [0, 0], sizes = [8, 24], strides = [1, 1]} : vector<64x24xf32> to vector<8x24xf32>
    %cst_159 = arith.constant dense<0.000000e+00> : vector<8x24xf32>
    %621 = tpu.matmul %619, %615, %cst_159 {dimension_numbers = #tpu.dot_dimension_numbers<[1], [0], [0], [1], [0, 0, 1, 1], [], []>} : vector<8x8xf32>, vector<8x24xf32>, vector<8x24xf32> -> vector<8x24xf32>
    %622 = vector.extract_strided_slice %620 {offsets = [0, 0], sizes = [8, 16], strides = [1, 1]} : vector<8x24xf32> to vector<8x16xf32>
    %623 = vector.extract_strided_slice %621 {offsets = [0, 0], sizes = [8, 16], strides = [1, 1]} : vector<8x24xf32> to vector<8x16xf32>
    %624 = arith.addf %622, %623 : vector<8x16xf32>
    %625 = arith.negf %624 : vector<8x16xf32>
    %626 = math.exp %625 : vector<8x16xf32>
    %cst_160 = arith.constant 1.000000e+00 : f32
    %627 = vector.broadcast %cst_160 : f32 to vector<8x16xf32>
    %628 = arith.addf %627, %626 : vector<8x16xf32>
    %629 = arith.divf %627, %628 : vector<8x16xf32>
    %630 = vector.extract_strided_slice %629 {offsets = [0, 0], sizes = [8, 8], strides = [1, 1]} : vector<8x16xf32> to vector<8x8xf32>
    %631 = vector.extract_strided_slice %629 {offsets = [0, 8], sizes = [8, 8], strides = [1, 1]} : vector<8x16xf32> to vector<8x8xf32>
    %632 = vector.extract_strided_slice %620 {offsets = [0, 16], sizes = [8, 8], strides = [1, 1]} : vector<8x24xf32> to vector<8x8xf32>
    %633 = vector.extract_strided_slice %621 {offsets = [0, 16], sizes = [8, 8], strides = [1, 1]} : vector<8x24xf32> to vector<8x8xf32>
    %634 = arith.addf %633, %618 : vector<8x8xf32>
    %635 = arith.mulf %630, %634 : vector<8x8xf32>
    %636 = arith.addf %632, %635 : vector<8x8xf32>
    %637 = math.tanh %636 : vector<8x8xf32>
    %cst_161 = arith.constant 1.000000e+00 : f32
    %638 = vector.broadcast %cst_161 : f32 to vector<8x8xf32>
    %639 = arith.subf %638, %631 : vector<8x8xf32>
    %640 = arith.mulf %639, %637 : vector<8x8xf32>
    %641 = arith.mulf %631, %619 : vector<8x8xf32>
    %642 = arith.addf %640, %641 : vector<8x8xf32>
    %c0_162 = arith.constant 0 : index
    %c0_163 = arith.constant 0 : index
    %643 = vector.load %arg21[%c0_162, %c0_163] : memref<64x32xf32, #tpu.memory_space<vmem>>, vector<8x8xf32>
    tpu.vector_store %arg21[%c0_162, %c0_163], %642 {strides = array<i32>} : memref<64x32xf32, #tpu.memory_space<vmem>>, vector<8x8xf32>,
    %644 = vector.extract_strided_slice %614 {offsets = [8, 0], sizes = [8, 24], strides = [1, 1]} : vector<64x24xf32> to vector<8x24xf32>
    %cst_164 = arith.constant dense<0.000000e+00> : vector<8x24xf32>
    %645 = tpu.matmul %642, %615, %cst_164 {dimension_numbers = #tpu.dot_dimension_numbers<[1], [0], [0], [1], [0, 0, 1, 1], [], []>} : vector<8x8xf32>, vector<8x24xf32>, vector<8x24xf32> -> vector<8x24xf32>
    %646 = vector.extract_strided_slice %644 {offsets = [0, 0], sizes = [8, 16], strides = [1, 1]} : vector<8x24xf32> to vector<8x16xf32>
    %647 = vector.extract_strided_slice %645 {offsets = [0, 0], sizes = [8, 16], strides = [1, 1]} : vector<8x24xf32> to vector<8x16xf32>
    %648 = arith.addf %646, %647 : vector<8x16xf32>
    %649 = arith.negf %648 : vector<8x16xf32>
    %650 = math.exp %649 : vector<8x16xf32>
    %cst_165 = arith.constant 1.000000e+00 : f32
    %651 = vector.broadcast %cst_165 : f32 to vector<8x16xf32>
    %652 = arith.addf %651, %650 : vector<8x16xf32>
    %653 = arith.divf %651, %652 : vector<8x16xf32>
    %654 = vector.extract_strided_slice %653 {offsets = [0, 0], sizes = [8, 8], strides = [1, 1]} : vector<8x16xf32> to vector<8x8xf32>
    %655 = vector.extract_strided_slice %653 {offsets = [0, 8], sizes = [8, 8], strides = [1, 1]} : vector<8x16xf32> to vector<8x8xf32>
    %656 = vector.extract_strided_slice %644 {offsets = [0, 16], sizes = [8, 8], strides = [1, 1]} : vector<8x24xf32> to vector<8x8xf32>
    %657 = vector.extract_strided_slice %645 {offsets = [0, 16], sizes = [8, 8], strides = [1, 1]} : vector<8x24xf32> to vector<8x8xf32>
    %658 = arith.addf %657, %618 : vector<8x8xf32>
    %659 = arith.mulf %654, %658 : vector<8x8xf32>
    %660 = arith.addf %656, %659 : vector<8x8xf32>
    %661 = math.tanh %660 : vector<8x8xf32>
    %cst_166 = arith.constant 1.000000e+00 : f32
    %662 = vector.broadcast %cst_166 : f32 to vector<8x8xf32>
    %663 = arith.subf %662, %655 : vector<8x8xf32>
    %664 = arith.mulf %663, %661 : vector<8x8xf32>
    %665 = arith.mulf %655, %642 : vector<8x8xf32>
    %666 = arith.addf %664, %665 : vector<8x8xf32>
    %c8_167 = arith.constant 8 : index
    %c0_168 = arith.constant 0 : index
    %667 = vector.load %arg21[%c8_167, %c0_168] : memref<64x32xf32, #tpu.memory_space<vmem>>, vector<8x8xf32>
    tpu.vector_store %arg21[%c8_167, %c0_168], %666 {strides = array<i32>} : memref<64x32xf32, #tpu.memory_space<vmem>>, vector<8x8xf32>,
    %668 = vector.extract_strided_slice %614 {offsets = [16, 0], sizes = [8, 24], strides = [1, 1]} : vector<64x24xf32> to vector<8x24xf32>
    %cst_169 = arith.constant dense<0.000000e+00> : vector<8x24xf32>
    %669 = tpu.matmul %666, %615, %cst_169 {dimension_numbers = #tpu.dot_dimension_numbers<[1], [0], [0], [1], [0, 0, 1, 1], [], []>} : vector<8x8xf32>, vector<8x24xf32>, vector<8x24xf32> -> vector<8x24xf32>
    %670 = vector.extract_strided_slice %668 {offsets = [0, 0], sizes = [8, 16], strides = [1, 1]} : vector<8x24xf32> to vector<8x16xf32>
    %671 = vector.extract_strided_slice %669 {offsets = [0, 0], sizes = [8, 16], strides = [1, 1]} : vector<8x24xf32> to vector<8x16xf32>
    %672 = arith.addf %670, %671 : vector<8x16xf32>
    %673 = arith.negf %672 : vector<8x16xf32>
    %674 = math.exp %673 : vector<8x16xf32>
    %cst_170 = arith.constant 1.000000e+00 : f32
    %675 = vector.broadcast %cst_170 : f32 to vector<8x16xf32>
    %676 = arith.addf %675, %674 : vector<8x16xf32>
    %677 = arith.divf %675, %676 : vector<8x16xf32>
    %678 = vector.extract_strided_slice %677 {offsets = [0, 0], sizes = [8, 8], strides = [1, 1]} : vector<8x16xf32> to vector<8x8xf32>
    %679 = vector.extract_strided_slice %677 {offsets = [0, 8], sizes = [8, 8], strides = [1, 1]} : vector<8x16xf32> to vector<8x8xf32>
    %680 = vector.extract_strided_slice %668 {offsets = [0, 16], sizes = [8, 8], strides = [1, 1]} : vector<8x24xf32> to vector<8x8xf32>
    %681 = vector.extract_strided_slice %669 {offsets = [0, 16], sizes = [8, 8], strides = [1, 1]} : vector<8x24xf32> to vector<8x8xf32>
    %682 = arith.addf %681, %618 : vector<8x8xf32>
    %683 = arith.mulf %678, %682 : vector<8x8xf32>
    %684 = arith.addf %680, %683 : vector<8x8xf32>
    %685 = math.tanh %684 : vector<8x8xf32>
    %cst_171 = arith.constant 1.000000e+00 : f32
    %686 = vector.broadcast %cst_171 : f32 to vector<8x8xf32>
    %687 = arith.subf %686, %679 : vector<8x8xf32>
    %688 = arith.mulf %687, %685 : vector<8x8xf32>
    %689 = arith.mulf %679, %666 : vector<8x8xf32>
    %690 = arith.addf %688, %689 : vector<8x8xf32>
    %c16_172 = arith.constant 16 : index
    %c0_173 = arith.constant 0 : index
    %691 = vector.load %arg21[%c16_172, %c0_173] : memref<64x32xf32, #tpu.memory_space<vmem>>, vector<8x8xf32>
    tpu.vector_store %arg21[%c16_172, %c0_173], %690 {strides = array<i32>} : memref<64x32xf32, #tpu.memory_space<vmem>>, vector<8x8xf32>,
    %692 = vector.extract_strided_slice %614 {offsets = [24, 0], sizes = [8, 24], strides = [1, 1]} : vector<64x24xf32> to vector<8x24xf32>
    %cst_174 = arith.constant dense<0.000000e+00> : vector<8x24xf32>
    %693 = tpu.matmul %690, %615, %cst_174 {dimension_numbers = #tpu.dot_dimension_numbers<[1], [0], [0], [1], [0, 0, 1, 1], [], []>} : vector<8x8xf32>, vector<8x24xf32>, vector<8x24xf32> -> vector<8x24xf32>
    %694 = vector.extract_strided_slice %692 {offsets = [0, 0], sizes = [8, 16], strides = [1, 1]} : vector<8x24xf32> to vector<8x16xf32>
    %695 = vector.extract_strided_slice %693 {offsets = [0, 0], sizes = [8, 16], strides = [1, 1]} : vector<8x24xf32> to vector<8x16xf32>
    %696 = arith.addf %694, %695 : vector<8x16xf32>
    %697 = arith.negf %696 : vector<8x16xf32>
    %698 = math.exp %697 : vector<8x16xf32>
    %cst_175 = arith.constant 1.000000e+00 : f32
    %699 = vector.broadcast %cst_175 : f32 to vector<8x16xf32>
    %700 = arith.addf %699, %698 : vector<8x16xf32>
    %701 = arith.divf %699, %700 : vector<8x16xf32>
    %702 = vector.extract_strided_slice %701 {offsets = [0, 0], sizes = [8, 8], strides = [1, 1]} : vector<8x16xf32> to vector<8x8xf32>
    %703 = vector.extract_strided_slice %701 {offsets = [0, 8], sizes = [8, 8], strides = [1, 1]} : vector<8x16xf32> to vector<8x8xf32>
    %704 = vector.extract_strided_slice %692 {offsets = [0, 16], sizes = [8, 8], strides = [1, 1]} : vector<8x24xf32> to vector<8x8xf32>
    %705 = vector.extract_strided_slice %693 {offsets = [0, 16], sizes = [8, 8], strides = [1, 1]} : vector<8x24xf32> to vector<8x8xf32>
    %706 = arith.addf %705, %618 : vector<8x8xf32>
    %707 = arith.mulf %702, %706 : vector<8x8xf32>
    %708 = arith.addf %704, %707 : vector<8x8xf32>
    %709 = math.tanh %708 : vector<8x8xf32>
    %cst_176 = arith.constant 1.000000e+00 : f32
    %710 = vector.broadcast %cst_176 : f32 to vector<8x8xf32>
    %711 = arith.subf %710, %703 : vector<8x8xf32>
    %712 = arith.mulf %711, %709 : vector<8x8xf32>
    %713 = arith.mulf %703, %690 : vector<8x8xf32>
    %714 = arith.addf %712, %713 : vector<8x8xf32>
    %c24_177 = arith.constant 24 : index
    %c0_178 = arith.constant 0 : index
    %715 = vector.load %arg21[%c24_177, %c0_178] : memref<64x32xf32, #tpu.memory_space<vmem>>, vector<8x8xf32>
    tpu.vector_store %arg21[%c24_177, %c0_178], %714 {strides = array<i32>} : memref<64x32xf32, #tpu.memory_space<vmem>>, vector<8x8xf32>,
    %716 = vector.extract_strided_slice %614 {offsets = [32, 0], sizes = [8, 24], strides = [1, 1]} : vector<64x24xf32> to vector<8x24xf32>
    %cst_179 = arith.constant dense<0.000000e+00> : vector<8x24xf32>
    %717 = tpu.matmul %714, %615, %cst_179 {dimension_numbers = #tpu.dot_dimension_numbers<[1], [0], [0], [1], [0, 0, 1, 1], [], []>} : vector<8x8xf32>, vector<8x24xf32>, vector<8x24xf32> -> vector<8x24xf32>
    %718 = vector.extract_strided_slice %716 {offsets = [0, 0], sizes = [8, 16], strides = [1, 1]} : vector<8x24xf32> to vector<8x16xf32>
    %719 = vector.extract_strided_slice %717 {offsets = [0, 0], sizes = [8, 16], strides = [1, 1]} : vector<8x24xf32> to vector<8x16xf32>
    %720 = arith.addf %718, %719 : vector<8x16xf32>
    %721 = arith.negf %720 : vector<8x16xf32>
    %722 = math.exp %721 : vector<8x16xf32>
    %cst_180 = arith.constant 1.000000e+00 : f32
    %723 = vector.broadcast %cst_180 : f32 to vector<8x16xf32>
    %724 = arith.addf %723, %722 : vector<8x16xf32>
    %725 = arith.divf %723, %724 : vector<8x16xf32>
    %726 = vector.extract_strided_slice %725 {offsets = [0, 0], sizes = [8, 8], strides = [1, 1]} : vector<8x16xf32> to vector<8x8xf32>
    %727 = vector.extract_strided_slice %725 {offsets = [0, 8], sizes = [8, 8], strides = [1, 1]} : vector<8x16xf32> to vector<8x8xf32>
    %728 = vector.extract_strided_slice %716 {offsets = [0, 16], sizes = [8, 8], strides = [1, 1]} : vector<8x24xf32> to vector<8x8xf32>
    %729 = vector.extract_strided_slice %717 {offsets = [0, 16], sizes = [8, 8], strides = [1, 1]} : vector<8x24xf32> to vector<8x8xf32>
    %730 = arith.addf %729, %618 : vector<8x8xf32>
    %731 = arith.mulf %726, %730 : vector<8x8xf32>
    %732 = arith.addf %728, %731 : vector<8x8xf32>
    %733 = math.tanh %732 : vector<8x8xf32>
    %cst_181 = arith.constant 1.000000e+00 : f32
    %734 = vector.broadcast %cst_181 : f32 to vector<8x8xf32>
    %735 = arith.subf %734, %727 : vector<8x8xf32>
    %736 = arith.mulf %735, %733 : vector<8x8xf32>
    %737 = arith.mulf %727, %714 : vector<8x8xf32>
    %738 = arith.addf %736, %737 : vector<8x8xf32>
    %c32_182 = arith.constant 32 : index
    %c0_183 = arith.constant 0 : index
    %739 = vector.load %arg21[%c32_182, %c0_183] : memref<64x32xf32, #tpu.memory_space<vmem>>, vector<8x8xf32>
    tpu.vector_store %arg21[%c32_182, %c0_183], %738 {strides = array<i32>} : memref<64x32xf32, #tpu.memory_space<vmem>>, vector<8x8xf32>,
    %740 = vector.extract_strided_slice %614 {offsets = [40, 0], sizes = [8, 24], strides = [1, 1]} : vector<64x24xf32> to vector<8x24xf32>
    %cst_184 = arith.constant dense<0.000000e+00> : vector<8x24xf32>
    %741 = tpu.matmul %738, %615, %cst_184 {dimension_numbers = #tpu.dot_dimension_numbers<[1], [0], [0], [1], [0, 0, 1, 1], [], []>} : vector<8x8xf32>, vector<8x24xf32>, vector<8x24xf32> -> vector<8x24xf32>
    %742 = vector.extract_strided_slice %740 {offsets = [0, 0], sizes = [8, 16], strides = [1, 1]} : vector<8x24xf32> to vector<8x16xf32>
    %743 = vector.extract_strided_slice %741 {offsets = [0, 0], sizes = [8, 16], strides = [1, 1]} : vector<8x24xf32> to vector<8x16xf32>
    %744 = arith.addf %742, %743 : vector<8x16xf32>
    %745 = arith.negf %744 : vector<8x16xf32>
    %746 = math.exp %745 : vector<8x16xf32>
    %cst_185 = arith.constant 1.000000e+00 : f32
    %747 = vector.broadcast %cst_185 : f32 to vector<8x16xf32>
    %748 = arith.addf %747, %746 : vector<8x16xf32>
    %749 = arith.divf %747, %748 : vector<8x16xf32>
    %750 = vector.extract_strided_slice %749 {offsets = [0, 0], sizes = [8, 8], strides = [1, 1]} : vector<8x16xf32> to vector<8x8xf32>
    %751 = vector.extract_strided_slice %749 {offsets = [0, 8], sizes = [8, 8], strides = [1, 1]} : vector<8x16xf32> to vector<8x8xf32>
    %752 = vector.extract_strided_slice %740 {offsets = [0, 16], sizes = [8, 8], strides = [1, 1]} : vector<8x24xf32> to vector<8x8xf32>
    %753 = vector.extract_strided_slice %741 {offsets = [0, 16], sizes = [8, 8], strides = [1, 1]} : vector<8x24xf32> to vector<8x8xf32>
    %754 = arith.addf %753, %618 : vector<8x8xf32>
    %755 = arith.mulf %750, %754 : vector<8x8xf32>
    %756 = arith.addf %752, %755 : vector<8x8xf32>
    %757 = math.tanh %756 : vector<8x8xf32>
    %cst_186 = arith.constant 1.000000e+00 : f32
    %758 = vector.broadcast %cst_186 : f32 to vector<8x8xf32>
    %759 = arith.subf %758, %751 : vector<8x8xf32>
    %760 = arith.mulf %759, %757 : vector<8x8xf32>
    %761 = arith.mulf %751, %738 : vector<8x8xf32>
    %762 = arith.addf %760, %761 : vector<8x8xf32>
    %c40_187 = arith.constant 40 : index
    %c0_188 = arith.constant 0 : index
    %763 = vector.load %arg21[%c40_187, %c0_188] : memref<64x32xf32, #tpu.memory_space<vmem>>, vector<8x8xf32>
    tpu.vector_store %arg21[%c40_187, %c0_188], %762 {strides = array<i32>} : memref<64x32xf32, #tpu.memory_space<vmem>>, vector<8x8xf32>,
    %764 = vector.extract_strided_slice %614 {offsets = [48, 0], sizes = [8, 24], strides = [1, 1]} : vector<64x24xf32> to vector<8x24xf32>
    %cst_189 = arith.constant dense<0.000000e+00> : vector<8x24xf32>
    %765 = tpu.matmul %762, %615, %cst_189 {dimension_numbers = #tpu.dot_dimension_numbers<[1], [0], [0], [1], [0, 0, 1, 1], [], []>} : vector<8x8xf32>, vector<8x24xf32>, vector<8x24xf32> -> vector<8x24xf32>
    %766 = vector.extract_strided_slice %764 {offsets = [0, 0], sizes = [8, 16], strides = [1, 1]} : vector<8x24xf32> to vector<8x16xf32>
    %767 = vector.extract_strided_slice %765 {offsets = [0, 0], sizes = [8, 16], strides = [1, 1]} : vector<8x24xf32> to vector<8x16xf32>
    %768 = arith.addf %766, %767 : vector<8x16xf32>
    %769 = arith.negf %768 : vector<8x16xf32>
    %770 = math.exp %769 : vector<8x16xf32>
    %cst_190 = arith.constant 1.000000e+00 : f32
    %771 = vector.broadcast %cst_190 : f32 to vector<8x16xf32>
    %772 = arith.addf %771, %770 : vector<8x16xf32>
    %773 = arith.divf %771, %772 : vector<8x16xf32>
    %774 = vector.extract_strided_slice %773 {offsets = [0, 0], sizes = [8, 8], strides = [1, 1]} : vector<8x16xf32> to vector<8x8xf32>
    %775 = vector.extract_strided_slice %773 {offsets = [0, 8], sizes = [8, 8], strides = [1, 1]} : vector<8x16xf32> to vector<8x8xf32>
    %776 = vector.extract_strided_slice %764 {offsets = [0, 16], sizes = [8, 8], strides = [1, 1]} : vector<8x24xf32> to vector<8x8xf32>
    %777 = vector.extract_strided_slice %765 {offsets = [0, 16], sizes = [8, 8], strides = [1, 1]} : vector<8x24xf32> to vector<8x8xf32>
    %778 = arith.addf %777, %618 : vector<8x8xf32>
    %779 = arith.mulf %774, %778 : vector<8x8xf32>
    %780 = arith.addf %776, %779 : vector<8x8xf32>
    %781 = math.tanh %780 : vector<8x8xf32>
    %cst_191 = arith.constant 1.000000e+00 : f32
    %782 = vector.broadcast %cst_191 : f32 to vector<8x8xf32>
    %783 = arith.subf %782, %775 : vector<8x8xf32>
    %784 = arith.mulf %783, %781 : vector<8x8xf32>
    %785 = arith.mulf %775, %762 : vector<8x8xf32>
    %786 = arith.addf %784, %785 : vector<8x8xf32>
    %c48_192 = arith.constant 48 : index
    %c0_193 = arith.constant 0 : index
    %787 = vector.load %arg21[%c48_192, %c0_193] : memref<64x32xf32, #tpu.memory_space<vmem>>, vector<8x8xf32>
    tpu.vector_store %arg21[%c48_192, %c0_193], %786 {strides = array<i32>} : memref<64x32xf32, #tpu.memory_space<vmem>>, vector<8x8xf32>,
    %788 = vector.extract_strided_slice %614 {offsets = [56, 0], sizes = [8, 24], strides = [1, 1]} : vector<64x24xf32> to vector<8x24xf32>
    %cst_194 = arith.constant dense<0.000000e+00> : vector<8x24xf32>
    %789 = tpu.matmul %786, %615, %cst_194 {dimension_numbers = #tpu.dot_dimension_numbers<[1], [0], [0], [1], [0, 0, 1, 1], [], []>} : vector<8x8xf32>, vector<8x24xf32>, vector<8x24xf32> -> vector<8x24xf32>
    %790 = vector.extract_strided_slice %788 {offsets = [0, 0], sizes = [8, 16], strides = [1, 1]} : vector<8x24xf32> to vector<8x16xf32>
    %791 = vector.extract_strided_slice %789 {offsets = [0, 0], sizes = [8, 16], strides = [1, 1]} : vector<8x24xf32> to vector<8x16xf32>
    %792 = arith.addf %790, %791 : vector<8x16xf32>
    %793 = arith.negf %792 : vector<8x16xf32>
    %794 = math.exp %793 : vector<8x16xf32>
    %cst_195 = arith.constant 1.000000e+00 : f32
    %795 = vector.broadcast %cst_195 : f32 to vector<8x16xf32>
    %796 = arith.addf %795, %794 : vector<8x16xf32>
    %797 = arith.divf %795, %796 : vector<8x16xf32>
    %798 = vector.extract_strided_slice %797 {offsets = [0, 0], sizes = [8, 8], strides = [1, 1]} : vector<8x16xf32> to vector<8x8xf32>
    %799 = vector.extract_strided_slice %797 {offsets = [0, 8], sizes = [8, 8], strides = [1, 1]} : vector<8x16xf32> to vector<8x8xf32>
    %800 = vector.extract_strided_slice %788 {offsets = [0, 16], sizes = [8, 8], strides = [1, 1]} : vector<8x24xf32> to vector<8x8xf32>
    %801 = vector.extract_strided_slice %789 {offsets = [0, 16], sizes = [8, 8], strides = [1, 1]} : vector<8x24xf32> to vector<8x8xf32>
    %802 = arith.addf %801, %618 : vector<8x8xf32>
    %803 = arith.mulf %798, %802 : vector<8x8xf32>
    %804 = arith.addf %800, %803 : vector<8x8xf32>
    %805 = math.tanh %804 : vector<8x8xf32>
    %cst_196 = arith.constant 1.000000e+00 : f32
    %806 = vector.broadcast %cst_196 : f32 to vector<8x8xf32>
    %807 = arith.subf %806, %799 : vector<8x8xf32>
    %808 = arith.mulf %807, %805 : vector<8x8xf32>
    %809 = arith.mulf %799, %786 : vector<8x8xf32>
    %810 = arith.addf %808, %809 : vector<8x8xf32>
    %c56_197 = arith.constant 56 : index
    %c0_198 = arith.constant 0 : index
    %811 = vector.load %arg21[%c56_197, %c0_198] : memref<64x32xf32, #tpu.memory_space<vmem>>, vector<8x8xf32>
    tpu.vector_store %arg21[%c56_197, %c0_198], %810 {strides = array<i32>} : memref<64x32xf32, #tpu.memory_space<vmem>>, vector<8x8xf32>,
    %c0_199 = arith.constant 0 : index
    %c0_200 = arith.constant 0 : index
    %812 = vector.load %arg21[%c0_199, %c0_200] : memref<64x32xf32, #tpu.memory_space<vmem>>, vector<64x8xf32>
    %c0_201 = arith.constant 0 : index
    %c0_202 = arith.constant 0 : index
    %813 = vector.load %arg18[%c0_201, %c0_202] : memref<8x8xf32, #tpu.memory_space<vmem>>, vector<8x8xf32>
    %cst_203 = arith.constant dense<0.000000e+00> : vector<64x8xf32>
    %814 = tpu.matmul %812, %813, %cst_203 {dimension_numbers = #tpu.dot_dimension_numbers<[1], [0], [0], [1], [0, 0, 1, 1], [], []>} : vector<64x8xf32>, vector<8x8xf32>, vector<64x8xf32> -> vector<64x8xf32>
    %c0_204 = arith.constant 0 : index
    %c0_205 = arith.constant 0 : index
    %815 = vector.load %arg19[%c0_204, %c0_205] : memref<1x8xf32, #tpu.memory_space<vmem>>, vector<1x8xf32>
    %816 = vector.broadcast %815 : vector<1x8xf32> to vector<64x8xf32>
    %817 = arith.addf %814, %816 : vector<64x8xf32>
    %c0_206 = arith.constant 0 : index
    %c0_207 = arith.constant 0 : index
    %818 = vector.load %arg20[%c0_206, %c0_207] : memref<64x8xf32, #tpu.memory_space<vmem>>, vector<64x8xf32>
    tpu.vector_store %arg20[%c0_206, %c0_207], %817 {strides = array<i32>} : memref<64x8xf32, #tpu.memory_space<vmem>>, vector<64x8xf32>,
    return
  }
  func.func @transform_0(%arg0: i32) -> (i32, i32) {
    %c0_i32 = arith.constant 0 : i32
    %c0_i32_0 = arith.constant 0 : i32
    %c0_i32_1 = arith.constant 0 : i32
    return %c0_i32, %c0_i32_0 : i32, i32
  }
  func.func @transform_1(%arg0: i32) -> (i32, i32) {
    %c0_i32 = arith.constant 0 : i32
    %c0_i32_0 = arith.constant 0 : i32
    %c0_i32_1 = arith.constant 0 : i32
    return %c0_i32, %c0_i32_0 : i32, i32
  }
  func.func @transform_2(%arg0: i32) -> (i32, i32) {
    %c0_i32 = arith.constant 0 : i32
    %c0_i32_0 = arith.constant 0 : i32
    %c0_i32_1 = arith.constant 0 : i32
    return %c0_i32, %c0_i32_0 : i32, i32
  }
  func.func @transform_3(%arg0: i32) -> (i32, i32) {
    %c0_i32 = arith.constant 0 : i32
    %c0_i32_0 = arith.constant 0 : i32
    %c0_i32_1 = arith.constant 0 : i32
    return %c0_i32, %c0_i32_0 : i32, i32
  }
  func.func @transform_4(%arg0: i32) -> (i32, i32) {
    %c0_i32 = arith.constant 0 : i32
    %c0_i32_0 = arith.constant 0 : i32
    %c0_i32_1 = arith.constant 0 : i32
    return %c0_i32, %c0_i32_0 : i32, i32
  }
  func.func @transform_5(%arg0: i32) -> (i32, i32) {
    %c0_i32 = arith.constant 0 : i32
    %c0_i32_0 = arith.constant 0 : i32
    %c0_i32_1 = arith.constant 0 : i32
    return %c0_i32, %c0_i32_0 : i32, i32
  }
  func.func @transform_6(%arg0: i32) -> (i32, i32) {
    %c0_i32 = arith.constant 0 : i32
    %c0_i32_0 = arith.constant 0 : i32
    %c0_i32_1 = arith.constant 0 : i32
    return %c0_i32, %c0_i32_0 : i32, i32
  }
  func.func @transform_7(%arg0: i32) -> (i32, i32) {
    %c0_i32 = arith.constant 0 : i32
    %c0_i32_0 = arith.constant 0 : i32
    %c0_i32_1 = arith.constant 0 : i32
    return %c0_i32, %c0_i32_0 : i32, i32
  }
  func.func @transform_8(%arg0: i32) -> (i32, i32) {
    %c0_i32 = arith.constant 0 : i32
    %c0_i32_0 = arith.constant 0 : i32
    %c0_i32_1 = arith.constant 0 : i32
    return %c0_i32, %c0_i32_0 : i32, i32
  }
  func.func @transform_9(%arg0: i32) -> (i32, i32) {
    %c0_i32 = arith.constant 0 : i32
    %c0_i32_0 = arith.constant 0 : i32
    %c0_i32_1 = arith.constant 0 : i32
    return %c0_i32, %c0_i32_0 : i32, i32
  }
  func.func @transform_10(%arg0: i32) -> (i32, i32) {
    %c0_i32 = arith.constant 0 : i32
    %c0_i32_0 = arith.constant 0 : i32
    %c0_i32_1 = arith.constant 0 : i32
    return %c0_i32, %c0_i32_0 : i32, i32
  }
  func.func @transform_11(%arg0: i32) -> (i32, i32) {
    %c0_i32 = arith.constant 0 : i32
    %c0_i32_0 = arith.constant 0 : i32
    %c0_i32_1 = arith.constant 0 : i32
    return %c0_i32, %c0_i32_0 : i32, i32
  }
  func.func @transform_12(%arg0: i32) -> (i32, i32) {
    %c0_i32 = arith.constant 0 : i32
    %c0_i32_0 = arith.constant 0 : i32
    %c0_i32_1 = arith.constant 0 : i32
    return %c0_i32, %c0_i32_0 : i32, i32
  }
  func.func @transform_13(%arg0: i32) -> (i32, i32) {
    %c0_i32 = arith.constant 0 : i32
    %c0_i32_0 = arith.constant 0 : i32
    %c0_i32_1 = arith.constant 0 : i32
    return %c0_i32, %c0_i32_0 : i32, i32
  }
  func.func @transform_14(%arg0: i32) -> (i32, i32) {
    %c0_i32 = arith.constant 0 : i32
    %c0_i32_0 = arith.constant 0 : i32
    %c0_i32_1 = arith.constant 0 : i32
    return %c0_i32, %c0_i32_0 : i32, i32
  }
  func.func @transform_15(%arg0: i32) -> (i32, i32) {
    %c0_i32 = arith.constant 0 : i32
    %c0_i32_0 = arith.constant 0 : i32
    %c0_i32_1 = arith.constant 0 : i32
    return %c0_i32, %c0_i32_0 : i32, i32
  }
  func.func @transform_16(%arg0: i32) -> (i32, i32) {
    %c0_i32 = arith.constant 0 : i32
    %c0_i32_0 = arith.constant 0 : i32
    %c0_i32_1 = arith.constant 0 : i32
    return %c0_i32, %c0_i32_0 : i32, i32
  }
  func.func @transform_17(%arg0: i32) -> (i32, i32) {
    %c0_i32 = arith.constant 0 : i32
    %c0_i32_0 = arith.constant 0 : i32
    %c0_i32_1 = arith.constant 0 : i32
    return %c0_i32, %c0_i32_0 : i32, i32
  }
  func.func @transform_18(%arg0: i32) -> (i32, i32) {
    %c0_i32 = arith.constant 0 : i32
    %c0_i32_0 = arith.constant 0 : i32
    %c0_i32_1 = arith.constant 0 : i32
    return %c0_i32, %c0_i32_0 : i32, i32
  }
  func.func @transform_19(%arg0: i32) -> (i32, i32) {
    %c0_i32 = arith.constant 0 : i32
    %c0_i32_0 = arith.constant 0 : i32
    %c0_i32_1 = arith.constant 0 : i32
    return %c0_i32, %c0_i32_0 : i32, i32
  }
}

</mosaic_0001>

<llo_original>
// kernel: gru_autoencoder_forward.1
$region0: #{gru_autoencoder_forward.1}
  #allocation0 [shape = 'u32[]', space=smem, size = 0x4, offset = 0x4, fixed_abs, tag = 'smem constant byte address 0x4 - core index']
  #allocation1 [shape = 'u32[144,128]{1,0:T(1,128)}', space=vmem, size = 0x12000, scoped, tag = 'internal scratch']
  #allocation2 [shape = 'f32[64,32]{1,0:T(8,128)}', space=vmem, size = 0x8000, scoped, tag = 'scratch operand']
  %s0 = inlined_call_operand.vmem [shape: f32[64,8], index: 0, kind: input, shape index: {}]
  %s1 = inlined_call_operand.vmem [shape: f32[8,96], index: 1, kind: input, shape index: {}]
  %s2 = inlined_call_operand.vmem [shape: f32[32,96], index: 2, kind: input, shape index: {}]
  %s3 = inlined_call_operand.vmem [shape: f32[1,96], index: 3, kind: input, shape index: {}]
  %s4 = inlined_call_operand.vmem [shape: f32[1,32], index: 4, kind: input, shape index: {}]
  %s5 = inlined_call_operand.vmem [shape: f32[32,96], index: 5, kind: input, shape index: {}]
  %s6 = inlined_call_operand.vmem [shape: f32[32,96], index: 6, kind: input, shape index: {}]
  %s7 = inlined_call_operand.vmem [shape: f32[1,96], index: 7, kind: input, shape index: {}]
  %s8 = inlined_call_operand.vmem [shape: f32[1,32], index: 8, kind: input, shape index: {}]
  %s9 = inlined_call_operand.vmem [shape: f32[32,24], index: 9, kind: input, shape index: {}]
  %s10 = inlined_call_operand.vmem [shape: f32[8,24], index: 10, kind: input, shape index: {}]
  %s11 = inlined_call_operand.vmem [shape: f32[1,24], index: 11, kind: input, shape index: {}]
  %s12 = inlined_call_operand.vmem [shape: f32[1,8], index: 12, kind: input, shape index: {}]
  %s13 = inlined_call_operand.vmem [shape: f32[8,24], index: 13, kind: input, shape index: {}]
  %s14 = inlined_call_operand.vmem [shape: f32[8,24], index: 14, kind: input, shape index: {}]
  %s15 = inlined_call_operand.vmem [shape: f32[1,24], index: 15, kind: input, shape index: {}]
  %s16 = inlined_call_operand.vmem [shape: f32[1,8], index: 16, kind: input, shape index: {}]
  %s17 = inlined_call_operand.vmem [shape: f32[8,8], index: 17, kind: input, shape index: {}]
  %s18 = inlined_call_operand.vmem [shape: f32[1,8], index: 18, kind: input, shape index: {}]
  %s19 = inlined_call_operand.vmem [shape: f32[64,8], index: 19, kind: output, shape index: {}]
  %s20 = sld [smem:[#allocation0]]
  $region86: #{gru_autoencoder_forward.1} parent=0
    _
  %s22 = ssub.s32 1, %s20
  %s23 = scalar_select 0, %s22, %s20
  // Predicated region
  $region2: #{gru_autoencoder_forward.1} parent=0 // pred_check
    _
  $region3: #{gru_autoencoder_forward.1} parent=0 // pred_check_branch
    %25 = sbr.rel (0) target = $region5
  $region4: #{gru_autoencoder_forward.1} parent=0 // pred_region
    _
  $region5: #{gru_autoencoder_forward.1} parent=0 // pred_fallthru
    _
  // Predicated region
  $region6: #{gru_autoencoder_forward.1} parent=0 // pred_check
    _
  $region7: #{gru_autoencoder_forward.1} parent=0 // pred_check_branch
    %27 = sbr.rel (0) target = $region9
  $region8: #{gru_autoencoder_forward.1} parent=0 // pred_region
    _
  $region9: #{gru_autoencoder_forward.1} parent=0 // pred_fallthru
    _
  // Predicated region
  $region10: #{gru_autoencoder_forward.1} parent=0 // pred_check
    _
  $region11: #{gru_autoencoder_forward.1} parent=0 // pred_check_branch
    %29 = sbr.rel (0) target = $region13
  $region12: #{gru_autoencoder_forward.1} parent=0 // pred_region
    _
  $region13: #{gru_autoencoder_forward.1} parent=0 // pred_fallthru
    _
  // Predicated region
  $region14: #{gru_autoencoder_forward.1} parent=0 // pred_check
    _
  $region15: #{gru_autoencoder_forward.1} parent=0 // pred_check_branch
    %31 = sbr.rel (0) target = $region17
  $region16: #{gru_autoencoder_forward.1} parent=0 // pred_region
    _
  $region17: #{gru_autoencoder_forward.1} parent=0 // pred_fallthru
    _
  // Predicated region
  $region18: #{gru_autoencoder_forward.1} parent=0 // pred_check
    _
  $region19: #{gru_autoencoder_forward.1} parent=0 // pred_check_branch
    %33 = sbr.rel (0) target = $region21
  $region20: #{gru_autoencoder_forward.1} parent=0 // pred_region
    _
  $region21: #{gru_autoencoder_forward.1} parent=0 // pred_fallthru
    _
  // Predicated region
  $region22: #{gru_autoencoder_forward.1} parent=0 // pred_check
    _
  $region23: #{gru_autoencoder_forward.1} parent=0 // pred_check_branch
    %35 = sbr.rel (0) target = $region25
  $region24: #{gru_autoencoder_forward.1} parent=0 // pred_region
    _
  $region25: #{gru_autoencoder_forward.1} parent=0 // pred_fallthru
    _
  // Predicated region
  $region26: #{gru_autoencoder_forward.1} parent=0 // pred_check
    _
  $region27: #{gru_autoencoder_forward.1} parent=0 // pred_check_branch
    %37 = sbr.rel (0) target = $region29
  $region28: #{gru_autoencoder_forward.1} parent=0 // pred_region
    _
  $region29: #{gru_autoencoder_forward.1} parent=0 // pred_fallthru
    _
  // Predicated region
  $region30: #{gru_autoencoder_forward.1} parent=0 // pred_check
    _
  $region31: #{gru_autoencoder_forward.1} parent=0 // pred_check_branch
    %39 = sbr.rel (0) target = $region33
  $region32: #{gru_autoencoder_forward.1} parent=0 // pred_region
    _
  $region33: #{gru_autoencoder_forward.1} parent=0 // pred_fallthru
    _
  // Predicated region
  $region34: #{gru_autoencoder_forward.1} parent=0 // pred_check
    _
  $region35: #{gru_autoencoder_forward.1} parent=0 // pred_check_branch
    %41 = sbr.rel (0) target = $region37
  $region36: #{gru_autoencoder_forward.1} parent=0 // pred_region
    _
  $region37: #{gru_autoencoder_forward.1} parent=0 // pred_fallthru
    _
  // Predicated region
  $region38: #{gru_autoencoder_forward.1} parent=0 // pred_check
    _
  $region39: #{gru_autoencoder_forward.1} parent=0 // pred_check_branch
    %43 = sbr.rel (0) target = $region41
  $region40: #{gru_autoencoder_forward.1} parent=0 // pred_region
    _
  $region41: #{gru_autoencoder_forward.1} parent=0 // pred_fallthru
    _
  // Predicated region
  $region42: #{gru_autoencoder_forward.1} parent=0 // pred_check
    _
  $region43: #{gru_autoencoder_forward.1} parent=0 // pred_check_branch
    %45 = sbr.rel (0) target = $region45
  $region44: #{gru_autoencoder_forward.1} parent=0 // pred_region
    _
  $region45: #{gru_autoencoder_forward.1} parent=0 // pred_fallthru
    _
  // Predicated region
  $region46: #{gru_autoencoder_forward.1} parent=0 // pred_check
    _
  $region47: #{gru_autoencoder_forward.1} parent=0 // pred_check_branch
    %47 = sbr.rel (0) target = $region49
  $region48: #{gru_autoencoder_forward.1} parent=0 // pred_region
    _
  $region49: #{gru_autoencoder_forward.1} parent=0 // pred_fallthru
    _
  // Predicated region
  $region50: #{gru_autoencoder_forward.1} parent=0 // pred_check
    _
  $region51: #{gru_autoencoder_forward.1} parent=0 // pred_check_branch
    %49 = sbr.rel (0) target = $region53
  $region52: #{gru_autoencoder_forward.1} parent=0 // pred_region
    _
  $region53: #{gru_autoencoder_forward.1} parent=0 // pred_fallthru
    _
  // Predicated region
  $region54: #{gru_autoencoder_forward.1} parent=0 // pred_check
    _
  $region55: #{gru_autoencoder_forward.1} parent=0 // pred_check_branch
    %51 = sbr.rel (0) target = $region57
  $region56: #{gru_autoencoder_forward.1} parent=0 // pred_region
    _
  $region57: #{gru_autoencoder_forward.1} parent=0 // pred_fallthru
    _
  // Predicated region
  $region58: #{gru_autoencoder_forward.1} parent=0 // pred_check
    _
  $region59: #{gru_autoencoder_forward.1} parent=0 // pred_check_branch
    %53 = sbr.rel (0) target = $region61
  $region60: #{gru_autoencoder_forward.1} parent=0 // pred_region
    _
  $region61: #{gru_autoencoder_forward.1} parent=0 // pred_fallthru
    _
  // Predicated region
  $region62: #{gru_autoencoder_forward.1} parent=0 // pred_check
    _
  $region63: #{gru_autoencoder_forward.1} parent=0 // pred_check_branch
    %55 = sbr.rel (0) target = $region65
  $region64: #{gru_autoencoder_forward.1} parent=0 // pred_region
    _
  $region65: #{gru_autoencoder_forward.1} parent=0 // pred_fallthru
    _
  // Predicated region
  $region66: #{gru_autoencoder_forward.1} parent=0 // pred_check
    _
  $region67: #{gru_autoencoder_forward.1} parent=0 // pred_check_branch
    %57 = sbr.rel (0) target = $region69
  $region68: #{gru_autoencoder_forward.1} parent=0 // pred_region
    _
  $region69: #{gru_autoencoder_forward.1} parent=0 // pred_fallthru
    _
  // Predicated region
  $region70: #{gru_autoencoder_forward.1} parent=0 // pred_check
    _
  $region71: #{gru_autoencoder_forward.1} parent=0 // pred_check_branch
    %59 = sbr.rel (0) target = $region73
  $region72: #{gru_autoencoder_forward.1} parent=0 // pred_region
    _
  $region73: #{gru_autoencoder_forward.1} parent=0 // pred_fallthru
    _
  // Predicated region
  $region74: #{gru_autoencoder_forward.1} parent=0 // pred_check
    _
  $region75: #{gru_autoencoder_forward.1} parent=0 // pred_check_branch
    %61 = sbr.rel (0) target = $region77
  $region76: #{gru_autoencoder_forward.1} parent=0 // pred_region
    _
  $region77: #{gru_autoencoder_forward.1} parent=0 // pred_fallthru
    _
  %v62 = vld [vmem:[%s0] sm:$0xff]
  %v63 = vld [vmem:[%s0 + $0x8] sm:$0xff]
  %v64 = vld [vmem:[%s0 + $0x10] sm:$0xff]
  %v65 = vld [vmem:[%s0 + $0x18] sm:$0xff]
  %v66 = vld [vmem:[%s0 + $0x20] sm:$0xff]
  %v67 = vld [vmem:[%s0 + $0x28] sm:$0xff]
  %v68 = vld [vmem:[%s0 + $0x30] sm:$0xff]
  %v69 = vld [vmem:[%s0 + $0x38] sm:$0xff]
  %v70 = vld [vmem:[%s1] sm:$0xff]
  %v71 = vld [vmem:[%s3] sm:$0x1]
  %v73 = vlaneseq
  %v74 = vshrl.u32 %v73, 7
  %v75 = vsub.s32 0, %v74
  %v76 = vrot.slane %v71, %v75
  %vm78 = vcmask 64512
  %v80 = vsel %vm78, %v62, 0
  %v83 = vsel %vm78, %v63, 0
  %v86 = vsel %vm78, %v64, 0
  %v89 = vsel %vm78, %v65, 0
  %v92 = vsel %vm78, %v66, 0
  %v95 = vsel %vm78, %v67, 0
  %v98 = vsel %vm78, %v68, 0
  %v101 = vsel %vm78, %v69, 0
  %103 = vmatprep.subr.mxu0 0.0
  %104 = vmatpush1.msra.mxu0 %v70
  %105 = vmatprep.subr.mxu0 0.0
  %106 = vmatpush1.msra.mxu0 0.0
  %107 = vmatprep.subr.mxu0 0.0
  %108 = vmatpush1.msra.mxu0 0.0
  %109 = vmatprep.subr.mxu0 0.0
  %110 = vmatpush1.msra.mxu0 0.0
  %111 = vmatprep.subr.mxu0 0.0
  %112 = vmatpush1.msra.mxu0 0.0
  %113 = vmatprep.subr.mxu0 0.0
  %114 = vmatpush1.msra.mxu0 0.0
  %115 = vmatprep.subr.mxu0 0.0
  %116 = vmatpush1.msra.mxu0 0.0
  %117 = vmatprep.subr.mxu0 0.0
  %118 = vmatpush1.msra.mxu0 0.0
  %119 = vmatprep.subr.mxu0 0.0
  %120 = vmatpush1.msra.mxu0 0.0
  %121 = vmatprep.subr.mxu0 0.0
  %122 = vmatpush1.msra.mxu0 0.0
  %123 = vmatprep.subr.mxu0 0.0
  %124 = vmatpush1.msra.mxu0 0.0
  %125 = vmatprep.subr.mxu0 0.0
  %126 = vmatpush1.msra.mxu0 0.0
  %127 = vmatprep.subr.mxu0 0.0
  %128 = vmatpush1.msra.mxu0 0.0
  %129 = vmatprep.subr.mxu0 0.0
  %130 = vmatpush1.msra.mxu0 0.0
  %131 = vmatprep.subr.mxu0 0.0
  %132 = vmatpush1.msra.mxu0 0.0
  %133 = vmatprep.subr.mxu0 0.0
  %134 = vmatpush1.msra.mxu0 0.0
  %135 = vmatprep.subr.mxu0 0.0
  %136 = vmatpush1.msra.mxu0 0.0
  %137 = vmatprep.subr.mxu0 0.0
  %138 = vmatpush1.msra.mxu0 0.0
  %139 = vmatprep.subr.mxu0 0.0
  %140 = vmatpush1.msra.mxu0 0.0
  %141 = vmatprep.subr.mxu0 0.0
  %142 = vmatpush1.msra.mxu0 0.0
  %143 = vmatprep.subr.mxu0 0.0
  %144 = vmatpush1.msra.mxu0 0.0
  %145 = vmatprep.subr.mxu0 0.0
  %146 = vmatpush1.msra.mxu0 0.0
  %147 = vmatprep.subr.mxu0 0.0
  %148 = vmatpush1.msra.mxu0 0.0
  %149 = vmatprep.subr.mxu0 0.0
  %150 = vmatpush1.msra.mxu0 0.0
  %151 = vmatprep.subr.mxu0 0.0
  %152 = vmatpush1.msra.mxu0 0.0
  %153 = vmatprep.subr.mxu0 0.0
  %154 = vmatpush1.msra.mxu0 0.0
  %155 = vmatprep.subr.mxu0 0.0
  %156 = vmatpush1.msra.mxu0 0.0
  %157 = vmatprep.subr.mxu0 0.0
  %158 = vmatpush1.msra.mxu0 0.0
  %159 = vmatprep.subr.mxu0 0.0
  %160 = vmatpush1.msra.mxu0 0.0
  %161 = vmatprep.subr.mxu0 0.0
  %162 = vmatpush1.msra.mxu0 0.0
  %163 = vmatprep.subr.mxu0 0.0
  %164 = vmatpush1.msra.mxu0 0.0
  %165 = vmatprep.subr.mxu0 0.0
  %166 = vmatpush1.msra.mxu0 0.0
  %167 = vmatprep.mubr.f32.mxu0 0.0
  %168 = vmatmul.mubr.f32.gmra.mrb[0].mxu0 %v80
  %v169 = vpop.f32.mrb[0].mxu0
  %v170 = vadd.f32 %v76, %v169
  %v171 = vpop.f32.mrb[0].mxu0
  %172 = vmatprep.mubr.f32.mxu0 0.0
  %173 = vmatmul.mubr.f32.gmra.mrb[0].mxu0 %v83
  %v174 = vpop.f32.mrb[0].mxu0
  %v175 = vadd.f32 %v76, %v174
  %v176 = vpop.f32.mrb[0].mxu0
  %177 = vmatprep.mubr.f32.mxu0 0.0
  %178 = vmatmul.mubr.f32.gmra.mrb[0].mxu0 %v86
  %v179 = vpop.f32.mrb[0].mxu0
  %v180 = vadd.f32 %v76, %v179
  %v181 = vpop.f32.mrb[0].mxu0
  %182 = vmatprep.mubr.f32.mxu0 0.0
  %183 = vmatmul.mubr.f32.gmra.mrb[0].mxu0 %v89
  %v184 = vpop.f32.mrb[0].mxu0
  %v185 = vadd.f32 %v76, %v184
  %v186 = vpop.f32.mrb[0].mxu0
  %187 = vmatprep.mubr.f32.mxu0 0.0
  %188 = vmatmul.mubr.f32.gmra.mrb[0].mxu0 %v92
  %v189 = vpop.f32.mrb[0].mxu0
  %v190 = vadd.f32 %v76, %v189
  %v191 = vpop.f32.mrb[0].mxu0
  %192 = vmatprep.mubr.f32.mxu0 0.0
  %193 = vmatmul.mubr.f32.gmra.mrb[0].mxu0 %v95
  %v194 = vpop.f32.mrb[0].mxu0
  %v195 = vadd.f32 %v76, %v194
  %v196 = vpop.f32.mrb[0].mxu0
  %197 = vmatprep.mubr.f32.mxu0 0.0
  %198 = vmatmul.mubr.f32.gmra.mrb[0].mxu0 %v98
  %v199 = vpop.f32.mrb[0].mxu0
  %v200 = vadd.f32 %v76, %v199
  %v201 = vpop.f32.mrb[0].mxu0
  %202 = vmatprep.mubr.f32.mxu0 0.0
  %203 = vmatmul.mubr.f32.gmra.mrb[0].mxu0 %v101
  %v204 = vpop.f32.mrb[0].mxu0
  %v205 = vadd.f32 %v76, %v204
  %v206 = vpop.f32.mrb[0].mxu0
  %207 = vdwg.mxu0
  %v208 = vld [vmem:[%s2] sm:$0xff]
  %v209 = vld [vmem:[%s2 + $0x8] sm:$0xff]
  %v210 = vld [vmem:[%s2 + $0x10] sm:$0xff]
  %v211 = vld [vmem:[%s2 + $0x18] sm:$0xff]
  %v212 = vld [vmem:[%s4] sm:$0x1]
  %v214 = vlaneseq
  %v215 = vshrl.u32 %v214, 7
  %v216 = vsub.s32 0, %v215
  %v217 = vrot.slane %v212, %v216
  %vm218 = vcmask 261120
  %v220 = vsel %vm218, 0.0, 0
  %222 = vmatprep.subr.mxu0 0.0
  %223 = vmatpush1.msra.mxu0 %v208
  %224 = vmatprep.subr.mxu0 0.0
  %225 = vmatpush1.msra.mxu0 %v209
  %226 = vmatprep.subr.mxu0 0.0
  %227 = vmatpush1.msra.mxu0 %v210
  %228 = vmatprep.subr.mxu0 0.0
  %229 = vmatpush1.msra.mxu0 %v211
  %230 = vmatprep.subr.mxu0 0.0
  %231 = vmatpush1.msra.mxu0 0.0
  %232 = vmatprep.subr.mxu0 0.0
  %233 = vmatpush1.msra.mxu0 0.0
  %234 = vmatprep.subr.mxu0 0.0
  %235 = vmatpush1.msra.mxu0 0.0
  %236 = vmatprep.subr.mxu0 0.0
  %237 = vmatpush1.msra.mxu0 0.0
  %238 = vmatprep.subr.mxu0 0.0
  %239 = vmatpush1.msra.mxu0 0.0
  %240 = vmatprep.subr.mxu0 0.0
  %241 = vmatpush1.msra.mxu0 0.0
  %242 = vmatprep.subr.mxu0 0.0
  %243 = vmatpush1.msra.mxu0 0.0
  %244 = vmatprep.subr.mxu0 0.0
  %245 = vmatpush1.msra.mxu0 0.0
  %246 = vmatprep.subr.mxu0 0.0
  %247 = vmatpush1.msra.mxu0 0.0
  %248 = vmatprep.subr.mxu0 0.0
  %249 = vmatpush1.msra.mxu0 0.0
  %250 = vmatprep.subr.mxu0 0.0
  %251 = vmatpush1.msra.mxu0 0.0
  %252 = vmatprep.subr.mxu0 0.0
  %253 = vmatpush1.msra.mxu0 0.0
  %254 = vmatprep.subr.mxu0 0.0
  %255 = vmatpush1.msra.mxu0 0.0
  %256 = vmatprep.subr.mxu0 0.0
  %257 = vmatpush1.msra.mxu0 0.0
  %258 = vmatprep.subr.mxu0 0.0
  %259 = vmatpush1.msra.mxu0 0.0
  %260 = vmatprep.subr.mxu0 0.0
  %261 = vmatpush1.msra.mxu0 0.0
  %262 = vmatprep.subr.mxu0 0.0
  %263 = vmatpush1.msra.mxu0 0.0
  %264 = vmatprep.subr.mxu0 0.0
  %265 = vmatpush1.msra.mxu0 0.0
  %266 = vmatprep.subr.mxu0 0.0
  %267 = vmatpush1.msra.mxu0 0.0
  %268 = vmatprep.subr.mxu0 0.0
  %269 = vmatpush1.msra.mxu0 0.0
  %270 = vmatprep.subr.mxu0 0.0
  %271 = vmatpush1.msra.mxu0 0.0
  %272 = vmatprep.subr.mxu0 0.0
  %273 = vmatpush1.msra.mxu0 0.0
  %274 = vmatprep.subr.mxu0 0.0
  %275 = vmatpush1.msra.mxu0 0.0
  %276 = vmatprep.subr.mxu0 0.0
  %277 = vmatpush1.msra.mxu0 0.0
  %278 = vmatprep.subr.mxu0 0.0
  %279 = vmatpush1.msra.mxu0 0.0
  %280 = vmatprep.subr.mxu0 0.0
  %281 = vmatpush1.msra.mxu0 0.0
  %282 = vmatprep.subr.mxu0 0.0
  %283 = vmatpush1.msra.mxu0 0.0
  %284 = vmatprep.subr.mxu0 0.0
  %285 = vmatpush1.msra.mxu0 0.0
  %286 = vmatprep.mubr.f32.mxu0 0.0
  %287 = vmatmul.mubr.f32.gmra.mrb[0].mxu0 %v220
  %v288 = vpop.f32.mrb[0].mxu0
  %v289 = vadd.f32 0.0, %v288
  %v290 = vpop.f32.mrb[0].mxu0
  %291 = vdwg.mxu0
  %v292 = vadd.f32 %v170, %v289
  %v293 = vxor.u32 %v292, 2147483648
  %v294 = vmul.f32 %v293, 1.442695
  %v295 = vpow.pop %v294
  %v296 = vadd.f32 %v295, 1.0
  %v297 = vrcp.pop %v296
  %v298 = vmul.f32 1.0, %v297
  %299 = vrot.lane.b32.xlu0 %v217, 64
  %v300 = vpop.permute.xlu0 %299
  %v302 = vadd.f32 %v289, %v300
  %304 = vrot.lane.b32.xlu0 %v302, 64
  %v305 = vpop.permute.xlu0 %304
  %v307 = vmul.f32 %v298, %v305
  %309 = vrot.lane.b32.xlu0 %v307, 64
  %v310 = vpop.permute.xlu0 %309
  %v312 = vadd.f32 %v170, %v310
  %v313 = vtanh.pop %v312
  %v314 = vsub.f32 1.0, %v298
  %316 = vrot.lane.b32.xlu0 %v313, 96
  %v317 = vpop.permute.xlu0 %316
  %v319 = vmul.f32 %v314, %v317
  %v320 = vmul.f32 %v298, 0.0
  %v321 = vadd.f32 %v319, %v320
  %323 = vrot.lane.b32.xlu0 %v321, 96
  %v324 = vpop.permute.xlu0 %323
  %326 = vst.msk [vmem:[#allocation2] sm:$0xff] %vm218, %v324
  %v327 = vsel %vm218, %v324, 0
  %329 = vmatprep.subr.mxu0 0.0
  %330 = vmatpush1.msra.mxu0 %v208
  %331 = vmatprep.subr.mxu0 0.0
  %332 = vmatpush1.msra.mxu0 %v209
  %333 = vmatprep.subr.mxu0 0.0
  %334 = vmatpush1.msra.mxu0 %v210
  %335 = vmatprep.subr.mxu0 0.0
  %336 = vmatpush1.msra.mxu0 %v211
  %337 = vmatprep.subr.mxu0 0.0
  %338 = vmatpush1.msra.mxu0 0.0
  %339 = vmatprep.subr.mxu0 0.0
  %340 = vmatpush1.msra.mxu0 0.0
  %341 = vmatprep.subr.mxu0 0.0
  %342 = vmatpush1.msra.mxu0 0.0
  %343 = vmatprep.subr.mxu0 0.0
  %344 = vmatpush1.msra.mxu0 0.0
  %345 = vmatprep.subr.mxu0 0.0
  %346 = vmatpush1.msra.mxu0 0.0
  %347 = vmatprep.subr.mxu0 0.0
  %348 = vmatpush1.msra.mxu0 0.0
  %349 = vmatprep.subr.mxu0 0.0
  %350 = vmatpush1.msra.mxu0 0.0
  %351 = vmatprep.subr.mxu0 0.0
  %352 = vmatpush1.msra.mxu0 0.0
  %353 = vmatprep.subr.mxu0 0.0
  %354 = vmatpush1.msra.mxu0 0.0
  %355 = vmatprep.subr.mxu0 0.0
  %356 = vmatpush1.msra.mxu0 0.0
  %357 = vmatprep.subr.mxu0 0.0
  %358 = vmatpush1.msra.mxu0 0.0
  %359 = vmatprep.subr.mxu0 0.0
  %360 = vmatpush1.msra.mxu0 0.0
  %361 = vmatprep.subr.mxu0 0.0
  %362 = vmatpush1.msra.mxu0 0.0
  %363 = vmatprep.subr.mxu0 0.0
  %364 = vmatpush1.msra.mxu0 0.0
  %365 = vmatprep.subr.mxu0 0.0
  %366 = vmatpush1.msra.mxu0 0.0
  %367 = vmatprep.subr.mxu0 0.0
  %368 = vmatpush1.msra.mxu0 0.0
  %369 = vmatprep.subr.mxu0 0.0
  %370 = vmatpush1.msra.mxu0 0.0
  %371 = vmatprep.subr.mxu0 0.0
  %372 = vmatpush1.msra.mxu0 0.0
  %373 = vmatprep.subr.mxu0 0.0
  %374 = vmatpush1.msra.mxu0 0.0
  %375 = vmatprep.subr.mxu0 0.0
  %376 = vmatpush1.msra.mxu0 0.0
  %377 = vmatprep.subr.mxu0 0.0
  %378 = vmatpush1.msra.mxu0 0.0
  %379 = vmatprep.subr.mxu0 0.0
  %380 = vmatpush1.msra.mxu0 0.0
  %381 = vmatprep.subr.mxu0 0.0
  %382 = vmatpush1.msra.mxu0 0.0
  %383 = vmatprep.subr.mxu0 0.0
  %384 = vmatpush1.msra.mxu0 0.0
  %385 = vmatprep.subr.mxu0 0.0
  %386 = vmatpush1.msra.mxu0 0.0
  %387 = vmatprep.subr.mxu0 0.0
  %388 = vmatpush1.msra.mxu0 0.0
  %389 = vmatprep.subr.mxu0 0.0
  %390 = vmatpush1.msra.mxu0 0.0
  %391 = vmatprep.subr.mxu0 0.0
  %392 = vmatpush1.msra.mxu0 0.0
  %393 = vmatprep.mubr.f32.mxu0 0.0
  %394 = vmatmul.mubr.f32.gmra.mrb[0].mxu0 %v327
  %v395 = vpop.f32.mrb[0].mxu0
  %v396 = vadd.f32 0.0, %v395
  %v397 = vpop.f32.mrb[0].mxu0
  %398 = vdwg.mxu0
  %v399 = vadd.f32 %v175, %v396
  %v400 = vxor.u32 %v399, 2147483648
  %v401 = vmul.f32 %v400, 1.442695
  %v402 = vpow.pop %v401
  %v403 = vadd.f32 %v402, 1.0
  %v404 = vrcp.pop %v403
  %v405 = vmul.f32 1.0, %v404
  %v406 = vadd.f32 %v396, %v300
  %408 = vrot.lane.b32.xlu0 %v406, 64
  %v409 = vpop.permute.xlu0 %408
  %v411 = vmul.f32 %v405, %v409
  %413 = vrot.lane.b32.xlu0 %v411, 64
  %v414 = vpop.permute.xlu0 %413
  %v416 = vadd.f32 %v175, %v414
  %v417 = vtanh.pop %v416
  %v418 = vsub.f32 1.0, %v405
  %420 = vrot.lane.b32.xlu0 %v417, 96
  %v421 = vpop.permute.xlu0 %420
  %v423 = vmul.f32 %v418, %v421
  %v424 = vmul.f32 %v405, %v321
  %v425 = vadd.f32 %v423, %v424
  %427 = vrot.lane.b32.xlu0 %v425, 96
  %v428 = vpop.permute.xlu0 %427
  %430 = vst.msk [vmem:[#allocation2 + $0x8] sm:$0xff] %vm218, %v428
  %v431 = vsel %vm218, %v428, 0
  %433 = vmatprep.subr.mxu0 0.0
  %434 = vmatpush1.msra.mxu0 %v208
  %435 = vmatprep.subr.mxu0 0.0
  %436 = vmatpush1.msra.mxu0 %v209
  %437 = vmatprep.subr.mxu0 0.0
  %438 = vmatpush1.msra.mxu0 %v210
  %439 = vmatprep.subr.mxu0 0.0
  %440 = vmatpush1.msra.mxu0 %v211
  %441 = vmatprep.subr.mxu0 0.0
  %442 = vmatpush1.msra.mxu0 0.0
  %443 = vmatprep.subr.mxu0 0.0
  %444 = vmatpush1.msra.mxu0 0.0
  %445 = vmatprep.subr.mxu0 0.0
  %446 = vmatpush1.msra.mxu0 0.0
  %447 = vmatprep.subr.mxu0 0.0
  %448 = vmatpush1.msra.mxu0 0.0
  %449 = vmatprep.subr.mxu0 0.0
  %450 = vmatpush1.msra.mxu0 0.0
  %451 = vmatprep.subr.mxu0 0.0
  %452 = vmatpush1.msra.mxu0 0.0
  %453 = vmatprep.subr.mxu0 0.0
  %454 = vmatpush1.msra.mxu0 0.0
  %455 = vmatprep.subr.mxu0 0.0
  %456 = vmatpush1.msra.mxu0 0.0
  %457 = vmatprep.subr.mxu0 0.0
  %458 = vmatpush1.msra.mxu0 0.0
  %459 = vmatprep.subr.mxu0 0.0
  %460 = vmatpush1.msra.mxu0 0.0
  %461 = vmatprep.subr.mxu0 0.0
  %462 = vmatpush1.msra.mxu0 0.0
  %463 = vmatprep.subr.mxu0 0.0
  %464 = vmatpush1.msra.mxu0 0.0
  %465 = vmatprep.subr.mxu0 0.0
  %466 = vmatpush1.msra.mxu0 0.0
  %467 = vmatprep.subr.mxu0 0.0
  %468 = vmatpush1.msra.mxu0 0.0
  %469 = vmatprep.subr.mxu0 0.0
  %470 = vmatpush1.msra.mxu0 0.0
  %471 = vmatprep.subr.mxu0 0.0
  %472 = vmatpush1.msra.mxu0 0.0
  %473 = vmatprep.subr.mxu0 0.0
  %474 = vmatpush1.msra.mxu0 0.0
  %475 = vmatprep.subr.mxu0 0.0
  %476 = vmatpush1.msra.mxu0 0.0
  %477 = vmatprep.subr.mxu0 0.0
  %478 = vmatpush1.msra.mxu0 0.0
  %479 = vmatprep.subr.mxu0 0.0
  %480 = vmatpush1.msra.mxu0 0.0
  %481 = vmatprep.subr.mxu0 0.0
  %482 = vmatpush1.msra.mxu0 0.0
  %483 = vmatprep.subr.mxu0 0.0
  %484 = vmatpush1.msra.mxu0 0.0
  %485 = vmatprep.subr.mxu0 0.0
  %486 = vmatpush1.msra.mxu0 0.0
  %487 = vmatprep.subr.mxu0 0.0
  %488 = vmatpush1.msra.mxu0 0.0
  %489 = vmatprep.subr.mxu0 0.0
  %490 = vmatpush1.msra.mxu0 0.0
  %491 = vmatprep.subr.mxu0 0.0
  %492 = vmatpush1.msra.mxu0 0.0
  %493 = vmatprep.subr.mxu0 0.0
  %494 = vmatpush1.msra.mxu0 0.0
  %495 = vmatprep.subr.mxu0 0.0
  %496 = vmatpush1.msra.mxu0 0.0
  %497 = vmatprep.mubr.f32.mxu0 0.0
  %498 = vmatmul.mubr.f32.gmra.mrb[0].mxu0 %v431
  %v499 = vpop.f32.mrb[0].mxu0
  %v500 = vadd.f32 0.0, %v499
  %v501 = vpop.f32.mrb[0].mxu0
  %502 = vdwg.mxu0
  %v503 = vadd.f32 %v180, %v500
  %v504 = vxor.u32 %v503, 2147483648
  %v505 = vmul.f32 %v504, 1.442695
  %v506 = vpow.pop %v505
  %v507 = vadd.f32 %v506, 1.0
  %v508 = vrcp.pop %v507
  %v509 = vmul.f32 1.0, %v508
  %v510 = vadd.f32 %v500, %v300
  %512 = vrot.lane.b32.xlu0 %v510, 64
  %v513 = vpop.permute.xlu0 %512
  %v515 = vmul.f32 %v509, %v513
  %517 = vrot.lane.b32.xlu0 %v515, 64
  %v518 = vpop.permute.xlu0 %517
  %v520 = vadd.f32 %v180, %v518
  %v521 = vtanh.pop %v520
  %v522 = vsub.f32 1.0, %v509
  %524 = vrot.lane.b32.xlu0 %v521, 96
  %v525 = vpop.permute.xlu0 %524
  %v527 = vmul.f32 %v522, %v525
  %v528 = vmul.f32 %v509, %v425
  %v529 = vadd.f32 %v527, %v528
  %531 = vrot.lane.b32.xlu0 %v529, 96
  %v532 = vpop.permute.xlu0 %531
  %534 = vst.msk [vmem:[#allocation2 + $0x10] sm:$0xff] %vm218, %v532
  %v535 = vsel %vm218, %v532, 0
  %537 = vmatprep.subr.mxu0 0.0
  %538 = vmatpush1.msra.mxu0 %v208
  %539 = vmatprep.subr.mxu0 0.0
  %540 = vmatpush1.msra.mxu0 %v209
  %541 = vmatprep.subr.mxu0 0.0
  %542 = vmatpush1.msra.mxu0 %v210
  %543 = vmatprep.subr.mxu0 0.0
  %544 = vmatpush1.msra.mxu0 %v211
  %545 = vmatprep.subr.mxu0 0.0
  %546 = vmatpush1.msra.mxu0 0.0
  %547 = vmatprep.subr.mxu0 0.0
  %548 = vmatpush1.msra.mxu0 0.0
  %549 = vmatprep.subr.mxu0 0.0
  %550 = vmatpush1.msra.mxu0 0.0
  %551 = vmatprep.subr.mxu0 0.0
  %552 = vmatpush1.msra.mxu0 0.0
  %553 = vmatprep.subr.mxu0 0.0
  %554 = vmatpush1.msra.mxu0 0.0
  %555 = vmatprep.subr.mxu0 0.0
  %556 = vmatpush1.msra.mxu0 0.0
  %557 = vmatprep.subr.mxu0 0.0
  %558 = vmatpush1.msra.mxu0 0.0
  %559 = vmatprep.subr.mxu0 0.0
  %560 = vmatpush1.msra.mxu0 0.0
  %561 = vmatprep.subr.mxu0 0.0
  %562 = vmatpush1.msra.mxu0 0.0
  %563 = vmatprep.subr.mxu0 0.0
  %564 = vmatpush1.msra.mxu0 0.0
  %565 = vmatprep.subr.mxu0 0.0
  %566 = vmatpush1.msra.mxu0 0.0
  %567 = vmatprep.subr.mxu0 0.0
  %568 = vmatpush1.msra.mxu0 0.0
  %569 = vmatprep.subr.mxu0 0.0
  %570 = vmatpush1.msra.mxu0 0.0
  %571 = vmatprep.subr.mxu0 0.0
  %572 = vmatpush1.msra.mxu0 0.0
  %573 = vmatprep.subr.mxu0 0.0
  %574 = vmatpush1.msra.mxu0 0.0
  %575 = vmatprep.subr.mxu0 0.0
  %576 = vmatpush1.msra.mxu0 0.0
  %577 = vmatprep.subr.mxu0 0.0
  %578 = vmatpush1.msra.mxu0 0.0
  %579 = vmatprep.subr.mxu0 0.0
  %580 = vmatpush1.msra.mxu0 0.0
  %581 = vmatprep.subr.mxu0 0.0
  %582 = vmatpush1.msra.mxu0 0.0
  %583 = vmatprep.subr.mxu0 0.0
  %584 = vmatpush1.msra.mxu0 0.0
  %585 = vmatprep.subr.mxu0 0.0
  %586 = vmatpush1.msra.mxu0 0.0
  %587 = vmatprep.subr.mxu0 0.0
  %588 = vmatpush1.msra.mxu0 0.0
  %589 = vmatprep.subr.mxu0 0.0
  %590 = vmatpush1.msra.mxu0 0.0
  %591 = vmatprep.subr.mxu0 0.0
  %592 = vmatpush1.msra.mxu0 0.0
  %593 = vmatprep.subr.mxu0 0.0
  %594 = vmatpush1.msra.mxu0 0.0
  %595 = vmatprep.subr.mxu0 0.0
  %596 = vmatpush1.msra.mxu0 0.0
  %597 = vmatprep.subr.mxu0 0.0
  %598 = vmatpush1.msra.mxu0 0.0
  %599 = vmatprep.subr.mxu0 0.0
  %600 = vmatpush1.msra.mxu0 0.0
  %601 = vmatprep.mubr.f32.mxu0 0.0
  %602 = vmatmul.mubr.f32.gmra.mrb[0].mxu0 %v535
  %v603 = vpop.f32.mrb[0].mxu0
  %v604 = vadd.f32 0.0, %v603
  %v605 = vpop.f32.mrb[0].mxu0
  %606 = vdwg.mxu0
  %v607 = vadd.f32 %v185, %v604
  %v608 = vxor.u32 %v607, 2147483648
  %v609 = vmul.f32 %v608, 1.442695
  %v610 = vpow.pop %v609
  %v611 = vadd.f32 %v610, 1.0
  %v612 = vrcp.pop %v611
  %v613 = vmul.f32 1.0, %v612
  %v614 = vadd.f32 %v604, %v300
  %616 = vrot.lane.b32.xlu0 %v614, 64
  %v617 = vpop.permute.xlu0 %616
  %v619 = vmul.f32 %v613, %v617
  %621 = vrot.lane.b32.xlu0 %v619, 64
  %v622 = vpop.permute.xlu0 %621
  %v624 = vadd.f32 %v185, %v622
  %v625 = vtanh.pop %v624
  %v626 = vsub.f32 1.0, %v613
  %628 = vrot.lane.b32.xlu0 %v625, 96
  %v629 = vpop.permute.xlu0 %628
  %v631 = vmul.f32 %v626, %v629
  %v632 = vmul.f32 %v613, %v529
  %v633 = vadd.f32 %v631, %v632
  %635 = vrot.lane.b32.xlu0 %v633, 96
  %v636 = vpop.permute.xlu0 %635
  %638 = vst.msk [vmem:[#allocation2 + $0x18] sm:$0xff] %vm218, %v636
  %v639 = vsel %vm218, %v636, 0
  %641 = vmatprep.subr.mxu0 0.0
  %642 = vmatpush1.msra.mxu0 %v208
  %643 = vmatprep.subr.mxu0 0.0
  %644 = vmatpush1.msra.mxu0 %v209
  %645 = vmatprep.subr.mxu0 0.0
  %646 = vmatpush1.msra.mxu0 %v210
  %647 = vmatprep.subr.mxu0 0.0
  %648 = vmatpush1.msra.mxu0 %v211
  %649 = vmatprep.subr.mxu0 0.0
  %650 = vmatpush1.msra.mxu0 0.0
  %651 = vmatprep.subr.mxu0 0.0
  %652 = vmatpush1.msra.mxu0 0.0
  %653 = vmatprep.subr.mxu0 0.0
  %654 = vmatpush1.msra.mxu0 0.0
  %655 = vmatprep.subr.mxu0 0.0
  %656 = vmatpush1.msra.mxu0 0.0
  %657 = vmatprep.subr.mxu0 0.0
  %658 = vmatpush1.msra.mxu0 0.0
  %659 = vmatprep.subr.mxu0 0.0
  %660 = vmatpush1.msra.mxu0 0.0
  %661 = vmatprep.subr.mxu0 0.0
  %662 = vmatpush1.msra.mxu0 0.0
  %663 = vmatprep.subr.mxu0 0.0
  %664 = vmatpush1.msra.mxu0 0.0
  %665 = vmatprep.subr.mxu0 0.0
  %666 = vmatpush1.msra.mxu0 0.0
  %667 = vmatprep.subr.mxu0 0.0
  %668 = vmatpush1.msra.mxu0 0.0
  %669 = vmatprep.subr.mxu0 0.0
  %670 = vmatpush1.msra.mxu0 0.0
  %671 = vmatprep.subr.mxu0 0.0
  %672 = vmatpush1.msra.mxu0 0.0
  %673 = vmatprep.subr.mxu0 0.0
  %674 = vmatpush1.msra.mxu0 0.0
  %675 = vmatprep.subr.mxu0 0.0
  %676 = vmatpush1.msra.mxu0 0.0
  %677 = vmatprep.subr.mxu0 0.0
  %678 = vmatpush1.msra.mxu0 0.0
  %679 = vmatprep.subr.mxu0 0.0
  %680 = vmatpush1.msra.mxu0 0.0
  %681 = vmatprep.subr.mxu0 0.0
  %682 = vmatpush1.msra.mxu0 0.0
  %683 = vmatprep.subr.mxu0 0.0
  %684 = vmatpush1.msra.mxu0 0.0
  %685 = vmatprep.subr.mxu0 0.0
  %686 = vmatpush1.msra.mxu0 0.0
  %687 = vmatprep.subr.mxu0 0.0
  %688 = vmatpush1.msra.mxu0 0.0
  %689 = vmatprep.subr.mxu0 0.0
  %690 = vmatpush1.msra.mxu0 0.0
  %691 = vmatprep.subr.mxu0 0.0
  %692 = vmatpush1.msra.mxu0 0.0
  %693 = vmatprep.subr.mxu0 0.0
  %694 = vmatpush1.msra.mxu0 0.0
  %695 = vmatprep.subr.mxu0 0.0
  %696 = vmatpush1.msra.mxu0 0.0
  %697 = vmatprep.subr.mxu0 0.0
  %698 = vmatpush1.msra.mxu0 0.0
  %699 = vmatprep.subr.mxu0 0.0
  %700 = vmatpush1.msra.mxu0 0.0
  %701 = vmatprep.subr.mxu0 0.0
  %702 = vmatpush1.msra.mxu0 0.0
  %703 = vmatprep.subr.mxu0 0.0
  %704 = vmatpush1.msra.mxu0 0.0
  %705 = vmatprep.mubr.f32.mxu0 0.0
  %706 = vmatmul.mubr.f32.gmra.mrb[0].mxu0 %v639
  %v707 = vpop.f32.mrb[0].mxu0
  %v708 = vadd.f32 0.0, %v707
  %v709 = vpop.f32.mrb[0].mxu0
  %710 = vdwg.mxu0
  %v711 = vadd.f32 %v190, %v708
  %v712 = vxor.u32 %v711, 2147483648
  %v713 = vmul.f32 %v712, 1.442695
  %v714 = vpow.pop %v713
  %v715 = vadd.f32 %v714, 1.0
  %v716 = vrcp.pop %v715
  %v717 = vmul.f32 1.0, %v716
  %v718 = vadd.f32 %v708, %v300
  %720 = vrot.lane.b32.xlu0 %v718, 64
  %v721 = vpop.permute.xlu0 %720
  %v723 = vmul.f32 %v717, %v721
  %725 = vrot.lane.b32.xlu0 %v723, 64
  %v726 = vpop.permute.xlu0 %725
  %v728 = vadd.f32 %v190, %v726
  %v729 = vtanh.pop %v728
  %v730 = vsub.f32 1.0, %v717
  %732 = vrot.lane.b32.xlu0 %v729, 96
  %v733 = vpop.permute.xlu0 %732
  %v735 = vmul.f32 %v730, %v733
  %v736 = vmul.f32 %v717, %v633
  %v737 = vadd.f32 %v735, %v736
  %739 = vrot.lane.b32.xlu0 %v737, 96
  %v740 = vpop.permute.xlu0 %739
  %742 = vst.msk [vmem:[#allocation2 + $0x20] sm:$0xff] %vm218, %v740
  %v743 = vsel %vm218, %v740, 0
  %745 = vmatprep.subr.mxu0 0.0
  %746 = vmatpush1.msra.mxu0 %v208
  %747 = vmatprep.subr.mxu0 0.0
  %748 = vmatpush1.msra.mxu0 %v209
  %749 = vmatprep.subr.mxu0 0.0
  %750 = vmatpush1.msra.mxu0 %v210
  %751 = vmatprep.subr.mxu0 0.0
  %752 = vmatpush1.msra.mxu0 %v211
  %753 = vmatprep.subr.mxu0 0.0
  %754 = vmatpush1.msra.mxu0 0.0
  %755 = vmatprep.subr.mxu0 0.0
  %756 = vmatpush1.msra.mxu0 0.0
  %757 = vmatprep.subr.mxu0 0.0
  %758 = vmatpush1.msra.mxu0 0.0
  %759 = vmatprep.subr.mxu0 0.0
  %760 = vmatpush1.msra.mxu0 0.0
  %761 = vmatprep.subr.mxu0 0.0
  %762 = vmatpush1.msra.mxu0 0.0
  %763 = vmatprep.subr.mxu0 0.0
  %764 = vmatpush1.msra.mxu0 0.0
  %765 = vmatprep.subr.mxu0 0.0
  %766 = vmatpush1.msra.mxu0 0.0
  %767 = vmatprep.subr.mxu0 0.0
  %768 = vmatpush1.msra.mxu0 0.0
  %769 = vmatprep.subr.mxu0 0.0
  %770 = vmatpush1.msra.mxu0 0.0
  %771 = vmatprep.subr.mxu0 0.0
  %772 = vmatpush1.msra.mxu0 0.0
  %773 = vmatprep.subr.mxu0 0.0
  %774 = vmatpush1.msra.mxu0 0.0
  %775 = vmatprep.subr.mxu0 0.0
  %776 = vmatpush1.msra.mxu0 0.0
  %777 = vmatprep.subr.mxu0 0.0
  %778 = vmatpush1.msra.mxu0 0.0
  %779 = vmatprep.subr.mxu0 0.0
  %780 = vmatpush1.msra.mxu0 0.0
  %781 = vmatprep.subr.mxu0 0.0
  %782 = vmatpush1.msra.mxu0 0.0
  %783 = vmatprep.subr.mxu0 0.0
  %784 = vmatpush1.msra.mxu0 0.0
  %785 = vmatprep.subr.mxu0 0.0
  %786 = vmatpush1.msra.mxu0 0.0
  %787 = vmatprep.subr.mxu0 0.0
  %788 = vmatpush1.msra.mxu0 0.0
  %789 = vmatprep.subr.mxu0 0.0
  %790 = vmatpush1.msra.mxu0 0.0
  %791 = vmatprep.subr.mxu0 0.0
  %792 = vmatpush1.msra.mxu0 0.0
  %793 = vmatprep.subr.mxu0 0.0
  %794 = vmatpush1.msra.mxu0 0.0
  %795 = vmatprep.subr.mxu0 0.0
  %796 = vmatpush1.msra.mxu0 0.0
  %797 = vmatprep.subr.mxu0 0.0
  %798 = vmatpush1.msra.mxu0 0.0
  %799 = vmatprep.subr.mxu0 0.0
  %800 = vmatpush1.msra.mxu0 0.0
  %801 = vmatprep.subr.mxu0 0.0
  %802 = vmatpush1.msra.mxu0 0.0
  %803 = vmatprep.subr.mxu0 0.0
  %804 = vmatpush1.msra.mxu0 0.0
  %805 = vmatprep.subr.mxu0 0.0
  %806 = vmatpush1.msra.mxu0 0.0
  %807 = vmatprep.subr.mxu0 0.0
  %808 = vmatpush1.msra.mxu0 0.0
  %809 = vmatprep.mubr.f32.mxu0 0.0
  %810 = vmatmul.mubr.f32.gmra.mrb[0].mxu0 %v743
  %v811 = vpop.f32.mrb[0].mxu0
  %v812 = vadd.f32 0.0, %v811
  %v813 = vpop.f32.mrb[0].mxu0
  %814 = vdwg.mxu0
  %v815 = vadd.f32 %v195, %v812
  %v816 = vxor.u32 %v815, 2147483648
  %v817 = vmul.f32 %v816, 1.442695
  %v818 = vpow.pop %v817
  %v819 = vadd.f32 %v818, 1.0
  %v820 = vrcp.pop %v819
  %v821 = vmul.f32 1.0, %v820
  %v822 = vadd.f32 %v812, %v300
  %824 = vrot.lane.b32.xlu0 %v822, 64
  %v825 = vpop.permute.xlu0 %824
  %v827 = vmul.f32 %v821, %v825
  %829 = vrot.lane.b32.xlu0 %v827, 64
  %v830 = vpop.permute.xlu0 %829
  %v832 = vadd.f32 %v195, %v830
  %v833 = vtanh.pop %v832
  %v834 = vsub.f32 1.0, %v821
  %836 = vrot.lane.b32.xlu0 %v833, 96
  %v837 = vpop.permute.xlu0 %836
  %v839 = vmul.f32 %v834, %v837
  %v840 = vmul.f32 %v821, %v737
  %v841 = vadd.f32 %v839, %v840
  %843 = vrot.lane.b32.xlu0 %v841, 96
  %v844 = vpop.permute.xlu0 %843
  %846 = vst.msk [vmem:[#allocation2 + $0x28] sm:$0xff] %vm218, %v844
  %v847 = vsel %vm218, %v844, 0
  %849 = vmatprep.subr.mxu0 0.0
  %850 = vmatpush1.msra.mxu0 %v208
  %851 = vmatprep.subr.mxu0 0.0
  %852 = vmatpush1.msra.mxu0 %v209
  %853 = vmatprep.subr.mxu0 0.0
  %854 = vmatpush1.msra.mxu0 %v210
  %855 = vmatprep.subr.mxu0 0.0
  %856 = vmatpush1.msra.mxu0 %v211
  %857 = vmatprep.subr.mxu0 0.0
  %858 = vmatpush1.msra.mxu0 0.0
  %859 = vmatprep.subr.mxu0 0.0
  %860 = vmatpush1.msra.mxu0 0.0
  %861 = vmatprep.subr.mxu0 0.0
  %862 = vmatpush1.msra.mxu0 0.0
  %863 = vmatprep.subr.mxu0 0.0
  %864 = vmatpush1.msra.mxu0 0.0
  %865 = vmatprep.subr.mxu0 0.0
  %866 = vmatpush1.msra.mxu0 0.0
  %867 = vmatprep.subr.mxu0 0.0
  %868 = vmatpush1.msra.mxu0 0.0
  %869 = vmatprep.subr.mxu0 0.0
  %870 = vmatpush1.msra.mxu0 0.0
  %871 = vmatprep.subr.mxu0 0.0
  %872 = vmatpush1.msra.mxu0 0.0
  %873 = vmatprep.subr.mxu0 0.0
  %874 = vmatpush1.msra.mxu0 0.0
  %875 = vmatprep.subr.mxu0 0.0
  %876 = vmatpush1.msra.mxu0 0.0
  %877 = vmatprep.subr.mxu0 0.0
  %878 = vmatpush1.msra.mxu0 0.0
  %879 = vmatprep.subr.mxu0 0.0
  %880 = vmatpush1.msra.mxu0 0.0
  %881 = vmatprep.subr.mxu0 0.0
  %882 = vmatpush1.msra.mxu0 0.0
  %883 = vmatprep.subr.mxu0 0.0
  %884 = vmatpush1.msra.mxu0 0.0
  %885 = vmatprep.subr.mxu0 0.0
  %886 = vmatpush1.msra.mxu0 0.0
  %887 = vmatprep.subr.mxu0 0.0
  %888 = vmatpush1.msra.mxu0 0.0
  %889 = vmatprep.subr.mxu0 0.0
  %890 = vmatpush1.msra.mxu0 0.0
  %891 = vmatprep.subr.mxu0 0.0
  %892 = vmatpush1.msra.mxu0 0.0
  %893 = vmatprep.subr.mxu0 0.0
  %894 = vmatpush1.msra.mxu0 0.0
  %895 = vmatprep.subr.mxu0 0.0
  %896 = vmatpush1.msra.mxu0 0.0
  %897 = vmatprep.subr.mxu0 0.0
  %898 = vmatpush1.msra.mxu0 0.0
  %899 = vmatprep.subr.mxu0 0.0
  %900 = vmatpush1.msra.mxu0 0.0
  %901 = vmatprep.subr.mxu0 0.0
  %902 = vmatpush1.msra.mxu0 0.0
  %903 = vmatprep.subr.mxu0 0.0
  %904 = vmatpush1.msra.mxu0 0.0
  %905 = vmatprep.subr.mxu0 0.0
  %906 = vmatpush1.msra.mxu0 0.0
  %907 = vmatprep.subr.mxu0 0.0
  %908 = vmatpush1.msra.mxu0 0.0
  %909 = vmatprep.subr.mxu0 0.0
  %910 = vmatpush1.msra.mxu0 0.0
  %911 = vmatprep.subr.mxu0 0.0
  %912 = vmatpush1.msra.mxu0 0.0
  %913 = vmatprep.mubr.f32.mxu0 0.0
  %914 = vmatmul.mubr.f32.gmra.mrb[0].mxu0 %v847
  %v915 = vpop.f32.mrb[0].mxu0
  %v916 = vadd.f32 0.0, %v915
  %v917 = vpop.f32.mrb[0].mxu0
  %918 = vdwg.mxu0
  %v919 = vadd.f32 %v200, %v916
  %v920 = vxor.u32 %v919, 2147483648
  %v921 = vmul.f32 %v920, 1.442695
  %v922 = vpow.pop %v921
  %v923 = vadd.f32 %v922, 1.0
  %v924 = vrcp.pop %v923
  %v925 = vmul.f32 1.0, %v924
  %v926 = vadd.f32 %v916, %v300
  %928 = vrot.lane.b32.xlu0 %v926, 64
  %v929 = vpop.permute.xlu0 %928
  %v931 = vmul.f32 %v925, %v929
  %933 = vrot.lane.b32.xlu0 %v931, 64
  %v934 = vpop.permute.xlu0 %933
  %v936 = vadd.f32 %v200, %v934
  %v937 = vtanh.pop %v936
  %v938 = vsub.f32 1.0, %v925
  %940 = vrot.lane.b32.xlu0 %v937, 96
  %v941 = vpop.permute.xlu0 %940
  %v943 = vmul.f32 %v938, %v941
  %v944 = vmul.f32 %v925, %v841
  %v945 = vadd.f32 %v943, %v944
  %947 = vrot.lane.b32.xlu0 %v945, 96
  %v948 = vpop.permute.xlu0 %947
  %950 = vst.msk [vmem:[#allocation2 + $0x30] sm:$0xff] %vm218, %v948
  %v951 = vsel %vm218, %v948, 0
  %953 = vmatprep.subr.mxu0 0.0
  %954 = vmatpush1.msra.mxu0 %v208
  %955 = vmatprep.subr.mxu0 0.0
  %956 = vmatpush1.msra.mxu0 %v209
  %957 = vmatprep.subr.mxu0 0.0
  %958 = vmatpush1.msra.mxu0 %v210
  %959 = vmatprep.subr.mxu0 0.0
  %960 = vmatpush1.msra.mxu0 %v211
  %961 = vmatprep.subr.mxu0 0.0
  %962 = vmatpush1.msra.mxu0 0.0
  %963 = vmatprep.subr.mxu0 0.0
  %964 = vmatpush1.msra.mxu0 0.0
  %965 = vmatprep.subr.mxu0 0.0
  %966 = vmatpush1.msra.mxu0 0.0
  %967 = vmatprep.subr.mxu0 0.0
  %968 = vmatpush1.msra.mxu0 0.0
  %969 = vmatprep.subr.mxu0 0.0
  %970 = vmatpush1.msra.mxu0 0.0
  %971 = vmatprep.subr.mxu0 0.0
  %972 = vmatpush1.msra.mxu0 0.0
  %973 = vmatprep.subr.mxu0 0.0
  %974 = vmatpush1.msra.mxu0 0.0
  %975 = vmatprep.subr.mxu0 0.0
  %976 = vmatpush1.msra.mxu0 0.0
  %977 = vmatprep.subr.mxu0 0.0
  %978 = vmatpush1.msra.mxu0 0.0
  %979 = vmatprep.subr.mxu0 0.0
  %980 = vmatpush1.msra.mxu0 0.0
  %981 = vmatprep.subr.mxu0 0.0
  %982 = vmatpush1.msra.mxu0 0.0
  %983 = vmatprep.subr.mxu0 0.0
  %984 = vmatpush1.msra.mxu0 0.0
  %985 = vmatprep.subr.mxu0 0.0
  %986 = vmatpush1.msra.mxu0 0.0
  %987 = vmatprep.subr.mxu0 0.0
  %988 = vmatpush1.msra.mxu0 0.0
  %989 = vmatprep.subr.mxu0 0.0
  %990 = vmatpush1.msra.mxu0 0.0
  %991 = vmatprep.subr.mxu0 0.0
  %992 = vmatpush1.msra.mxu0 0.0
  %993 = vmatprep.subr.mxu0 0.0
  %994 = vmatpush1.msra.mxu0 0.0
  %995 = vmatprep.subr.mxu0 0.0
  %996 = vmatpush1.msra.mxu0 0.0
  %997 = vmatprep.subr.mxu0 0.0
  %998 = vmatpush1.msra.mxu0 0.0
  %999 = vmatprep.subr.mxu0 0.0
  %1000 = vmatpush1.msra.mxu0 0.0
  %1001 = vmatprep.subr.mxu0 0.0
  %1002 = vmatpush1.msra.mxu0 0.0
  %1003 = vmatprep.subr.mxu0 0.0
  %1004 = vmatpush1.msra.mxu0 0.0
  %1005 = vmatprep.subr.mxu0 0.0
  %1006 = vmatpush1.msra.mxu0 0.0
  %1007 = vmatprep.subr.mxu0 0.0
  %1008 = vmatpush1.msra.mxu0 0.0
  %1009 = vmatprep.subr.mxu0 0.0
  %1010 = vmatpush1.msra.mxu0 0.0
  %1011 = vmatprep.subr.mxu0 0.0
  %1012 = vmatpush1.msra.mxu0 0.0
  %1013 = vmatprep.subr.mxu0 0.0
  %1014 = vmatpush1.msra.mxu0 0.0
  %1015 = vmatprep.subr.mxu0 0.0
  %1016 = vmatpush1.msra.mxu0 0.0
  %1017 = vmatprep.mubr.f32.mxu0 0.0
  %1018 = vmatmul.mubr.f32.gmra.mrb[0].mxu0 %v951
  %v1019 = vpop.f32.mrb[0].mxu0
  %v1020 = vadd.f32 0.0, %v1019
  %v1021 = vpop.f32.mrb[0].mxu0
  %1022 = vdwg.mxu0
  %v1023 = vadd.f32 %v205, %v1020
  %v1024 = vxor.u32 %v1023, 2147483648
  %v1025 = vmul.f32 %v1024, 1.442695
  %v1026 = vpow.pop %v1025
  %v1027 = vadd.f32 %v1026, 1.0
  %v1028 = vrcp.pop %v1027
  %v1029 = vmul.f32 1.0, %v1028
  %v1030 = vadd.f32 %v1020, %v300
  %1032 = vrot.lane.b32.xlu0 %v1030, 64
  %v1033 = vpop.permute.xlu0 %1032
  %v1035 = vmul.f32 %v1029, %v1033
  %1037 = vrot.lane.b32.xlu0 %v1035, 64
  %v1038 = vpop.permute.xlu0 %1037
  %v1040 = vadd.f32 %v205, %v1038
  %v1041 = vtanh.pop %v1040
  %v1042 = vsub.f32 1.0, %v1029
  %1044 = vrot.lane.b32.xlu0 %v1041, 96
  %v1045 = vpop.permute.xlu0 %1044
  %v1047 = vmul.f32 %v1042, %v1045
  %v1048 = vmul.f32 %v1029, %v945
  %v1049 = vadd.f32 %v1047, %v1048
  %1051 = vrot.lane.b32.xlu0 %v1049, 96
  %v1052 = vpop.permute.xlu0 %1051
  %1054 = vst.msk [vmem:[#allocation2 + $0x38] sm:$0xff] %vm218, %v1052
  %v1055 = vld [vmem:[#allocation2] sm:$0xff]
  %v1056 = vld [vmem:[#allocation2 + $0x8] sm:$0xff]
  %v1057 = vld [vmem:[#allocation2 + $0x10] sm:$0xff]
  %v1058 = vld [vmem:[#allocation2 + $0x18] sm:$0xff]
  %v1059 = vld [vmem:[#allocation2 + $0x20] sm:$0xff]
  %v1060 = vld [vmem:[#allocation2 + $0x28] sm:$0xff]
  %v1061 = vld [vmem:[#allocation2 + $0x30] sm:$0xff]
  %v1062 = vld [vmem:[#allocation2 + $0x38] sm:$0xff]
  %v1063 = vld [vmem:[%s5] sm:$0xff]
  %v1064 = vld [vmem:[%s5 + $0x8] sm:$0xff]
  %v1065 = vld [vmem:[%s5 + $0x10] sm:$0xff]
  %v1066 = vld [vmem:[%s5 + $0x18] sm:$0xff]
  %v1067 = vld [vmem:[%s7] sm:$0x1]
  %v1069 = vlaneseq
  %v1070 = vshrl.u32 %v1069, 7
  %v1071 = vsub.s32 0, %v1070
  %v1072 = vrot.slane %v1067, %v1071
  %v1075 = vsel %vm218, %v1055, 0
  %v1078 = vsel %vm218, %v1056, 0
  %v1081 = vsel %vm218, %v1057, 0
  %v1084 = vsel %vm218, %v1058, 0
  %v1087 = vsel %vm218, %v1059, 0
  %v1090 = vsel %vm218, %v1060, 0
  %v1093 = vsel %vm218, %v1061, 0
  %v1096 = vsel %vm218, %v1062, 0
  %1098 = vmatprep.subr.mxu0 0.0
  %1099 = vmatpush1.msra.mxu0 %v1063
  %1100 = vmatprep.subr.mxu0 0.0
  %1101 = vmatpush1.msra.mxu0 %v1064
  %1102 = vmatprep.subr.mxu0 0.0
  %1103 = vmatpush1.msra.mxu0 %v1065
  %1104 = vmatprep.subr.mxu0 0.0
  %1105 = vmatpush1.msra.mxu0 %v1066
  %1106 = vmatprep.subr.mxu0 0.0
  %1107 = vmatpush1.msra.mxu0 0.0
  %1108 = vmatprep.subr.mxu0 0.0
  %1109 = vmatpush1.msra.mxu0 0.0
  %1110 = vmatprep.subr.mxu0 0.0
  %1111 = vmatpush1.msra.mxu0 0.0
  %1112 = vmatprep.subr.mxu0 0.0
  %1113 = vmatpush1.msra.mxu0 0.0
  %1114 = vmatprep.subr.mxu0 0.0
  %1115 = vmatpush1.msra.mxu0 0.0
  %1116 = vmatprep.subr.mxu0 0.0
  %1117 = vmatpush1.msra.mxu0 0.0
  %1118 = vmatprep.subr.mxu0 0.0
  %1119 = vmatpush1.msra.mxu0 0.0
  %1120 = vmatprep.subr.mxu0 0.0
  %1121 = vmatpush1.msra.mxu0 0.0
  %1122 = vmatprep.subr.mxu0 0.0
  %1123 = vmatpush1.msra.mxu0 0.0
  %1124 = vmatprep.subr.mxu0 0.0
  %1125 = vmatpush1.msra.mxu0 0.0
  %1126 = vmatprep.subr.mxu0 0.0
  %1127 = vmatpush1.msra.mxu0 0.0
  %1128 = vmatprep.subr.mxu0 0.0
  %1129 = vmatpush1.msra.mxu0 0.0
  %1130 = vmatprep.subr.mxu0 0.0
  %1131 = vmatpush1.msra.mxu0 0.0
  %1132 = vmatprep.subr.mxu0 0.0
  %1133 = vmatpush1.msra.mxu0 0.0
  %1134 = vmatprep.subr.mxu0 0.0
  %1135 = vmatpush1.msra.mxu0 0.0
  %1136 = vmatprep.subr.mxu0 0.0
  %1137 = vmatpush1.msra.mxu0 0.0
  %1138 = vmatprep.subr.mxu0 0.0
  %1139 = vmatpush1.msra.mxu0 0.0
  %1140 = vmatprep.subr.mxu0 0.0
  %1141 = vmatpush1.msra.mxu0 0.0
  %1142 = vmatprep.subr.mxu0 0.0
  %1143 = vmatpush1.msra.mxu0 0.0
  %1144 = vmatprep.subr.mxu0 0.0
  %1145 = vmatpush1.msra.mxu0 0.0
  %1146 = vmatprep.subr.mxu0 0.0
  %1147 = vmatpush1.msra.mxu0 0.0
  %1148 = vmatprep.subr.mxu0 0.0
  %1149 = vmatpush1.msra.mxu0 0.0
  %1150 = vmatprep.subr.mxu0 0.0
  %1151 = vmatpush1.msra.mxu0 0.0
  %1152 = vmatprep.subr.mxu0 0.0
  %1153 = vmatpush1.msra.mxu0 0.0
  %1154 = vmatprep.subr.mxu0 0.0
  %1155 = vmatpush1.msra.mxu0 0.0
  %1156 = vmatprep.subr.mxu0 0.0
  %1157 = vmatpush1.msra.mxu0 0.0
  %1158 = vmatprep.subr.mxu0 0.0
  %1159 = vmatpush1.msra.mxu0 0.0
  %1160 = vmatprep.subr.mxu0 0.0
  %1161 = vmatpush1.msra.mxu0 0.0
  %1162 = vmatprep.mubr.f32.mxu0 0.0
  %1163 = vmatmul.mubr.f32.gmra.mrb[0].mxu0 %v1075
  %v1164 = vpop.f32.mrb[0].mxu0
  %v1165 = vadd.f32 %v1072, %v1164
  %v1166 = vpop.f32.mrb[0].mxu0
  %1167 = vmatprep.mubr.f32.mxu0 0.0
  %1168 = vmatmul.mubr.f32.gmra.mrb[0].mxu0 %v1078
  %v1169 = vpop.f32.mrb[0].mxu0
  %v1170 = vadd.f32 %v1072, %v1169
  %v1171 = vpop.f32.mrb[0].mxu0
  %1172 = vmatprep.mubr.f32.mxu0 0.0
  %1173 = vmatmul.mubr.f32.gmra.mrb[0].mxu0 %v1081
  %v1174 = vpop.f32.mrb[0].mxu0
  %v1175 = vadd.f32 %v1072, %v1174
  %v1176 = vpop.f32.mrb[0].mxu0
  %1177 = vmatprep.mubr.f32.mxu0 0.0
  %1178 = vmatmul.mubr.f32.gmra.mrb[0].mxu0 %v1084
  %v1179 = vpop.f32.mrb[0].mxu0
  %v1180 = vadd.f32 %v1072, %v1179
  %v1181 = vpop.f32.mrb[0].mxu0
  %1182 = vmatprep.mubr.f32.mxu0 0.0
  %1183 = vmatmul.mubr.f32.gmra.mrb[0].mxu0 %v1087
  %v1184 = vpop.f32.mrb[0].mxu0
  %v1185 = vadd.f32 %v1072, %v1184
  %v1186 = vpop.f32.mrb[0].mxu0
  %1187 = vmatprep.mubr.f32.mxu0 0.0
  %1188 = vmatmul.mubr.f32.gmra.mrb[0].mxu0 %v1090
  %v1189 = vpop.f32.mrb[0].mxu0
  %v1190 = vadd.f32 %v1072, %v1189
  %v1191 = vpop.f32.mrb[0].mxu0
  %1192 = vmatprep.mubr.f32.mxu0 0.0
  %1193 = vmatmul.mubr.f32.gmra.mrb[0].mxu0 %v1093
  %v1194 = vpop.f32.mrb[0].mxu0
  %v1195 = vadd.f32 %v1072, %v1194
  %v1196 = vpop.f32.mrb[0].mxu0
  %1197 = vmatprep.mubr.f32.mxu0 0.0
  %1198 = vmatmul.mubr.f32.gmra.mrb[0].mxu0 %v1096
  %v1199 = vpop.f32.mrb[0].mxu0
  %v1200 = vadd.f32 %v1072, %v1199
  %v1201 = vpop.f32.mrb[0].mxu0
  %1202 = vdwg.mxu0
  %v1203 = vld [vmem:[%s6] sm:$0xff]
  %v1204 = vld [vmem:[%s6 + $0x8] sm:$0xff]
  %v1205 = vld [vmem:[%s6 + $0x10] sm:$0xff]
  %v1206 = vld [vmem:[%s6 + $0x18] sm:$0xff]
  %v1207 = vld [vmem:[%s8] sm:$0x1]
  %v1209 = vlaneseq
  %v1210 = vshrl.u32 %v1209, 7
  %v1211 = vsub.s32 0, %v1210
  %v1212 = vrot.slane %v1207, %v1211
  %1213 = vmatprep.subr.mxu0 0.0
  %1214 = vmatpush1.msra.mxu0 %v1203
  %1215 = vmatprep.subr.mxu0 0.0
  %1216 = vmatpush1.msra.mxu0 %v1204
  %1217 = vmatprep.subr.mxu0 0.0
  %1218 = vmatpush1.msra.mxu0 %v1205
  %1219 = vmatprep.subr.mxu0 0.0
  %1220 = vmatpush1.msra.mxu0 %v1206
  %1221 = vmatprep.subr.mxu0 0.0
  %1222 = vmatpush1.msra.mxu0 0.0
  %1223 = vmatprep.subr.mxu0 0.0
  %1224 = vmatpush1.msra.mxu0 0.0
  %1225 = vmatprep.subr.mxu0 0.0
  %1226 = vmatpush1.msra.mxu0 0.0
  %1227 = vmatprep.subr.mxu0 0.0
  %1228 = vmatpush1.msra.mxu0 0.0
  %1229 = vmatprep.subr.mxu0 0.0
  %1230 = vmatpush1.msra.mxu0 0.0
  %1231 = vmatprep.subr.mxu0 0.0
  %1232 = vmatpush1.msra.mxu0 0.0
  %1233 = vmatprep.subr.mxu0 0.0
  %1234 = vmatpush1.msra.mxu0 0.0
  %1235 = vmatprep.subr.mxu0 0.0
  %1236 = vmatpush1.msra.mxu0 0.0
  %1237 = vmatprep.subr.mxu0 0.0
  %1238 = vmatpush1.msra.mxu0 0.0
  %1239 = vmatprep.subr.mxu0 0.0
  %1240 = vmatpush1.msra.mxu0 0.0
  %1241 = vmatprep.subr.mxu0 0.0
  %1242 = vmatpush1.msra.mxu0 0.0
  %1243 = vmatprep.subr.mxu0 0.0
  %1244 = vmatpush1.msra.mxu0 0.0
  %1245 = vmatprep.subr.mxu0 0.0
  %1246 = vmatpush1.msra.mxu0 0.0
  %1247 = vmatprep.subr.mxu0 0.0
  %1248 = vmatpush1.msra.mxu0 0.0
  %1249 = vmatprep.subr.mxu0 0.0
  %1250 = vmatpush1.msra.mxu0 0.0
  %1251 = vmatprep.subr.mxu0 0.0
  %1252 = vmatpush1.msra.mxu0 0.0
  %1253 = vmatprep.subr.mxu0 0.0
  %1254 = vmatpush1.msra.mxu0 0.0
  %1255 = vmatprep.subr.mxu0 0.0
  %1256 = vmatpush1.msra.mxu0 0.0
  %1257 = vmatprep.subr.mxu0 0.0
  %1258 = vmatpush1.msra.mxu0 0.0
  %1259 = vmatprep.subr.mxu0 0.0
  %1260 = vmatpush1.msra.mxu0 0.0
  %1261 = vmatprep.subr.mxu0 0.0
  %1262 = vmatpush1.msra.mxu0 0.0
  %1263 = vmatprep.subr.mxu0 0.0
  %1264 = vmatpush1.msra.mxu0 0.0
  %1265 = vmatprep.subr.mxu0 0.0
  %1266 = vmatpush1.msra.mxu0 0.0
  %1267 = vmatprep.subr.mxu0 0.0
  %1268 = vmatpush1.msra.mxu0 0.0
  %1269 = vmatprep.subr.mxu0 0.0
  %1270 = vmatpush1.msra.mxu0 0.0
  %1271 = vmatprep.subr.mxu0 0.0
  %1272 = vmatpush1.msra.mxu0 0.0
  %1273 = vmatprep.subr.mxu0 0.0
  %1274 = vmatpush1.msra.mxu0 0.0
  %1275 = vmatprep.subr.mxu0 0.0
  %1276 = vmatpush1.msra.mxu0 0.0
  %1277 = vmatprep.mubr.f32.mxu0 0.0
  %1278 = vmatmul.mubr.f32.gmra.mrb[0].mxu0 %v220
  %v1279 = vpop.f32.mrb[0].mxu0
  %v1280 = vadd.f32 0.0, %v1279
  %v1281 = vpop.f32.mrb[0].mxu0
  %1282 = vdwg.mxu0
  %v1283 = vadd.f32 %v1165, %v1280
  %v1284 = vxor.u32 %v1283, 2147483648
  %v1285 = vmul.f32 %v1284, 1.442695
  %v1286 = vpow.pop %v1285
  %v1287 = vadd.f32 %v1286, 1.0
  %v1288 = vrcp.pop %v1287
  %v1289 = vmul.f32 1.0, %v1288
  %1290 = vrot.lane.b32.xlu0 %v1212, 64
  %v1291 = vpop.permute.xlu0 %1290
  %v1293 = vadd.f32 %v1280, %v1291
  %1295 = vrot.lane.b32.xlu0 %v1293, 64
  %v1296 = vpop.permute.xlu0 %1295
  %v1298 = vmul.f32 %v1289, %v1296
  %1300 = vrot.lane.b32.xlu0 %v1298, 64
  %v1301 = vpop.permute.xlu0 %1300
  %v1303 = vadd.f32 %v1165, %v1301
  %v1304 = vtanh.pop %v1303
  %v1305 = vsub.f32 1.0, %v1289
  %1307 = vrot.lane.b32.xlu0 %v1304, 96
  %v1308 = vpop.permute.xlu0 %1307
  %v1310 = vmul.f32 %v1305, %v1308
  %v1311 = vmul.f32 %v1289, 0.0
  %v1312 = vadd.f32 %v1310, %v1311
  %1314 = vrot.lane.b32.xlu0 %v1312, 96
  %v1315 = vpop.permute.xlu0 %1314
  %1317 = vst.msk [vmem:[#allocation2] sm:$0xff] %vm218, %v1315
  %v1318 = vsel %vm218, %v1315, 0
  %1320 = vmatprep.subr.mxu0 0.0
  %1321 = vmatpush1.msra.mxu0 %v1203
  %1322 = vmatprep.subr.mxu0 0.0
  %1323 = vmatpush1.msra.mxu0 %v1204
  %1324 = vmatprep.subr.mxu0 0.0
  %1325 = vmatpush1.msra.mxu0 %v1205
  %1326 = vmatprep.subr.mxu0 0.0
  %1327 = vmatpush1.msra.mxu0 %v1206
  %1328 = vmatprep.subr.mxu0 0.0
  %1329 = vmatpush1.msra.mxu0 0.0
  %1330 = vmatprep.subr.mxu0 0.0
  %1331 = vmatpush1.msra.mxu0 0.0
  %1332 = vmatprep.subr.mxu0 0.0
  %1333 = vmatpush1.msra.mxu0 0.0
  %1334 = vmatprep.subr.mxu0 0.0
  %1335 = vmatpush1.msra.mxu0 0.0
  %1336 = vmatprep.subr.mxu0 0.0
  %1337 = vmatpush1.msra.mxu0 0.0
  %1338 = vmatprep.subr.mxu0 0.0
  %1339 = vmatpush1.msra.mxu0 0.0
  %1340 = vmatprep.subr.mxu0 0.0
  %1341 = vmatpush1.msra.mxu0 0.0
  %1342 = vmatprep.subr.mxu0 0.0
  %1343 = vmatpush1.msra.mxu0 0.0
  %1344 = vmatprep.subr.mxu0 0.0
  %1345 = vmatpush1.msra.mxu0 0.0
  %1346 = vmatprep.subr.mxu0 0.0
  %1347 = vmatpush1.msra.mxu0 0.0
  %1348 = vmatprep.subr.mxu0 0.0
  %1349 = vmatpush1.msra.mxu0 0.0
  %1350 = vmatprep.subr.mxu0 0.0
  %1351 = vmatpush1.msra.mxu0 0.0
  %1352 = vmatprep.subr.mxu0 0.0
  %1353 = vmatpush1.msra.mxu0 0.0
  %1354 = vmatprep.subr.mxu0 0.0
  %1355 = vmatpush1.msra.mxu0 0.0
  %1356 = vmatprep.subr.mxu0 0.0
  %1357 = vmatpush1.msra.mxu0 0.0
  %1358 = vmatprep.subr.mxu0 0.0
  %1359 = vmatpush1.msra.mxu0 0.0
  %1360 = vmatprep.subr.mxu0 0.0
  %1361 = vmatpush1.msra.mxu0 0.0
  %1362 = vmatprep.subr.mxu0 0.0
  %1363 = vmatpush1.msra.mxu0 0.0
  %1364 = vmatprep.subr.mxu0 0.0
  %1365 = vmatpush1.msra.mxu0 0.0
  %1366 = vmatprep.subr.mxu0 0.0
  %1367 = vmatpush1.msra.mxu0 0.0
  %1368 = vmatprep.subr.mxu0 0.0
  %1369 = vmatpush1.msra.mxu0 0.0
  %1370 = vmatprep.subr.mxu0 0.0
  %1371 = vmatpush1.msra.mxu0 0.0
  %1372 = vmatprep.subr.mxu0 0.0
  %1373 = vmatpush1.msra.mxu0 0.0
  %1374 = vmatprep.subr.mxu0 0.0
  %1375 = vmatpush1.msra.mxu0 0.0
  %1376 = vmatprep.subr.mxu0 0.0
  %1377 = vmatpush1.msra.mxu0 0.0
  %1378 = vmatprep.subr.mxu0 0.0
  %1379 = vmatpush1.msra.mxu0 0.0
  %1380 = vmatprep.subr.mxu0 0.0
  %1381 = vmatpush1.msra.mxu0 0.0
  %1382 = vmatprep.subr.mxu0 0.0
  %1383 = vmatpush1.msra.mxu0 0.0
  %1384 = vmatprep.mubr.f32.mxu0 0.0
  %1385 = vmatmul.mubr.f32.gmra.mrb[0].mxu0 %v1318
  %v1386 = vpop.f32.mrb[0].mxu0
  %v1387 = vadd.f32 0.0, %v1386
  %v1388 = vpop.f32.mrb[0].mxu0
  %1389 = vdwg.mxu0
  %v1390 = vadd.f32 %v1170, %v1387
  %v1391 = vxor.u32 %v1390, 2147483648
  %v1392 = vmul.f32 %v1391, 1.442695
  %v1393 = vpow.pop %v1392
  %v1394 = vadd.f32 %v1393, 1.0
  %v1395 = vrcp.pop %v1394
  %v1396 = vmul.f32 1.0, %v1395
  %v1397 = vadd.f32 %v1387, %v1291
  %1399 = vrot.lane.b32.xlu0 %v1397, 64
  %v1400 = vpop.permute.xlu0 %1399
  %v1402 = vmul.f32 %v1396, %v1400
  %1404 = vrot.lane.b32.xlu0 %v1402, 64
  %v1405 = vpop.permute.xlu0 %1404
  %v1407 = vadd.f32 %v1170, %v1405
  %v1408 = vtanh.pop %v1407
  %v1409 = vsub.f32 1.0, %v1396
  %1411 = vrot.lane.b32.xlu0 %v1408, 96
  %v1412 = vpop.permute.xlu0 %1411
  %v1414 = vmul.f32 %v1409, %v1412
  %v1415 = vmul.f32 %v1396, %v1312
  %v1416 = vadd.f32 %v1414, %v1415
  %1418 = vrot.lane.b32.xlu0 %v1416, 96
  %v1419 = vpop.permute.xlu0 %1418
  %1421 = vst.msk [vmem:[#allocation2 + $0x8] sm:$0xff] %vm218, %v1419
  %v1422 = vsel %vm218, %v1419, 0
  %1424 = vmatprep.subr.mxu0 0.0
  %1425 = vmatpush1.msra.mxu0 %v1203
  %1426 = vmatprep.subr.mxu0 0.0
  %1427 = vmatpush1.msra.mxu0 %v1204
  %1428 = vmatprep.subr.mxu0 0.0
  %1429 = vmatpush1.msra.mxu0 %v1205
  %1430 = vmatprep.subr.mxu0 0.0
  %1431 = vmatpush1.msra.mxu0 %v1206
  %1432 = vmatprep.subr.mxu0 0.0
  %1433 = vmatpush1.msra.mxu0 0.0
  %1434 = vmatprep.subr.mxu0 0.0
  %1435 = vmatpush1.msra.mxu0 0.0
  %1436 = vmatprep.subr.mxu0 0.0
  %1437 = vmatpush1.msra.mxu0 0.0
  %1438 = vmatprep.subr.mxu0 0.0
  %1439 = vmatpush1.msra.mxu0 0.0
  %1440 = vmatprep.subr.mxu0 0.0
  %1441 = vmatpush1.msra.mxu0 0.0
  %1442 = vmatprep.subr.mxu0 0.0
  %1443 = vmatpush1.msra.mxu0 0.0
  %1444 = vmatprep.subr.mxu0 0.0
  %1445 = vmatpush1.msra.mxu0 0.0
  %1446 = vmatprep.subr.mxu0 0.0
  %1447 = vmatpush1.msra.mxu0 0.0
  %1448 = vmatprep.subr.mxu0 0.0
  %1449 = vmatpush1.msra.mxu0 0.0
  %1450 = vmatprep.subr.mxu0 0.0
  %1451 = vmatpush1.msra.mxu0 0.0
  %1452 = vmatprep.subr.mxu0 0.0
  %1453 = vmatpush1.msra.mxu0 0.0
  %1454 = vmatprep.subr.mxu0 0.0
  %1455 = vmatpush1.msra.mxu0 0.0
  %1456 = vmatprep.subr.mxu0 0.0
  %1457 = vmatpush1.msra.mxu0 0.0
  %1458 = vmatprep.subr.mxu0 0.0
  %1459 = vmatpush1.msra.mxu0 0.0
  %1460 = vmatprep.subr.mxu0 0.0
  %1461 = vmatpush1.msra.mxu0 0.0
  %1462 = vmatprep.subr.mxu0 0.0
  %1463 = vmatpush1.msra.mxu0 0.0
  %1464 = vmatprep.subr.mxu0 0.0
  %1465 = vmatpush1.msra.mxu0 0.0
  %1466 = vmatprep.subr.mxu0 0.0
  %1467 = vmatpush1.msra.mxu0 0.0
  %1468 = vmatprep.subr.mxu0 0.0
  %1469 = vmatpush1.msra.mxu0 0.0
  %1470 = vmatprep.subr.mxu0 0.0
  %1471 = vmatpush1.msra.mxu0 0.0
  %1472 = vmatprep.subr.mxu0 0.0
  %1473 = vmatpush1.msra.mxu0 0.0
  %1474 = vmatprep.subr.mxu0 0.0
  %1475 = vmatpush1.msra.mxu0 0.0
  %1476 = vmatprep.subr.mxu0 0.0
  %1477 = vmatpush1.msra.mxu0 0.0
  %1478 = vmatprep.subr.mxu0 0.0
  %1479 = vmatpush1.msra.mxu0 0.0
  %1480 = vmatprep.subr.mxu0 0.0
  %1481 = vmatpush1.msra.mxu0 0.0
  %1482 = vmatprep.subr.mxu0 0.0
  %1483 = vmatpush1.msra.mxu0 0.0
  %1484 = vmatprep.subr.mxu0 0.0
  %1485 = vmatpush1.msra.mxu0 0.0
  %1486 = vmatprep.subr.mxu0 0.0
  %1487 = vmatpush1.msra.mxu0 0.0
  %1488 = vmatprep.mubr.f32.mxu0 0.0
  %1489 = vmatmul.mubr.f32.gmra.mrb[0].mxu0 %v1422
  %v1490 = vpop.f32.mrb[0].mxu0
  %v1491 = vadd.f32 0.0, %v1490
  %v1492 = vpop.f32.mrb[0].mxu0
  %1493 = vdwg.mxu0
  %v1494 = vadd.f32 %v1175, %v1491
  %v1495 = vxor.u32 %v1494, 2147483648
  %v1496 = vmul.f32 %v1495, 1.442695
  %v1497 = vpow.pop %v1496
  %v1498 = vadd.f32 %v1497, 1.0
  %v1499 = vrcp.pop %v1498
  %v1500 = vmul.f32 1.0, %v1499
  %v1501 = vadd.f32 %v1491, %v1291
  %1503 = vrot.lane.b32.xlu0 %v1501, 64
  %v1504 = vpop.permute.xlu0 %1503
  %v1506 = vmul.f32 %v1500, %v1504
  %1508 = vrot.lane.b32.xlu0 %v1506, 64
  %v1509 = vpop.permute.xlu0 %1508
  %v1511 = vadd.f32 %v1175, %v1509
  %v1512 = vtanh.pop %v1511
  %v1513 = vsub.f32 1.0, %v1500
  %1515 = vrot.lane.b32.xlu0 %v1512, 96
  %v1516 = vpop.permute.xlu0 %1515
  %v1518 = vmul.f32 %v1513, %v1516
  %v1519 = vmul.f32 %v1500, %v1416
  %v1520 = vadd.f32 %v1518, %v1519
  %1522 = vrot.lane.b32.xlu0 %v1520, 96
  %v1523 = vpop.permute.xlu0 %1522
  %1525 = vst.msk [vmem:[#allocation2 + $0x10] sm:$0xff] %vm218, %v1523
  %v1526 = vsel %vm218, %v1523, 0
  %1528 = vmatprep.subr.mxu0 0.0
  %1529 = vmatpush1.msra.mxu0 %v1203
  %1530 = vmatprep.subr.mxu0 0.0
  %1531 = vmatpush1.msra.mxu0 %v1204
  %1532 = vmatprep.subr.mxu0 0.0
  %1533 = vmatpush1.msra.mxu0 %v1205
  %1534 = vmatprep.subr.mxu0 0.0
  %1535 = vmatpush1.msra.mxu0 %v1206
  %1536 = vmatprep.subr.mxu0 0.0
  %1537 = vmatpush1.msra.mxu0 0.0
  %1538 = vmatprep.subr.mxu0 0.0
  %1539 = vmatpush1.msra.mxu0 0.0
  %1540 = vmatprep.subr.mxu0 0.0
  %1541 = vmatpush1.msra.mxu0 0.0
  %1542 = vmatprep.subr.mxu0 0.0
  %1543 = vmatpush1.msra.mxu0 0.0
  %1544 = vmatprep.subr.mxu0 0.0
  %1545 = vmatpush1.msra.mxu0 0.0
  %1546 = vmatprep.subr.mxu0 0.0
  %1547 = vmatpush1.msra.mxu0 0.0
  %1548 = vmatprep.subr.mxu0 0.0
  %1549 = vmatpush1.msra.mxu0 0.0
  %1550 = vmatprep.subr.mxu0 0.0
  %1551 = vmatpush1.msra.mxu0 0.0
  %1552 = vmatprep.subr.mxu0 0.0
  %1553 = vmatpush1.msra.mxu0 0.0
  %1554 = vmatprep.subr.mxu0 0.0
  %1555 = vmatpush1.msra.mxu0 0.0
  %1556 = vmatprep.subr.mxu0 0.0
  %1557 = vmatpush1.msra.mxu0 0.0
  %1558 = vmatprep.subr.mxu0 0.0
  %1559 = vmatpush1.msra.mxu0 0.0
  %1560 = vmatprep.subr.mxu0 0.0
  %1561 = vmatpush1.msra.mxu0 0.0
  %1562 = vmatprep.subr.mxu0 0.0
  %1563 = vmatpush1.msra.mxu0 0.0
  %1564 = vmatprep.subr.mxu0 0.0
  %1565 = vmatpush1.msra.mxu0 0.0
  %1566 = vmatprep.subr.mxu0 0.0
  %1567 = vmatpush1.msra.mxu0 0.0
  %1568 = vmatprep.subr.mxu0 0.0
  %1569 = vmatpush1.msra.mxu0 0.0
  %1570 = vmatprep.subr.mxu0 0.0
  %1571 = vmatpush1.msra.mxu0 0.0
  %1572 = vmatprep.subr.mxu0 0.0
  %1573 = vmatpush1.msra.mxu0 0.0
  %1574 = vmatprep.subr.mxu0 0.0
  %1575 = vmatpush1.msra.mxu0 0.0
  %1576 = vmatprep.subr.mxu0 0.0
  %1577 = vmatpush1.msra.mxu0 0.0
  %1578 = vmatprep.subr.mxu0 0.0
  %1579 = vmatpush1.msra.mxu0 0.0
  %1580 = vmatprep.subr.mxu0 0.0
  %1581 = vmatpush1.msra.mxu0 0.0
  %1582 = vmatprep.subr.mxu0 0.0
  %1583 = vmatpush1.msra.mxu0 0.0
  %1584 = vmatprep.subr.mxu0 0.0
  %1585 = vmatpush1.msra.mxu0 0.0
  %1586 = vmatprep.subr.mxu0 0.0
  %1587 = vmatpush1.msra.mxu0 0.0
  %1588 = vmatprep.subr.mxu0 0.0
  %1589 = vmatpush1.msra.mxu0 0.0
  %1590 = vmatprep.subr.mxu0 0.0
  %1591 = vmatpush1.msra.mxu0 0.0
  %1592 = vmatprep.mubr.f32.mxu0 0.0
  %1593 = vmatmul.mubr.f32.gmra.mrb[0].mxu0 %v1526
  %v1594 = vpop.f32.mrb[0].mxu0
  %v1595 = vadd.f32 0.0, %v1594
  %v1596 = vpop.f32.mrb[0].mxu0
  %1597 = vdwg.mxu0
  %v1598 = vadd.f32 %v1180, %v1595
  %v1599 = vxor.u32 %v1598, 2147483648
  %v1600 = vmul.f32 %v1599, 1.442695
  %v1601 = vpow.pop %v1600
  %v1602 = vadd.f32 %v1601, 1.0
  %v1603 = vrcp.pop %v1602
  %v1604 = vmul.f32 1.0, %v1603
  %v1605 = vadd.f32 %v1595, %v1291
  %1607 = vrot.lane.b32.xlu0 %v1605, 64
  %v1608 = vpop.permute.xlu0 %1607
  %v1610 = vmul.f32 %v1604, %v1608
  %1612 = vrot.lane.b32.xlu0 %v1610, 64
  %v1613 = vpop.permute.xlu0 %1612
  %v1615 = vadd.f32 %v1180, %v1613
  %v1616 = vtanh.pop %v1615
  %v1617 = vsub.f32 1.0, %v1604
  %1619 = vrot.lane.b32.xlu0 %v1616, 96
  %v1620 = vpop.permute.xlu0 %1619
  %v1622 = vmul.f32 %v1617, %v1620
  %v1623 = vmul.f32 %v1604, %v1520
  %v1624 = vadd.f32 %v1622, %v1623
  %1626 = vrot.lane.b32.xlu0 %v1624, 96
  %v1627 = vpop.permute.xlu0 %1626
  %1629 = vst.msk [vmem:[#allocation2 + $0x18] sm:$0xff] %vm218, %v1627
  %v1630 = vsel %vm218, %v1627, 0
  %1632 = vmatprep.subr.mxu0 0.0
  %1633 = vmatpush1.msra.mxu0 %v1203
  %1634 = vmatprep.subr.mxu0 0.0
  %1635 = vmatpush1.msra.mxu0 %v1204
  %1636 = vmatprep.subr.mxu0 0.0
  %1637 = vmatpush1.msra.mxu0 %v1205
  %1638 = vmatprep.subr.mxu0 0.0
  %1639 = vmatpush1.msra.mxu0 %v1206
  %1640 = vmatprep.subr.mxu0 0.0
  %1641 = vmatpush1.msra.mxu0 0.0
  %1642 = vmatprep.subr.mxu0 0.0
  %1643 = vmatpush1.msra.mxu0 0.0
  %1644 = vmatprep.subr.mxu0 0.0
  %1645 = vmatpush1.msra.mxu0 0.0
  %1646 = vmatprep.subr.mxu0 0.0
  %1647 = vmatpush1.msra.mxu0 0.0
  %1648 = vmatprep.subr.mxu0 0.0
  %1649 = vmatpush1.msra.mxu0 0.0
  %1650 = vmatprep.subr.mxu0 0.0
  %1651 = vmatpush1.msra.mxu0 0.0
  %1652 = vmatprep.subr.mxu0 0.0
  %1653 = vmatpush1.msra.mxu0 0.0
  %1654 = vmatprep.subr.mxu0 0.0
  %1655 = vmatpush1.msra.mxu0 0.0
  %1656 = vmatprep.subr.mxu0 0.0
  %1657 = vmatpush1.msra.mxu0 0.0
  %1658 = vmatprep.subr.mxu0 0.0
  %1659 = vmatpush1.msra.mxu0 0.0
  %1660 = vmatprep.subr.mxu0 0.0
  %1661 = vmatpush1.msra.mxu0 0.0
  %1662 = vmatprep.subr.mxu0 0.0
  %1663 = vmatpush1.msra.mxu0 0.0
  %1664 = vmatprep.subr.mxu0 0.0
  %1665 = vmatpush1.msra.mxu0 0.0
  %1666 = vmatprep.subr.mxu0 0.0
  %1667 = vmatpush1.msra.mxu0 0.0
  %1668 = vmatprep.subr.mxu0 0.0
  %1669 = vmatpush1.msra.mxu0 0.0
  %1670 = vmatprep.subr.mxu0 0.0
  %1671 = vmatpush1.msra.mxu0 0.0
  %1672 = vmatprep.subr.mxu0 0.0
  %1673 = vmatpush1.msra.mxu0 0.0
  %1674 = vmatprep.subr.mxu0 0.0
  %1675 = vmatpush1.msra.mxu0 0.0
  %1676 = vmatprep.subr.mxu0 0.0
  %1677 = vmatpush1.msra.mxu0 0.0
  %1678 = vmatprep.subr.mxu0 0.0
  %1679 = vmatpush1.msra.mxu0 0.0
  %1680 = vmatprep.subr.mxu0 0.0
  %1681 = vmatpush1.msra.mxu0 0.0
  %1682 = vmatprep.subr.mxu0 0.0
  %1683 = vmatpush1.msra.mxu0 0.0
  %1684 = vmatprep.subr.mxu0 0.0
  %1685 = vmatpush1.msra.mxu0 0.0
  %1686 = vmatprep.subr.mxu0 0.0
  %1687 = vmatpush1.msra.mxu0 0.0
  %1688 = vmatprep.subr.mxu0 0.0
  %1689 = vmatpush1.msra.mxu0 0.0
  %1690 = vmatprep.subr.mxu0 0.0
  %1691 = vmatpush1.msra.mxu0 0.0
  %1692 = vmatprep.subr.mxu0 0.0
  %1693 = vmatpush1.msra.mxu0 0.0
  %1694 = vmatprep.subr.mxu0 0.0
  %1695 = vmatpush1.msra.mxu0 0.0
  %1696 = vmatprep.mubr.f32.mxu0 0.0
  %1697 = vmatmul.mubr.f32.gmra.mrb[0].mxu0 %v1630
  %v1698 = vpop.f32.mrb[0].mxu0
  %v1699 = vadd.f32 0.0, %v1698
  %v1700 = vpop.f32.mrb[0].mxu0
  %1701 = vdwg.mxu0
  %v1702 = vadd.f32 %v1185, %v1699
  %v1703 = vxor.u32 %v1702, 2147483648
  %v1704 = vmul.f32 %v1703, 1.442695
  %v1705 = vpow.pop %v1704
  %v1706 = vadd.f32 %v1705, 1.0
  %v1707 = vrcp.pop %v1706
  %v1708 = vmul.f32 1.0, %v1707
  %v1709 = vadd.f32 %v1699, %v1291
  %1711 = vrot.lane.b32.xlu0 %v1709, 64
  %v1712 = vpop.permute.xlu0 %1711
  %v1714 = vmul.f32 %v1708, %v1712
  %1716 = vrot.lane.b32.xlu0 %v1714, 64
  %v1717 = vpop.permute.xlu0 %1716
  %v1719 = vadd.f32 %v1185, %v1717
  %v1720 = vtanh.pop %v1719
  %v1721 = vsub.f32 1.0, %v1708
  %1723 = vrot.lane.b32.xlu0 %v1720, 96
  %v1724 = vpop.permute.xlu0 %1723
  %v1726 = vmul.f32 %v1721, %v1724
  %v1727 = vmul.f32 %v1708, %v1624
  %v1728 = vadd.f32 %v1726, %v1727
  %1730 = vrot.lane.b32.xlu0 %v1728, 96
  %v1731 = vpop.permute.xlu0 %1730
  %1733 = vst.msk [vmem:[#allocation2 + $0x20] sm:$0xff] %vm218, %v1731
  %v1734 = vsel %vm218, %v1731, 0
  %1736 = vmatprep.subr.mxu0 0.0
  %1737 = vmatpush1.msra.mxu0 %v1203
  %1738 = vmatprep.subr.mxu0 0.0
  %1739 = vmatpush1.msra.mxu0 %v1204
  %1740 = vmatprep.subr.mxu0 0.0
  %1741 = vmatpush1.msra.mxu0 %v1205
  %1742 = vmatprep.subr.mxu0 0.0
  %1743 = vmatpush1.msra.mxu0 %v1206
  %1744 = vmatprep.subr.mxu0 0.0
  %1745 = vmatpush1.msra.mxu0 0.0
  %1746 = vmatprep.subr.mxu0 0.0
  %1747 = vmatpush1.msra.mxu0 0.0
  %1748 = vmatprep.subr.mxu0 0.0
  %1749 = vmatpush1.msra.mxu0 0.0
  %1750 = vmatprep.subr.mxu0 0.0
  %1751 = vmatpush1.msra.mxu0 0.0
  %1752 = vmatprep.subr.mxu0 0.0
  %1753 = vmatpush1.msra.mxu0 0.0
  %1754 = vmatprep.subr.mxu0 0.0
  %1755 = vmatpush1.msra.mxu0 0.0
  %1756 = vmatprep.subr.mxu0 0.0
  %1757 = vmatpush1.msra.mxu0 0.0
  %1758 = vmatprep.subr.mxu0 0.0
  %1759 = vmatpush1.msra.mxu0 0.0
  %1760 = vmatprep.subr.mxu0 0.0
  %1761 = vmatpush1.msra.mxu0 0.0
  %1762 = vmatprep.subr.mxu0 0.0
  %1763 = vmatpush1.msra.mxu0 0.0
  %1764 = vmatprep.subr.mxu0 0.0
  %1765 = vmatpush1.msra.mxu0 0.0
  %1766 = vmatprep.subr.mxu0 0.0
  %1767 = vmatpush1.msra.mxu0 0.0
  %1768 = vmatprep.subr.mxu0 0.0
  %1769 = vmatpush1.msra.mxu0 0.0
  %1770 = vmatprep.subr.mxu0 0.0
  %1771 = vmatpush1.msra.mxu0 0.0
  %1772 = vmatprep.subr.mxu0 0.0
  %1773 = vmatpush1.msra.mxu0 0.0
  %1774 = vmatprep.subr.mxu0 0.0
  %1775 = vmatpush1.msra.mxu0 0.0
  %1776 = vmatprep.subr.mxu0 0.0
  %1777 = vmatpush1.msra.mxu0 0.0
  %1778 = vmatprep.subr.mxu0 0.0
  %1779 = vmatpush1.msra.mxu0 0.0
  %1780 = vmatprep.subr.mxu0 0.0
  %1781 = vmatpush1.msra.mxu0 0.0
  %1782 = vmatprep.subr.mxu0 0.0
  %1783 = vmatpush1.msra.mxu0 0.0
  %1784 = vmatprep.subr.mxu0 0.0
  %1785 = vmatpush1.msra.mxu0 0.0
  %1786 = vmatprep.subr.mxu0 0.0
  %1787 = vmatpush1.msra.mxu0 0.0
  %1788 = vmatprep.subr.mxu0 0.0
  %1789 = vmatpush1.msra.mxu0 0.0
  %1790 = vmatprep.subr.mxu0 0.0
  %1791 = vmatpush1.msra.mxu0 0.0
  %1792 = vmatprep.subr.mxu0 0.0
  %1793 = vmatpush1.msra.mxu0 0.0
  %1794 = vmatprep.subr.mxu0 0.0
  %1795 = vmatpush1.msra.mxu0 0.0
  %1796 = vmatprep.subr.mxu0 0.0
  %1797 = vmatpush1.msra.mxu0 0.0
  %1798 = vmatprep.subr.mxu0 0.0
  %1799 = vmatpush1.msra.mxu0 0.0
  %1800 = vmatprep.mubr.f32.mxu0 0.0
  %1801 = vmatmul.mubr.f32.gmra.mrb[0].mxu0 %v1734
  %v1802 = vpop.f32.mrb[0].mxu0
  %v1803 = vadd.f32 0.0, %v1802
  %v1804 = vpop.f32.mrb[0].mxu0
  %1805 = vdwg.mxu0
  %v1806 = vadd.f32 %v1190, %v1803
  %v1807 = vxor.u32 %v1806, 2147483648
  %v1808 = vmul.f32 %v1807, 1.442695
  %v1809 = vpow.pop %v1808
  %v1810 = vadd.f32 %v1809, 1.0
  %v1811 = vrcp.pop %v1810
  %v1812 = vmul.f32 1.0, %v1811
  %v1813 = vadd.f32 %v1803, %v1291
  %1815 = vrot.lane.b32.xlu0 %v1813, 64
  %v1816 = vpop.permute.xlu0 %1815
  %v1818 = vmul.f32 %v1812, %v1816
  %1820 = vrot.lane.b32.xlu0 %v1818, 64
  %v1821 = vpop.permute.xlu0 %1820
  %v1823 = vadd.f32 %v1190, %v1821
  %v1824 = vtanh.pop %v1823
  %v1825 = vsub.f32 1.0, %v1812
  %1827 = vrot.lane.b32.xlu0 %v1824, 96
  %v1828 = vpop.permute.xlu0 %1827
  %v1830 = vmul.f32 %v1825, %v1828
  %v1831 = vmul.f32 %v1812, %v1728
  %v1832 = vadd.f32 %v1830, %v1831
  %1834 = vrot.lane.b32.xlu0 %v1832, 96
  %v1835 = vpop.permute.xlu0 %1834
  %1837 = vst.msk [vmem:[#allocation2 + $0x28] sm:$0xff] %vm218, %v1835
  %v1838 = vsel %vm218, %v1835, 0
  %1840 = vmatprep.subr.mxu0 0.0
  %1841 = vmatpush1.msra.mxu0 %v1203
  %1842 = vmatprep.subr.mxu0 0.0
  %1843 = vmatpush1.msra.mxu0 %v1204
  %1844 = vmatprep.subr.mxu0 0.0
  %1845 = vmatpush1.msra.mxu0 %v1205
  %1846 = vmatprep.subr.mxu0 0.0
  %1847 = vmatpush1.msra.mxu0 %v1206
  %1848 = vmatprep.subr.mxu0 0.0
  %1849 = vmatpush1.msra.mxu0 0.0
  %1850 = vmatprep.subr.mxu0 0.0
  %1851 = vmatpush1.msra.mxu0 0.0
  %1852 = vmatprep.subr.mxu0 0.0
  %1853 = vmatpush1.msra.mxu0 0.0
  %1854 = vmatprep.subr.mxu0 0.0
  %1855 = vmatpush1.msra.mxu0 0.0
  %1856 = vmatprep.subr.mxu0 0.0
  %1857 = vmatpush1.msra.mxu0 0.0
  %1858 = vmatprep.subr.mxu0 0.0
  %1859 = vmatpush1.msra.mxu0 0.0
  %1860 = vmatprep.subr.mxu0 0.0
  %1861 = vmatpush1.msra.mxu0 0.0
  %1862 = vmatprep.subr.mxu0 0.0
  %1863 = vmatpush1.msra.mxu0 0.0
  %1864 = vmatprep.subr.mxu0 0.0
  %1865 = vmatpush1.msra.mxu0 0.0
  %1866 = vmatprep.subr.mxu0 0.0
  %1867 = vmatpush1.msra.mxu0 0.0
  %1868 = vmatprep.subr.mxu0 0.0
  %1869 = vmatpush1.msra.mxu0 0.0
  %1870 = vmatprep.subr.mxu0 0.0
  %1871 = vmatpush1.msra.mxu0 0.0
  %1872 = vmatprep.subr.mxu0 0.0
  %1873 = vmatpush1.msra.mxu0 0.0
  %1874 = vmatprep.subr.mxu0 0.0
  %1875 = vmatpush1.msra.mxu0 0.0
  %1876 = vmatprep.subr.mxu0 0.0
  %1877 = vmatpush1.msra.mxu0 0.0
  %1878 = vmatprep.subr.mxu0 0.0
  %1879 = vmatpush1.msra.mxu0 0.0
  %1880 = vmatprep.subr.mxu0 0.0
  %1881 = vmatpush1.msra.mxu0 0.0
  %1882 = vmatprep.subr.mxu0 0.0
  %1883 = vmatpush1.msra.mxu0 0.0
  %1884 = vmatprep.subr.mxu0 0.0
  %1885 = vmatpush1.msra.mxu0 0.0
  %1886 = vmatprep.subr.mxu0 0.0
  %1887 = vmatpush1.msra.mxu0 0.0
  %1888 = vmatprep.subr.mxu0 0.0
  %1889 = vmatpush1.msra.mxu0 0.0
  %1890 = vmatprep.subr.mxu0 0.0
  %1891 = vmatpush1.msra.mxu0 0.0
  %1892 = vmatprep.subr.mxu0 0.0
  %1893 = vmatpush1.msra.mxu0 0.0
  %1894 = vmatprep.subr.mxu0 0.0
  %1895 = vmatpush1.msra.mxu0 0.0
  %1896 = vmatprep.subr.mxu0 0.0
  %1897 = vmatpush1.msra.mxu0 0.0
  %1898 = vmatprep.subr.mxu0 0.0
  %1899 = vmatpush1.msra.mxu0 0.0
  %1900 = vmatprep.subr.mxu0 0.0
  %1901 = vmatpush1.msra.mxu0 0.0
  %1902 = vmatprep.subr.mxu0 0.0
  %1903 = vmatpush1.msra.mxu0 0.0
  %1904 = vmatprep.mubr.f32.mxu0 0.0
  %1905 = vmatmul.mubr.f32.gmra.mrb[0].mxu0 %v1838
  %v1906 = vpop.f32.mrb[0].mxu0
  %v1907 = vadd.f32 0.0, %v1906
  %v1908 = vpop.f32.mrb[0].mxu0
  %1909 = vdwg.mxu0
  %v1910 = vadd.f32 %v1195, %v1907
  %v1911 = vxor.u32 %v1910, 2147483648
  %v1912 = vmul.f32 %v1911, 1.442695
  %v1913 = vpow.pop %v1912
  %v1914 = vadd.f32 %v1913, 1.0
  %v1915 = vrcp.pop %v1914
  %v1916 = vmul.f32 1.0, %v1915
  %v1917 = vadd.f32 %v1907, %v1291
  %1919 = vrot.lane.b32.xlu0 %v1917, 64
  %v1920 = vpop.permute.xlu0 %1919
  %v1922 = vmul.f32 %v1916, %v1920
  %1924 = vrot.lane.b32.xlu0 %v1922, 64
  %v1925 = vpop.permute.xlu0 %1924
  %v1927 = vadd.f32 %v1195, %v1925
  %v1928 = vtanh.pop %v1927
  %v1929 = vsub.f32 1.0, %v1916
  %1931 = vrot.lane.b32.xlu0 %v1928, 96
  %v1932 = vpop.permute.xlu0 %1931
  %v1934 = vmul.f32 %v1929, %v1932
  %v1935 = vmul.f32 %v1916, %v1832
  %v1936 = vadd.f32 %v1934, %v1935
  %1938 = vrot.lane.b32.xlu0 %v1936, 96
  %v1939 = vpop.permute.xlu0 %1938
  %1941 = vst.msk [vmem:[#allocation2 + $0x30] sm:$0xff] %vm218, %v1939
  %v1942 = vsel %vm218, %v1939, 0
  %1944 = vmatprep.subr.mxu0 0.0
  %1945 = vmatpush1.msra.mxu0 %v1203
  %1946 = vmatprep.subr.mxu0 0.0
  %1947 = vmatpush1.msra.mxu0 %v1204
  %1948 = vmatprep.subr.mxu0 0.0
  %1949 = vmatpush1.msra.mxu0 %v1205
  %1950 = vmatprep.subr.mxu0 0.0
  %1951 = vmatpush1.msra.mxu0 %v1206
  %1952 = vmatprep.subr.mxu0 0.0
  %1953 = vmatpush1.msra.mxu0 0.0
  %1954 = vmatprep.subr.mxu0 0.0
  %1955 = vmatpush1.msra.mxu0 0.0
  %1956 = vmatprep.subr.mxu0 0.0
  %1957 = vmatpush1.msra.mxu0 0.0
  %1958 = vmatprep.subr.mxu0 0.0
  %1959 = vmatpush1.msra.mxu0 0.0
  %1960 = vmatprep.subr.mxu0 0.0
  %1961 = vmatpush1.msra.mxu0 0.0
  %1962 = vmatprep.subr.mxu0 0.0
  %1963 = vmatpush1.msra.mxu0 0.0
  %1964 = vmatprep.subr.mxu0 0.0
  %1965 = vmatpush1.msra.mxu0 0.0
  %1966 = vmatprep.subr.mxu0 0.0
  %1967 = vmatpush1.msra.mxu0 0.0
  %1968 = vmatprep.subr.mxu0 0.0
  %1969 = vmatpush1.msra.mxu0 0.0
  %1970 = vmatprep.subr.mxu0 0.0
  %1971 = vmatpush1.msra.mxu0 0.0
  %1972 = vmatprep.subr.mxu0 0.0
  %1973 = vmatpush1.msra.mxu0 0.0
  %1974 = vmatprep.subr.mxu0 0.0
  %1975 = vmatpush1.msra.mxu0 0.0
  %1976 = vmatprep.subr.mxu0 0.0
  %1977 = vmatpush1.msra.mxu0 0.0
  %1978 = vmatprep.subr.mxu0 0.0
  %1979 = vmatpush1.msra.mxu0 0.0
  %1980 = vmatprep.subr.mxu0 0.0
  %1981 = vmatpush1.msra.mxu0 0.0
  %1982 = vmatprep.subr.mxu0 0.0
  %1983 = vmatpush1.msra.mxu0 0.0
  %1984 = vmatprep.subr.mxu0 0.0
  %1985 = vmatpush1.msra.mxu0 0.0
  %1986 = vmatprep.subr.mxu0 0.0
  %1987 = vmatpush1.msra.mxu0 0.0
  %1988 = vmatprep.subr.mxu0 0.0
  %1989 = vmatpush1.msra.mxu0 0.0
  %1990 = vmatprep.subr.mxu0 0.0
  %1991 = vmatpush1.msra.mxu0 0.0
  %1992 = vmatprep.subr.mxu0 0.0
  %1993 = vmatpush1.msra.mxu0 0.0
  %1994 = vmatprep.subr.mxu0 0.0
  %1995 = vmatpush1.msra.mxu0 0.0
  %1996 = vmatprep.subr.mxu0 0.0
  %1997 = vmatpush1.msra.mxu0 0.0
  %1998 = vmatprep.subr.mxu0 0.0
  %1999 = vmatpush1.msra.mxu0 0.0
  %2000 = vmatprep.subr.mxu0 0.0
  %2001 = vmatpush1.msra.mxu0 0.0
  %2002 = vmatprep.subr.mxu0 0.0
  %2003 = vmatpush1.msra.mxu0 0.0
  %2004 = vmatprep.subr.mxu0 0.0
  %2005 = vmatpush1.msra.mxu0 0.0
  %2006 = vmatprep.subr.mxu0 0.0
  %2007 = vmatpush1.msra.mxu0 0.0
  %2008 = vmatprep.mubr.f32.mxu0 0.0
  %2009 = vmatmul.mubr.f32.gmra.mrb[0].mxu0 %v1942
  %v2010 = vpop.f32.mrb[0].mxu0
  %v2011 = vadd.f32 0.0, %v2010
  %v2012 = vpop.f32.mrb[0].mxu0
  %2013 = vdwg.mxu0
  %v2014 = vadd.f32 %v1200, %v2011
  %v2015 = vxor.u32 %v2014, 2147483648
  %v2016 = vmul.f32 %v2015, 1.442695
  %v2017 = vpow.pop %v2016
  %v2018 = vadd.f32 %v2017, 1.0
  %v2019 = vrcp.pop %v2018
  %v2020 = vmul.f32 1.0, %v2019
  %v2021 = vadd.f32 %v2011, %v1291
  %2023 = vrot.lane.b32.xlu0 %v2021, 64
  %v2024 = vpop.permute.xlu0 %2023
  %v2026 = vmul.f32 %v2020, %v2024
  %2028 = vrot.lane.b32.xlu0 %v2026, 64
  %v2029 = vpop.permute.xlu0 %2028
  %v2031 = vadd.f32 %v1200, %v2029
  %v2032 = vtanh.pop %v2031
  %v2033 = vsub.f32 1.0, %v2020
  %2035 = vrot.lane.b32.xlu0 %v2032, 96
  %v2036 = vpop.permute.xlu0 %2035
  %v2038 = vmul.f32 %v2033, %v2036
  %v2039 = vmul.f32 %v2020, %v1936
  %v2040 = vadd.f32 %v2038, %v2039
  %2042 = vrot.lane.b32.xlu0 %v2040, 96
  %v2043 = vpop.permute.xlu0 %2042
  %2045 = vst.msk [vmem:[#allocation2 + $0x38] sm:$0xff] %vm218, %v2043
  %v2046 = vld [vmem:[#allocation2] sm:$0xff]
  %v2047 = vld [vmem:[#allocation2 + $0x8] sm:$0xff]
  %v2048 = vld [vmem:[#allocation2 + $0x10] sm:$0xff]
  %v2049 = vld [vmem:[#allocation2 + $0x18] sm:$0xff]
  %v2050 = vld [vmem:[#allocation2 + $0x20] sm:$0xff]
  %v2051 = vld [vmem:[#allocation2 + $0x28] sm:$0xff]
  %v2052 = vld [vmem:[#allocation2 + $0x30] sm:$0xff]
  %v2053 = vld [vmem:[#allocation2 + $0x38] sm:$0xff]
  %v2054 = vld [vmem:[%s9] sm:$0xff]
  %v2055 = vld [vmem:[%s9 + $0x8] sm:$0xff]
  %v2056 = vld [vmem:[%s9 + $0x10] sm:$0xff]
  %v2057 = vld [vmem:[%s9 + $0x18] sm:$0xff]
  %v2058 = vld [vmem:[%s11] sm:$0x1]
  %v2060 = vlaneseq
  %v2061 = vshrl.u32 %v2060, 7
  %v2062 = vsub.s32 0, %v2061
  %v2063 = vrot.slane %v2058, %v2062
  %v2066 = vsel %vm218, %v2046, 0
  %v2069 = vsel %vm218, %v2047, 0
  %v2072 = vsel %vm218, %v2048, 0
  %v2075 = vsel %vm218, %v2049, 0
  %v2078 = vsel %vm218, %v2050, 0
  %v2081 = vsel %vm218, %v2051, 0
  %v2084 = vsel %vm218, %v2052, 0
  %v2087 = vsel %vm218, %v2053, 0
  %2089 = vmatprep.subr.mxu0 0.0
  %2090 = vmatpush1.msra.mxu0 %v2054
  %2091 = vmatprep.subr.mxu0 0.0
  %2092 = vmatpush1.msra.mxu0 %v2055
  %2093 = vmatprep.subr.mxu0 0.0
  %2094 = vmatpush1.msra.mxu0 %v2056
  %2095 = vmatprep.subr.mxu0 0.0
  %2096 = vmatpush1.msra.mxu0 %v2057
  %2097 = vmatprep.subr.mxu0 0.0
  %2098 = vmatpush1.msra.mxu0 0.0
  %2099 = vmatprep.subr.mxu0 0.0
  %2100 = vmatpush1.msra.mxu0 0.0
  %2101 = vmatprep.subr.mxu0 0.0
  %2102 = vmatpush1.msra.mxu0 0.0
  %2103 = vmatprep.subr.mxu0 0.0
  %2104 = vmatpush1.msra.mxu0 0.0
  %2105 = vmatprep.subr.mxu0 0.0
  %2106 = vmatpush1.msra.mxu0 0.0
  %2107 = vmatprep.subr.mxu0 0.0
  %2108 = vmatpush1.msra.mxu0 0.0
  %2109 = vmatprep.subr.mxu0 0.0
  %2110 = vmatpush1.msra.mxu0 0.0
  %2111 = vmatprep.subr.mxu0 0.0
  %2112 = vmatpush1.msra.mxu0 0.0
  %2113 = vmatprep.subr.mxu0 0.0
  %2114 = vmatpush1.msra.mxu0 0.0
  %2115 = vmatprep.subr.mxu0 0.0
  %2116 = vmatpush1.msra.mxu0 0.0
  %2117 = vmatprep.subr.mxu0 0.0
  %2118 = vmatpush1.msra.mxu0 0.0
  %2119 = vmatprep.subr.mxu0 0.0
  %2120 = vmatpush1.msra.mxu0 0.0
  %2121 = vmatprep.subr.mxu0 0.0
  %2122 = vmatpush1.msra.mxu0 0.0
  %2123 = vmatprep.subr.mxu0 0.0
  %2124 = vmatpush1.msra.mxu0 0.0
  %2125 = vmatprep.subr.mxu0 0.0
  %2126 = vmatpush1.msra.mxu0 0.0
  %2127 = vmatprep.subr.mxu0 0.0
  %2128 = vmatpush1.msra.mxu0 0.0
  %2129 = vmatprep.subr.mxu0 0.0
  %2130 = vmatpush1.msra.mxu0 0.0
  %2131 = vmatprep.subr.mxu0 0.0
  %2132 = vmatpush1.msra.mxu0 0.0
  %2133 = vmatprep.subr.mxu0 0.0
  %2134 = vmatpush1.msra.mxu0 0.0
  %2135 = vmatprep.subr.mxu0 0.0
  %2136 = vmatpush1.msra.mxu0 0.0
  %2137 = vmatprep.subr.mxu0 0.0
  %2138 = vmatpush1.msra.mxu0 0.0
  %2139 = vmatprep.subr.mxu0 0.0
  %2140 = vmatpush1.msra.mxu0 0.0
  %2141 = vmatprep.subr.mxu0 0.0
  %2142 = vmatpush1.msra.mxu0 0.0
  %2143 = vmatprep.subr.mxu0 0.0
  %2144 = vmatpush1.msra.mxu0 0.0
  %2145 = vmatprep.subr.mxu0 0.0
  %2146 = vmatpush1.msra.mxu0 0.0
  %2147 = vmatprep.subr.mxu0 0.0
  %2148 = vmatpush1.msra.mxu0 0.0
  %2149 = vmatprep.subr.mxu0 0.0
  %2150 = vmatpush1.msra.mxu0 0.0
  %2151 = vmatprep.subr.mxu0 0.0
  %2152 = vmatpush1.msra.mxu0 0.0
  %2153 = vmatprep.mubr.f32.mxu0 0.0
  %2154 = vmatmul.mubr.f32.gmra.mrb[0].mxu0 %v2066
  %v2155 = vpop.f32.mrb[0].mxu0
  %v2156 = vadd.f32 %v2063, %v2155
  %v2157 = vpop.f32.mrb[0].mxu0
  %2158 = vmatprep.mubr.f32.mxu0 0.0
  %2159 = vmatmul.mubr.f32.gmra.mrb[0].mxu0 %v2069
  %v2160 = vpop.f32.mrb[0].mxu0
  %v2161 = vadd.f32 %v2063, %v2160
  %v2162 = vpop.f32.mrb[0].mxu0
  %2163 = vmatprep.mubr.f32.mxu0 0.0
  %2164 = vmatmul.mubr.f32.gmra.mrb[0].mxu0 %v2072
  %v2165 = vpop.f32.mrb[0].mxu0
  %v2166 = vadd.f32 %v2063, %v2165
  %v2167 = vpop.f32.mrb[0].mxu0
  %2168 = vmatprep.mubr.f32.mxu0 0.0
  %2169 = vmatmul.mubr.f32.gmra.mrb[0].mxu0 %v2075
  %v2170 = vpop.f32.mrb[0].mxu0
  %v2171 = vadd.f32 %v2063, %v2170
  %v2172 = vpop.f32.mrb[0].mxu0
  %2173 = vmatprep.mubr.f32.mxu0 0.0
  %2174 = vmatmul.mubr.f32.gmra.mrb[0].mxu0 %v2078
  %v2175 = vpop.f32.mrb[0].mxu0
  %v2176 = vadd.f32 %v2063, %v2175
  %v2177 = vpop.f32.mrb[0].mxu0
  %2178 = vmatprep.mubr.f32.mxu0 0.0
  %2179 = vmatmul.mubr.f32.gmra.mrb[0].mxu0 %v2081
  %v2180 = vpop.f32.mrb[0].mxu0
  %v2181 = vadd.f32 %v2063, %v2180
  %v2182 = vpop.f32.mrb[0].mxu0
  %2183 = vmatprep.mubr.f32.mxu0 0.0
  %2184 = vmatmul.mubr.f32.gmra.mrb[0].mxu0 %v2084
  %v2185 = vpop.f32.mrb[0].mxu0
  %v2186 = vadd.f32 %v2063, %v2185
  %v2187 = vpop.f32.mrb[0].mxu0
  %2188 = vmatprep.mubr.f32.mxu0 0.0
  %2189 = vmatmul.mubr.f32.gmra.mrb[0].mxu0 %v2087
  %v2190 = vpop.f32.mrb[0].mxu0
  %v2191 = vadd.f32 %v2063, %v2190
  %v2192 = vpop.f32.mrb[0].mxu0
  %2193 = vdwg.mxu0
  %v2194 = vld [vmem:[%s10] sm:$0xff]
  %v2195 = vld [vmem:[%s12] sm:$0x1]
  %v2197 = vlaneseq
  %v2198 = vshrl.u32 %v2197, 7
  %v2199 = vsub.s32 0, %v2198
  %v2200 = vrot.slane %v2195, %v2199
  %v2201 = vsel %vm78, 0.0, 0
  %2203 = vmatprep.subr.mxu0 0.0
  %2204 = vmatpush1.msra.mxu0 %v2194
  %2205 = vmatprep.subr.mxu0 0.0
  %2206 = vmatpush1.msra.mxu0 0.0
  %2207 = vmatprep.subr.mxu0 0.0
  %2208 = vmatpush1.msra.mxu0 0.0
  %2209 = vmatprep.subr.mxu0 0.0
  %2210 = vmatpush1.msra.mxu0 0.0
  %2211 = vmatprep.subr.mxu0 0.0
  %2212 = vmatpush1.msra.mxu0 0.0
  %2213 = vmatprep.subr.mxu0 0.0
  %2214 = vmatpush1.msra.mxu0 0.0
  %2215 = vmatprep.subr.mxu0 0.0
  %2216 = vmatpush1.msra.mxu0 0.0
  %2217 = vmatprep.subr.mxu0 0.0
  %2218 = vmatpush1.msra.mxu0 0.0
  %2219 = vmatprep.subr.mxu0 0.0
  %2220 = vmatpush1.msra.mxu0 0.0
  %2221 = vmatprep.subr.mxu0 0.0
  %2222 = vmatpush1.msra.mxu0 0.0
  %2223 = vmatprep.subr.mxu0 0.0
  %2224 = vmatpush1.msra.mxu0 0.0
  %2225 = vmatprep.subr.mxu0 0.0
  %2226 = vmatpush1.msra.mxu0 0.0
  %2227 = vmatprep.subr.mxu0 0.0
  %2228 = vmatpush1.msra.mxu0 0.0
  %2229 = vmatprep.subr.mxu0 0.0
  %2230 = vmatpush1.msra.mxu0 0.0
  %2231 = vmatprep.subr.mxu0 0.0
  %2232 = vmatpush1.msra.mxu0 0.0
  %2233 = vmatprep.subr.mxu0 0.0
  %2234 = vmatpush1.msra.mxu0 0.0
  %2235 = vmatprep.subr.mxu0 0.0
  %2236 = vmatpush1.msra.mxu0 0.0
  %2237 = vmatprep.subr.mxu0 0.0
  %2238 = vmatpush1.msra.mxu0 0.0
  %2239 = vmatprep.subr.mxu0 0.0
  %2240 = vmatpush1.msra.mxu0 0.0
  %2241 = vmatprep.subr.mxu0 0.0
  %2242 = vmatpush1.msra.mxu0 0.0
  %2243 = vmatprep.subr.mxu0 0.0
  %2244 = vmatpush1.msra.mxu0 0.0
  %2245 = vmatprep.subr.mxu0 0.0
  %2246 = vmatpush1.msra.mxu0 0.0
  %2247 = vmatprep.subr.mxu0 0.0
  %2248 = vmatpush1.msra.mxu0 0.0
  %2249 = vmatprep.subr.mxu0 0.0
  %2250 = vmatpush1.msra.mxu0 0.0
  %2251 = vmatprep.subr.mxu0 0.0
  %2252 = vmatpush1.msra.mxu0 0.0
  %2253 = vmatprep.subr.mxu0 0.0
  %2254 = vmatpush1.msra.mxu0 0.0
  %2255 = vmatprep.subr.mxu0 0.0
  %2256 = vmatpush1.msra.mxu0 0.0
  %2257 = vmatprep.subr.mxu0 0.0
  %2258 = vmatpush1.msra.mxu0 0.0
  %2259 = vmatprep.subr.mxu0 0.0
  %2260 = vmatpush1.msra.mxu0 0.0
  %2261 = vmatprep.subr.mxu0 0.0
  %2262 = vmatpush1.msra.mxu0 0.0
  %2263 = vmatprep.subr.mxu0 0.0
  %2264 = vmatpush1.msra.mxu0 0.0
  %2265 = vmatprep.subr.mxu0 0.0
  %2266 = vmatpush1.msra.mxu0 0.0
  %2267 = vmatprep.mubr.f32.mxu0 0.0
  %2268 = vmatmul.mubr.f32.gmra.mrb[0].mxu0 %v2201
  %v2269 = vpop.f32.mrb[0].mxu0
  %v2270 = vadd.f32 0.0, %v2269
  %v2271 = vpop.f32.mrb[0].mxu0
  %2272 = vdwg.mxu0
  %v2273 = vadd.f32 %v2156, %v2270
  %v2274 = vxor.u32 %v2273, 2147483648
  %v2275 = vmul.f32 %v2274, 1.442695
  %v2276 = vpow.pop %v2275
  %v2277 = vadd.f32 %v2276, 1.0
  %v2278 = vrcp.pop %v2277
  %v2279 = vmul.f32 1.0, %v2278
  %2280 = vrot.lane.b32.xlu0 %v2200, 16
  %v2281 = vpop.permute.xlu0 %2280
  %v2283 = vadd.f32 %v2270, %v2281
  %2285 = vrot.lane.b32.xlu0 %v2283, 112
  %v2286 = vpop.permute.xlu0 %2285
  %v2288 = vmul.f32 %v2279, %v2286
  %2290 = vrot.lane.b32.xlu0 %v2288, 16
  %v2291 = vpop.permute.xlu0 %2290
  %v2293 = vadd.f32 %v2156, %v2291
  %v2294 = vtanh.pop %v2293
  %v2295 = vsub.f32 1.0, %v2279
  %2297 = vrot.lane.b32.xlu0 %v2294, 120
  %v2298 = vpop.permute.xlu0 %2297
  %v2300 = vmul.f32 %v2295, %v2298
  %v2301 = vmul.f32 %v2279, 0.0
  %v2302 = vadd.f32 %v2300, %v2301
  %2304 = vrot.lane.b32.xlu0 %v2302, 120
  %v2305 = vpop.permute.xlu0 %2304
  %2307 = vst.msk [vmem:[#allocation2] sm:$0xff] %vm78, %v2305
  %v2308 = vsel %vm78, %v2305, 0
  %2310 = vmatprep.subr.mxu0 0.0
  %2311 = vmatpush1.msra.mxu0 %v2194
  %2312 = vmatprep.subr.mxu0 0.0
  %2313 = vmatpush1.msra.mxu0 0.0
  %2314 = vmatprep.subr.mxu0 0.0
  %2315 = vmatpush1.msra.mxu0 0.0
  %2316 = vmatprep.subr.mxu0 0.0
  %2317 = vmatpush1.msra.mxu0 0.0
  %2318 = vmatprep.subr.mxu0 0.0
  %2319 = vmatpush1.msra.mxu0 0.0
  %2320 = vmatprep.subr.mxu0 0.0
  %2321 = vmatpush1.msra.mxu0 0.0
  %2322 = vmatprep.subr.mxu0 0.0
  %2323 = vmatpush1.msra.mxu0 0.0
  %2324 = vmatprep.subr.mxu0 0.0
  %2325 = vmatpush1.msra.mxu0 0.0
  %2326 = vmatprep.subr.mxu0 0.0
  %2327 = vmatpush1.msra.mxu0 0.0
  %2328 = vmatprep.subr.mxu0 0.0
  %2329 = vmatpush1.msra.mxu0 0.0
  %2330 = vmatprep.subr.mxu0 0.0
  %2331 = vmatpush1.msra.mxu0 0.0
  %2332 = vmatprep.subr.mxu0 0.0
  %2333 = vmatpush1.msra.mxu0 0.0
  %2334 = vmatprep.subr.mxu0 0.0
  %2335 = vmatpush1.msra.mxu0 0.0
  %2336 = vmatprep.subr.mxu0 0.0
  %2337 = vmatpush1.msra.mxu0 0.0
  %2338 = vmatprep.subr.mxu0 0.0
  %2339 = vmatpush1.msra.mxu0 0.0
  %2340 = vmatprep.subr.mxu0 0.0
  %2341 = vmatpush1.msra.mxu0 0.0
  %2342 = vmatprep.subr.mxu0 0.0
  %2343 = vmatpush1.msra.mxu0 0.0
  %2344 = vmatprep.subr.mxu0 0.0
  %2345 = vmatpush1.msra.mxu0 0.0
  %2346 = vmatprep.subr.mxu0 0.0
  %2347 = vmatpush1.msra.mxu0 0.0
  %2348 = vmatprep.subr.mxu0 0.0
  %2349 = vmatpush1.msra.mxu0 0.0
  %2350 = vmatprep.subr.mxu0 0.0
  %2351 = vmatpush1.msra.mxu0 0.0
  %2352 = vmatprep.subr.mxu0 0.0
  %2353 = vmatpush1.msra.mxu0 0.0
  %2354 = vmatprep.subr.mxu0 0.0
  %2355 = vmatpush1.msra.mxu0 0.0
  %2356 = vmatprep.subr.mxu0 0.0
  %2357 = vmatpush1.msra.mxu0 0.0
  %2358 = vmatprep.subr.mxu0 0.0
  %2359 = vmatpush1.msra.mxu0 0.0
  %2360 = vmatprep.subr.mxu0 0.0
  %2361 = vmatpush1.msra.mxu0 0.0
  %2362 = vmatprep.subr.mxu0 0.0
  %2363 = vmatpush1.msra.mxu0 0.0
  %2364 = vmatprep.subr.mxu0 0.0
  %2365 = vmatpush1.msra.mxu0 0.0
  %2366 = vmatprep.subr.mxu0 0.0
  %2367 = vmatpush1.msra.mxu0 0.0
  %2368 = vmatprep.subr.mxu0 0.0
  %2369 = vmatpush1.msra.mxu0 0.0
  %2370 = vmatprep.subr.mxu0 0.0
  %2371 = vmatpush1.msra.mxu0 0.0
  %2372 = vmatprep.subr.mxu0 0.0
  %2373 = vmatpush1.msra.mxu0 0.0
  %2374 = vmatprep.mubr.f32.mxu0 0.0
  %2375 = vmatmul.mubr.f32.gmra.mrb[0].mxu0 %v2308
  %v2376 = vpop.f32.mrb[0].mxu0
  %v2377 = vadd.f32 0.0, %v2376
  %v2378 = vpop.f32.mrb[0].mxu0
  %2379 = vdwg.mxu0
  %v2380 = vadd.f32 %v2161, %v2377
  %v2381 = vxor.u32 %v2380, 2147483648
  %v2382 = vmul.f32 %v2381, 1.442695
  %v2383 = vpow.pop %v2382
  %v2384 = vadd.f32 %v2383, 1.0
  %v2385 = vrcp.pop %v2384
  %v2386 = vmul.f32 1.0, %v2385
  %v2387 = vadd.f32 %v2377, %v2281
  %2389 = vrot.lane.b32.xlu0 %v2387, 112
  %v2390 = vpop.permute.xlu0 %2389
  %v2392 = vmul.f32 %v2386, %v2390
  %2394 = vrot.lane.b32.xlu0 %v2392, 16
  %v2395 = vpop.permute.xlu0 %2394
  %v2397 = vadd.f32 %v2161, %v2395
  %v2398 = vtanh.pop %v2397
  %v2399 = vsub.f32 1.0, %v2386
  %2401 = vrot.lane.b32.xlu0 %v2398, 120
  %v2402 = vpop.permute.xlu0 %2401
  %v2404 = vmul.f32 %v2399, %v2402
  %v2405 = vmul.f32 %v2386, %v2302
  %v2406 = vadd.f32 %v2404, %v2405
  %2408 = vrot.lane.b32.xlu0 %v2406, 120
  %v2409 = vpop.permute.xlu0 %2408
  %2411 = vst.msk [vmem:[#allocation2 + $0x8] sm:$0xff] %vm78, %v2409
  %v2412 = vsel %vm78, %v2409, 0
  %2414 = vmatprep.subr.mxu0 0.0
  %2415 = vmatpush1.msra.mxu0 %v2194
  %2416 = vmatprep.subr.mxu0 0.0
  %2417 = vmatpush1.msra.mxu0 0.0
  %2418 = vmatprep.subr.mxu0 0.0
  %2419 = vmatpush1.msra.mxu0 0.0
  %2420 = vmatprep.subr.mxu0 0.0
  %2421 = vmatpush1.msra.mxu0 0.0
  %2422 = vmatprep.subr.mxu0 0.0
  %2423 = vmatpush1.msra.mxu0 0.0
  %2424 = vmatprep.subr.mxu0 0.0
  %2425 = vmatpush1.msra.mxu0 0.0
  %2426 = vmatprep.subr.mxu0 0.0
  %2427 = vmatpush1.msra.mxu0 0.0
  %2428 = vmatprep.subr.mxu0 0.0
  %2429 = vmatpush1.msra.mxu0 0.0
  %2430 = vmatprep.subr.mxu0 0.0
  %2431 = vmatpush1.msra.mxu0 0.0
  %2432 = vmatprep.subr.mxu0 0.0
  %2433 = vmatpush1.msra.mxu0 0.0
  %2434 = vmatprep.subr.mxu0 0.0
  %2435 = vmatpush1.msra.mxu0 0.0
  %2436 = vmatprep.subr.mxu0 0.0
  %2437 = vmatpush1.msra.mxu0 0.0
  %2438 = vmatprep.subr.mxu0 0.0
  %2439 = vmatpush1.msra.mxu0 0.0
  %2440 = vmatprep.subr.mxu0 0.0
  %2441 = vmatpush1.msra.mxu0 0.0
  %2442 = vmatprep.subr.mxu0 0.0
  %2443 = vmatpush1.msra.mxu0 0.0
  %2444 = vmatprep.subr.mxu0 0.0
  %2445 = vmatpush1.msra.mxu0 0.0
  %2446 = vmatprep.subr.mxu0 0.0
  %2447 = vmatpush1.msra.mxu0 0.0
  %2448 = vmatprep.subr.mxu0 0.0
  %2449 = vmatpush1.msra.mxu0 0.0
  %2450 = vmatprep.subr.mxu0 0.0
  %2451 = vmatpush1.msra.mxu0 0.0
  %2452 = vmatprep.subr.mxu0 0.0
  %2453 = vmatpush1.msra.mxu0 0.0
  %2454 = vmatprep.subr.mxu0 0.0
  %2455 = vmatpush1.msra.mxu0 0.0
  %2456 = vmatprep.subr.mxu0 0.0
  %2457 = vmatpush1.msra.mxu0 0.0
  %2458 = vmatprep.subr.mxu0 0.0
  %2459 = vmatpush1.msra.mxu0 0.0
  %2460 = vmatprep.subr.mxu0 0.0
  %2461 = vmatpush1.msra.mxu0 0.0
  %2462 = vmatprep.subr.mxu0 0.0
  %2463 = vmatpush1.msra.mxu0 0.0
  %2464 = vmatprep.subr.mxu0 0.0
  %2465 = vmatpush1.msra.mxu0 0.0
  %2466 = vmatprep.subr.mxu0 0.0
  %2467 = vmatpush1.msra.mxu0 0.0
  %2468 = vmatprep.subr.mxu0 0.0
  %2469 = vmatpush1.msra.mxu0 0.0
  %2470 = vmatprep.subr.mxu0 0.0
  %2471 = vmatpush1.msra.mxu0 0.0
  %2472 = vmatprep.subr.mxu0 0.0
  %2473 = vmatpush1.msra.mxu0 0.0
  %2474 = vmatprep.subr.mxu0 0.0
  %2475 = vmatpush1.msra.mxu0 0.0
  %2476 = vmatprep.subr.mxu0 0.0
  %2477 = vmatpush1.msra.mxu0 0.0
  %2478 = vmatprep.mubr.f32.mxu0 0.0
  %2479 = vmatmul.mubr.f32.gmra.mrb[0].mxu0 %v2412
  %v2480 = vpop.f32.mrb[0].mxu0
  %v2481 = vadd.f32 0.0, %v2480
  %v2482 = vpop.f32.mrb[0].mxu0
  %2483 = vdwg.mxu0
  %v2484 = vadd.f32 %v2166, %v2481
  %v2485 = vxor.u32 %v2484, 2147483648
  %v2486 = vmul.f32 %v2485, 1.442695
  %v2487 = vpow.pop %v2486
  %v2488 = vadd.f32 %v2487, 1.0
  %v2489 = vrcp.pop %v2488
  %v2490 = vmul.f32 1.0, %v2489
  %v2491 = vadd.f32 %v2481, %v2281
  %2493 = vrot.lane.b32.xlu0 %v2491, 112
  %v2494 = vpop.permute.xlu0 %2493
  %v2496 = vmul.f32 %v2490, %v2494
  %2498 = vrot.lane.b32.xlu0 %v2496, 16
  %v2499 = vpop.permute.xlu0 %2498
  %v2501 = vadd.f32 %v2166, %v2499
  %v2502 = vtanh.pop %v2501
  %v2503 = vsub.f32 1.0, %v2490
  %2505 = vrot.lane.b32.xlu0 %v2502, 120
  %v2506 = vpop.permute.xlu0 %2505
  %v2508 = vmul.f32 %v2503, %v2506
  %v2509 = vmul.f32 %v2490, %v2406
  %v2510 = vadd.f32 %v2508, %v2509
  %2512 = vrot.lane.b32.xlu0 %v2510, 120
  %v2513 = vpop.permute.xlu0 %2512
  %2515 = vst.msk [vmem:[#allocation2 + $0x10] sm:$0xff] %vm78, %v2513
  %v2516 = vsel %vm78, %v2513, 0
  %2518 = vmatprep.subr.mxu0 0.0
  %2519 = vmatpush1.msra.mxu0 %v2194
  %2520 = vmatprep.subr.mxu0 0.0
  %2521 = vmatpush1.msra.mxu0 0.0
  %2522 = vmatprep.subr.mxu0 0.0
  %2523 = vmatpush1.msra.mxu0 0.0
  %2524 = vmatprep.subr.mxu0 0.0
  %2525 = vmatpush1.msra.mxu0 0.0
  %2526 = vmatprep.subr.mxu0 0.0
  %2527 = vmatpush1.msra.mxu0 0.0
  %2528 = vmatprep.subr.mxu0 0.0
  %2529 = vmatpush1.msra.mxu0 0.0
  %2530 = vmatprep.subr.mxu0 0.0
  %2531 = vmatpush1.msra.mxu0 0.0
  %2532 = vmatprep.subr.mxu0 0.0
  %2533 = vmatpush1.msra.mxu0 0.0
  %2534 = vmatprep.subr.mxu0 0.0
  %2535 = vmatpush1.msra.mxu0 0.0
  %2536 = vmatprep.subr.mxu0 0.0
  %2537 = vmatpush1.msra.mxu0 0.0
  %2538 = vmatprep.subr.mxu0 0.0
  %2539 = vmatpush1.msra.mxu0 0.0
  %2540 = vmatprep.subr.mxu0 0.0
  %2541 = vmatpush1.msra.mxu0 0.0
  %2542 = vmatprep.subr.mxu0 0.0
  %2543 = vmatpush1.msra.mxu0 0.0
  %2544 = vmatprep.subr.mxu0 0.0
  %2545 = vmatpush1.msra.mxu0 0.0
  %2546 = vmatprep.subr.mxu0 0.0
  %2547 = vmatpush1.msra.mxu0 0.0
  %2548 = vmatprep.subr.mxu0 0.0
  %2549 = vmatpush1.msra.mxu0 0.0
  %2550 = vmatprep.subr.mxu0 0.0
  %2551 = vmatpush1.msra.mxu0 0.0
  %2552 = vmatprep.subr.mxu0 0.0
  %2553 = vmatpush1.msra.mxu0 0.0
  %2554 = vmatprep.subr.mxu0 0.0
  %2555 = vmatpush1.msra.mxu0 0.0
  %2556 = vmatprep.subr.mxu0 0.0
  %2557 = vmatpush1.msra.mxu0 0.0
  %2558 = vmatprep.subr.mxu0 0.0
  %2559 = vmatpush1.msra.mxu0 0.0
  %2560 = vmatprep.subr.mxu0 0.0
  %2561 = vmatpush1.msra.mxu0 0.0
  %2562 = vmatprep.subr.mxu0 0.0
  %2563 = vmatpush1.msra.mxu0 0.0
  %2564 = vmatprep.subr.mxu0 0.0
  %2565 = vmatpush1.msra.mxu0 0.0
  %2566 = vmatprep.subr.mxu0 0.0
  %2567 = vmatpush1.msra.mxu0 0.0
  %2568 = vmatprep.subr.mxu0 0.0
  %2569 = vmatpush1.msra.mxu0 0.0
  %2570 = vmatprep.subr.mxu0 0.0
  %2571 = vmatpush1.msra.mxu0 0.0
  %2572 = vmatprep.subr.mxu0 0.0
  %2573 = vmatpush1.msra.mxu0 0.0
  %2574 = vmatprep.subr.mxu0 0.0
  %2575 = vmatpush1.msra.mxu0 0.0
  %2576 = vmatprep.subr.mxu0 0.0
  %2577 = vmatpush1.msra.mxu0 0.0
  %2578 = vmatprep.subr.mxu0 0.0
  %2579 = vmatpush1.msra.mxu0 0.0
  %2580 = vmatprep.subr.mxu0 0.0
  %2581 = vmatpush1.msra.mxu0 0.0
  %2582 = vmatprep.mubr.f32.mxu0 0.0
  %2583 = vmatmul.mubr.f32.gmra.mrb[0].mxu0 %v2516
  %v2584 = vpop.f32.mrb[0].mxu0
  %v2585 = vadd.f32 0.0, %v2584
  %v2586 = vpop.f32.mrb[0].mxu0
  %2587 = vdwg.mxu0
  %v2588 = vadd.f32 %v2171, %v2585
  %v2589 = vxor.u32 %v2588, 2147483648
  %v2590 = vmul.f32 %v2589, 1.442695
  %v2591 = vpow.pop %v2590
  %v2592 = vadd.f32 %v2591, 1.0
  %v2593 = vrcp.pop %v2592
  %v2594 = vmul.f32 1.0, %v2593
  %v2595 = vadd.f32 %v2585, %v2281
  %2597 = vrot.lane.b32.xlu0 %v2595, 112
  %v2598 = vpop.permute.xlu0 %2597
  %v2600 = vmul.f32 %v2594, %v2598
  %2602 = vrot.lane.b32.xlu0 %v2600, 16
  %v2603 = vpop.permute.xlu0 %2602
  %v2605 = vadd.f32 %v2171, %v2603
  %v2606 = vtanh.pop %v2605
  %v2607 = vsub.f32 1.0, %v2594
  %2609 = vrot.lane.b32.xlu0 %v2606, 120
  %v2610 = vpop.permute.xlu0 %2609
  %v2612 = vmul.f32 %v2607, %v2610
  %v2613 = vmul.f32 %v2594, %v2510
  %v2614 = vadd.f32 %v2612, %v2613
  %2616 = vrot.lane.b32.xlu0 %v2614, 120
  %v2617 = vpop.permute.xlu0 %2616
  %2619 = vst.msk [vmem:[#allocation2 + $0x18] sm:$0xff] %vm78, %v2617
  %v2620 = vsel %vm78, %v2617, 0
  %2622 = vmatprep.subr.mxu0 0.0
  %2623 = vmatpush1.msra.mxu0 %v2194
  %2624 = vmatprep.subr.mxu0 0.0
  %2625 = vmatpush1.msra.mxu0 0.0
  %2626 = vmatprep.subr.mxu0 0.0
  %2627 = vmatpush1.msra.mxu0 0.0
  %2628 = vmatprep.subr.mxu0 0.0
  %2629 = vmatpush1.msra.mxu0 0.0
  %2630 = vmatprep.subr.mxu0 0.0
  %2631 = vmatpush1.msra.mxu0 0.0
  %2632 = vmatprep.subr.mxu0 0.0
  %2633 = vmatpush1.msra.mxu0 0.0
  %2634 = vmatprep.subr.mxu0 0.0
  %2635 = vmatpush1.msra.mxu0 0.0
  %2636 = vmatprep.subr.mxu0 0.0
  %2637 = vmatpush1.msra.mxu0 0.0
  %2638 = vmatprep.subr.mxu0 0.0
  %2639 = vmatpush1.msra.mxu0 0.0
  %2640 = vmatprep.subr.mxu0 0.0
  %2641 = vmatpush1.msra.mxu0 0.0
  %2642 = vmatprep.subr.mxu0 0.0
  %2643 = vmatpush1.msra.mxu0 0.0
  %2644 = vmatprep.subr.mxu0 0.0
  %2645 = vmatpush1.msra.mxu0 0.0
  %2646 = vmatprep.subr.mxu0 0.0
  %2647 = vmatpush1.msra.mxu0 0.0
  %2648 = vmatprep.subr.mxu0 0.0
  %2649 = vmatpush1.msra.mxu0 0.0
  %2650 = vmatprep.subr.mxu0 0.0
  %2651 = vmatpush1.msra.mxu0 0.0
  %2652 = vmatprep.subr.mxu0 0.0
  %2653 = vmatpush1.msra.mxu0 0.0
  %2654 = vmatprep.subr.mxu0 0.0
  %2655 = vmatpush1.msra.mxu0 0.0
  %2656 = vmatprep.subr.mxu0 0.0
  %2657 = vmatpush1.msra.mxu0 0.0
  %2658 = vmatprep.subr.mxu0 0.0
  %2659 = vmatpush1.msra.mxu0 0.0
  %2660 = vmatprep.subr.mxu0 0.0
  %2661 = vmatpush1.msra.mxu0 0.0
  %2662 = vmatprep.subr.mxu0 0.0
  %2663 = vmatpush1.msra.mxu0 0.0
  %2664 = vmatprep.subr.mxu0 0.0
  %2665 = vmatpush1.msra.mxu0 0.0
  %2666 = vmatprep.subr.mxu0 0.0
  %2667 = vmatpush1.msra.mxu0 0.0
  %2668 = vmatprep.subr.mxu0 0.0
  %2669 = vmatpush1.msra.mxu0 0.0
  %2670 = vmatprep.subr.mxu0 0.0
  %2671 = vmatpush1.msra.mxu0 0.0
  %2672 = vmatprep.subr.mxu0 0.0
  %2673 = vmatpush1.msra.mxu0 0.0
  %2674 = vmatprep.subr.mxu0 0.0
  %2675 = vmatpush1.msra.mxu0 0.0
  %2676 = vmatprep.subr.mxu0 0.0
  %2677 = vmatpush1.msra.mxu0 0.0
  %2678 = vmatprep.subr.mxu0 0.0
  %2679 = vmatpush1.msra.mxu0 0.0
  %2680 = vmatprep.subr.mxu0 0.0
  %2681 = vmatpush1.msra.mxu0 0.0
  %2682 = vmatprep.subr.mxu0 0.0
  %2683 = vmatpush1.msra.mxu0 0.0
  %2684 = vmatprep.subr.mxu0 0.0
  %2685 = vmatpush1.msra.mxu0 0.0
  %2686 = vmatprep.mubr.f32.mxu0 0.0
  %2687 = vmatmul.mubr.f32.gmra.mrb[0].mxu0 %v2620
  %v2688 = vpop.f32.mrb[0].mxu0
  %v2689 = vadd.f32 0.0, %v2688
  %v2690 = vpop.f32.mrb[0].mxu0
  %2691 = vdwg.mxu0
  %v2692 = vadd.f32 %v2176, %v2689
  %v2693 = vxor.u32 %v2692, 2147483648
  %v2694 = vmul.f32 %v2693, 1.442695
  %v2695 = vpow.pop %v2694
  %v2696 = vadd.f32 %v2695, 1.0
  %v2697 = vrcp.pop %v2696
  %v2698 = vmul.f32 1.0, %v2697
  %v2699 = vadd.f32 %v2689, %v2281
  %2701 = vrot.lane.b32.xlu0 %v2699, 112
  %v2702 = vpop.permute.xlu0 %2701
  %v2704 = vmul.f32 %v2698, %v2702
  %2706 = vrot.lane.b32.xlu0 %v2704, 16
  %v2707 = vpop.permute.xlu0 %2706
  %v2709 = vadd.f32 %v2176, %v2707
  %v2710 = vtanh.pop %v2709
  %v2711 = vsub.f32 1.0, %v2698
  %2713 = vrot.lane.b32.xlu0 %v2710, 120
  %v2714 = vpop.permute.xlu0 %2713
  %v2716 = vmul.f32 %v2711, %v2714
  %v2717 = vmul.f32 %v2698, %v2614
  %v2718 = vadd.f32 %v2716, %v2717
  %2720 = vrot.lane.b32.xlu0 %v2718, 120
  %v2721 = vpop.permute.xlu0 %2720
  %2723 = vst.msk [vmem:[#allocation2 + $0x20] sm:$0xff] %vm78, %v2721
  %v2724 = vsel %vm78, %v2721, 0
  %2726 = vmatprep.subr.mxu0 0.0
  %2727 = vmatpush1.msra.mxu0 %v2194
  %2728 = vmatprep.subr.mxu0 0.0
  %2729 = vmatpush1.msra.mxu0 0.0
  %2730 = vmatprep.subr.mxu0 0.0
  %2731 = vmatpush1.msra.mxu0 0.0
  %2732 = vmatprep.subr.mxu0 0.0
  %2733 = vmatpush1.msra.mxu0 0.0
  %2734 = vmatprep.subr.mxu0 0.0
  %2735 = vmatpush1.msra.mxu0 0.0
  %2736 = vmatprep.subr.mxu0 0.0
  %2737 = vmatpush1.msra.mxu0 0.0
  %2738 = vmatprep.subr.mxu0 0.0
  %2739 = vmatpush1.msra.mxu0 0.0
  %2740 = vmatprep.subr.mxu0 0.0
  %2741 = vmatpush1.msra.mxu0 0.0
  %2742 = vmatprep.subr.mxu0 0.0
  %2743 = vmatpush1.msra.mxu0 0.0
  %2744 = vmatprep.subr.mxu0 0.0
  %2745 = vmatpush1.msra.mxu0 0.0
  %2746 = vmatprep.subr.mxu0 0.0
  %2747 = vmatpush1.msra.mxu0 0.0
  %2748 = vmatprep.subr.mxu0 0.0
  %2749 = vmatpush1.msra.mxu0 0.0
  %2750 = vmatprep.subr.mxu0 0.0
  %2751 = vmatpush1.msra.mxu0 0.0
  %2752 = vmatprep.subr.mxu0 0.0
  %2753 = vmatpush1.msra.mxu0 0.0
  %2754 = vmatprep.subr.mxu0 0.0
  %2755 = vmatpush1.msra.mxu0 0.0
  %2756 = vmatprep.subr.mxu0 0.0
  %2757 = vmatpush1.msra.mxu0 0.0
  %2758 = vmatprep.subr.mxu0 0.0
  %2759 = vmatpush1.msra.mxu0 0.0
  %2760 = vmatprep.subr.mxu0 0.0
  %2761 = vmatpush1.msra.mxu0 0.0
  %2762 = vmatprep.subr.mxu0 0.0
  %2763 = vmatpush1.msra.mxu0 0.0
  %2764 = vmatprep.subr.mxu0 0.0
  %2765 = vmatpush1.msra.mxu0 0.0
  %2766 = vmatprep.subr.mxu0 0.0
  %2767 = vmatpush1.msra.mxu0 0.0
  %2768 = vmatprep.subr.mxu0 0.0
  %2769 = vmatpush1.msra.mxu0 0.0
  %2770 = vmatprep.subr.mxu0 0.0
  %2771 = vmatpush1.msra.mxu0 0.0
  %2772 = vmatprep.subr.mxu0 0.0
  %2773 = vmatpush1.msra.mxu0 0.0
  %2774 = vmatprep.subr.mxu0 0.0
  %2775 = vmatpush1.msra.mxu0 0.0
  %2776 = vmatprep.subr.mxu0 0.0
  %2777 = vmatpush1.msra.mxu0 0.0
  %2778 = vmatprep.subr.mxu0 0.0
  %2779 = vmatpush1.msra.mxu0 0.0
  %2780 = vmatprep.subr.mxu0 0.0
  %2781 = vmatpush1.msra.mxu0 0.0
  %2782 = vmatprep.subr.mxu0 0.0
  %2783 = vmatpush1.msra.mxu0 0.0
  %2784 = vmatprep.subr.mxu0 0.0
  %2785 = vmatpush1.msra.mxu0 0.0
  %2786 = vmatprep.subr.mxu0 0.0
  %2787 = vmatpush1.msra.mxu0 0.0
  %2788 = vmatprep.subr.mxu0 0.0
  %2789 = vmatpush1.msra.mxu0 0.0
  %2790 = vmatprep.mubr.f32.mxu0 0.0
  %2791 = vmatmul.mubr.f32.gmra.mrb[0].mxu0 %v2724
  %v2792 = vpop.f32.mrb[0].mxu0
  %v2793 = vadd.f32 0.0, %v2792
  %v2794 = vpop.f32.mrb[0].mxu0
  %2795 = vdwg.mxu0
  %v2796 = vadd.f32 %v2181, %v2793
  %v2797 = vxor.u32 %v2796, 2147483648
  %v2798 = vmul.f32 %v2797, 1.442695
  %v2799 = vpow.pop %v2798
  %v2800 = vadd.f32 %v2799, 1.0
  %v2801 = vrcp.pop %v2800
  %v2802 = vmul.f32 1.0, %v2801
  %v2803 = vadd.f32 %v2793, %v2281
  %2805 = vrot.lane.b32.xlu0 %v2803, 112
  %v2806 = vpop.permute.xlu0 %2805
  %v2808 = vmul.f32 %v2802, %v2806
  %2810 = vrot.lane.b32.xlu0 %v2808, 16
  %v2811 = vpop.permute.xlu0 %2810
  %v2813 = vadd.f32 %v2181, %v2811
  %v2814 = vtanh.pop %v2813
  %v2815 = vsub.f32 1.0, %v2802
  %2817 = vrot.lane.b32.xlu0 %v2814, 120
  %v2818 = vpop.permute.xlu0 %2817
  %v2820 = vmul.f32 %v2815, %v2818
  %v2821 = vmul.f32 %v2802, %v2718
  %v2822 = vadd.f32 %v2820, %v2821
  %2824 = vrot.lane.b32.xlu0 %v2822, 120
  %v2825 = vpop.permute.xlu0 %2824
  %2827 = vst.msk [vmem:[#allocation2 + $0x28] sm:$0xff] %vm78, %v2825
  %v2828 = vsel %vm78, %v2825, 0
  %2830 = vmatprep.subr.mxu0 0.0
  %2831 = vmatpush1.msra.mxu0 %v2194
  %2832 = vmatprep.subr.mxu0 0.0
  %2833 = vmatpush1.msra.mxu0 0.0
  %2834 = vmatprep.subr.mxu0 0.0
  %2835 = vmatpush1.msra.mxu0 0.0
  %2836 = vmatprep.subr.mxu0 0.0
  %2837 = vmatpush1.msra.mxu0 0.0
  %2838 = vmatprep.subr.mxu0 0.0
  %2839 = vmatpush1.msra.mxu0 0.0
  %2840 = vmatprep.subr.mxu0 0.0
  %2841 = vmatpush1.msra.mxu0 0.0
  %2842 = vmatprep.subr.mxu0 0.0
  %2843 = vmatpush1.msra.mxu0 0.0
  %2844 = vmatprep.subr.mxu0 0.0
  %2845 = vmatpush1.msra.mxu0 0.0
  %2846 = vmatprep.subr.mxu0 0.0
  %2847 = vmatpush1.msra.mxu0 0.0
  %2848 = vmatprep.subr.mxu0 0.0
  %2849 = vmatpush1.msra.mxu0 0.0
  %2850 = vmatprep.subr.mxu0 0.0
  %2851 = vmatpush1.msra.mxu0 0.0
  %2852 = vmatprep.subr.mxu0 0.0
  %2853 = vmatpush1.msra.mxu0 0.0
  %2854 = vmatprep.subr.mxu0 0.0
  %2855 = vmatpush1.msra.mxu0 0.0
  %2856 = vmatprep.subr.mxu0 0.0
  %2857 = vmatpush1.msra.mxu0 0.0
  %2858 = vmatprep.subr.mxu0 0.0
  %2859 = vmatpush1.msra.mxu0 0.0
  %2860 = vmatprep.subr.mxu0 0.0
  %2861 = vmatpush1.msra.mxu0 0.0
  %2862 = vmatprep.subr.mxu0 0.0
  %2863 = vmatpush1.msra.mxu0 0.0
  %2864 = vmatprep.subr.mxu0 0.0
  %2865 = vmatpush1.msra.mxu0 0.0
  %2866 = vmatprep.subr.mxu0 0.0
  %2867 = vmatpush1.msra.mxu0 0.0
  %2868 = vmatprep.subr.mxu0 0.0
  %2869 = vmatpush1.msra.mxu0 0.0
  %2870 = vmatprep.subr.mxu0 0.0
  %2871 = vmatpush1.msra.mxu0 0.0
  %2872 = vmatprep.subr.mxu0 0.0
  %2873 = vmatpush1.msra.mxu0 0.0
  %2874 = vmatprep.subr.mxu0 0.0
  %2875 = vmatpush1.msra.mxu0 0.0
  %2876 = vmatprep.subr.mxu0 0.0
  %2877 = vmatpush1.msra.mxu0 0.0
  %2878 = vmatprep.subr.mxu0 0.0
  %2879 = vmatpush1.msra.mxu0 0.0
  %2880 = vmatprep.subr.mxu0 0.0
  %2881 = vmatpush1.msra.mxu0 0.0
  %2882 = vmatprep.subr.mxu0 0.0
  %2883 = vmatpush1.msra.mxu0 0.0
  %2884 = vmatprep.subr.mxu0 0.0
  %2885 = vmatpush1.msra.mxu0 0.0
  %2886 = vmatprep.subr.mxu0 0.0
  %2887 = vmatpush1.msra.mxu0 0.0
  %2888 = vmatprep.subr.mxu0 0.0
  %2889 = vmatpush1.msra.mxu0 0.0
  %2890 = vmatprep.subr.mxu0 0.0
  %2891 = vmatpush1.msra.mxu0 0.0
  %2892 = vmatprep.subr.mxu0 0.0
  %2893 = vmatpush1.msra.mxu0 0.0
  %2894 = vmatprep.mubr.f32.mxu0 0.0
  %2895 = vmatmul.mubr.f32.gmra.mrb[0].mxu0 %v2828
  %v2896 = vpop.f32.mrb[0].mxu0
  %v2897 = vadd.f32 0.0, %v2896
  %v2898 = vpop.f32.mrb[0].mxu0
  %2899 = vdwg.mxu0
  %v2900 = vadd.f32 %v2186, %v2897
  %v2901 = vxor.u32 %v2900, 2147483648
  %v2902 = vmul.f32 %v2901, 1.442695
  %v2903 = vpow.pop %v2902
  %v2904 = vadd.f32 %v2903, 1.0
  %v2905 = vrcp.pop %v2904
  %v2906 = vmul.f32 1.0, %v2905
  %v2907 = vadd.f32 %v2897, %v2281
  %2909 = vrot.lane.b32.xlu0 %v2907, 112
  %v2910 = vpop.permute.xlu0 %2909
  %v2912 = vmul.f32 %v2906, %v2910
  %2914 = vrot.lane.b32.xlu0 %v2912, 16
  %v2915 = vpop.permute.xlu0 %2914
  %v2917 = vadd.f32 %v2186, %v2915
  %v2918 = vtanh.pop %v2917
  %v2919 = vsub.f32 1.0, %v2906
  %2921 = vrot.lane.b32.xlu0 %v2918, 120
  %v2922 = vpop.permute.xlu0 %2921
  %v2924 = vmul.f32 %v2919, %v2922
  %v2925 = vmul.f32 %v2906, %v2822
  %v2926 = vadd.f32 %v2924, %v2925
  %2928 = vrot.lane.b32.xlu0 %v2926, 120
  %v2929 = vpop.permute.xlu0 %2928
  %2931 = vst.msk [vmem:[#allocation2 + $0x30] sm:$0xff] %vm78, %v2929
  %v2932 = vsel %vm78, %v2929, 0
  %2934 = vmatprep.subr.mxu0 0.0
  %2935 = vmatpush1.msra.mxu0 %v2194
  %2936 = vmatprep.subr.mxu0 0.0
  %2937 = vmatpush1.msra.mxu0 0.0
  %2938 = vmatprep.subr.mxu0 0.0
  %2939 = vmatpush1.msra.mxu0 0.0
  %2940 = vmatprep.subr.mxu0 0.0
  %2941 = vmatpush1.msra.mxu0 0.0
  %2942 = vmatprep.subr.mxu0 0.0
  %2943 = vmatpush1.msra.mxu0 0.0
  %2944 = vmatprep.subr.mxu0 0.0
  %2945 = vmatpush1.msra.mxu0 0.0
  %2946 = vmatprep.subr.mxu0 0.0
  %2947 = vmatpush1.msra.mxu0 0.0
  %2948 = vmatprep.subr.mxu0 0.0
  %2949 = vmatpush1.msra.mxu0 0.0
  %2950 = vmatprep.subr.mxu0 0.0
  %2951 = vmatpush1.msra.mxu0 0.0
  %2952 = vmatprep.subr.mxu0 0.0
  %2953 = vmatpush1.msra.mxu0 0.0
  %2954 = vmatprep.subr.mxu0 0.0
  %2955 = vmatpush1.msra.mxu0 0.0
  %2956 = vmatprep.subr.mxu0 0.0
  %2957 = vmatpush1.msra.mxu0 0.0
  %2958 = vmatprep.subr.mxu0 0.0
  %2959 = vmatpush1.msra.mxu0 0.0
  %2960 = vmatprep.subr.mxu0 0.0
  %2961 = vmatpush1.msra.mxu0 0.0
  %2962 = vmatprep.subr.mxu0 0.0
  %2963 = vmatpush1.msra.mxu0 0.0
  %2964 = vmatprep.subr.mxu0 0.0
  %2965 = vmatpush1.msra.mxu0 0.0
  %2966 = vmatprep.subr.mxu0 0.0
  %2967 = vmatpush1.msra.mxu0 0.0
  %2968 = vmatprep.subr.mxu0 0.0
  %2969 = vmatpush1.msra.mxu0 0.0
  %2970 = vmatprep.subr.mxu0 0.0
  %2971 = vmatpush1.msra.mxu0 0.0
  %2972 = vmatprep.subr.mxu0 0.0
  %2973 = vmatpush1.msra.mxu0 0.0
  %2974 = vmatprep.subr.mxu0 0.0
  %2975 = vmatpush1.msra.mxu0 0.0
  %2976 = vmatprep.subr.mxu0 0.0
  %2977 = vmatpush1.msra.mxu0 0.0
  %2978 = vmatprep.subr.mxu0 0.0
  %2979 = vmatpush1.msra.mxu0 0.0
  %2980 = vmatprep.subr.mxu0 0.0
  %2981 = vmatpush1.msra.mxu0 0.0
  %2982 = vmatprep.subr.mxu0 0.0
  %2983 = vmatpush1.msra.mxu0 0.0
  %2984 = vmatprep.subr.mxu0 0.0
  %2985 = vmatpush1.msra.mxu0 0.0
  %2986 = vmatprep.subr.mxu0 0.0
  %2987 = vmatpush1.msra.mxu0 0.0
  %2988 = vmatprep.subr.mxu0 0.0
  %2989 = vmatpush1.msra.mxu0 0.0
  %2990 = vmatprep.subr.mxu0 0.0
  %2991 = vmatpush1.msra.mxu0 0.0
  %2992 = vmatprep.subr.mxu0 0.0
  %2993 = vmatpush1.msra.mxu0 0.0
  %2994 = vmatprep.subr.mxu0 0.0
  %2995 = vmatpush1.msra.mxu0 0.0
  %2996 = vmatprep.subr.mxu0 0.0
  %2997 = vmatpush1.msra.mxu0 0.0
  %2998 = vmatprep.mubr.f32.mxu0 0.0
  %2999 = vmatmul.mubr.f32.gmra.mrb[0].mxu0 %v2932
  %v3000 = vpop.f32.mrb[0].mxu0
  %v3001 = vadd.f32 0.0, %v3000
  %v3002 = vpop.f32.mrb[0].mxu0
  %3003 = vdwg.mxu0
  %v3004 = vadd.f32 %v2191, %v3001
  %v3005 = vxor.u32 %v3004, 2147483648
  %v3006 = vmul.f32 %v3005, 1.442695
  %v3007 = vpow.pop %v3006
  %v3008 = vadd.f32 %v3007, 1.0
  %v3009 = vrcp.pop %v3008
  %v3010 = vmul.f32 1.0, %v3009
  %v3011 = vadd.f32 %v3001, %v2281
  %3013 = vrot.lane.b32.xlu0 %v3011, 112
  %v3014 = vpop.permute.xlu0 %3013
  %v3016 = vmul.f32 %v3010, %v3014
  %3018 = vrot.lane.b32.xlu0 %v3016, 16
  %v3019 = vpop.permute.xlu0 %3018
  %v3021 = vadd.f32 %v2191, %v3019
  %v3022 = vtanh.pop %v3021
  %v3023 = vsub.f32 1.0, %v3010
  %3025 = vrot.lane.b32.xlu0 %v3022, 120
  %v3026 = vpop.permute.xlu0 %3025
  %v3028 = vmul.f32 %v3023, %v3026
  %v3029 = vmul.f32 %v3010, %v2926
  %v3030 = vadd.f32 %v3028, %v3029
  %3032 = vrot.lane.b32.xlu0 %v3030, 120
  %v3033 = vpop.permute.xlu0 %3032
  %3035 = vst.msk [vmem:[#allocation2 + $0x38] sm:$0xff] %vm78, %v3033
  %v3036 = vld [vmem:[#allocation2] sm:$0xff]
  %v3037 = vld [vmem:[#allocation2 + $0x8] sm:$0xff]
  %v3038 = vld [vmem:[#allocation2 + $0x10] sm:$0xff]
  %v3039 = vld [vmem:[#allocation2 + $0x18] sm:$0xff]
  %v3040 = vld [vmem:[#allocation2 + $0x20] sm:$0xff]
  %v3041 = vld [vmem:[#allocation2 + $0x28] sm:$0xff]
  %v3042 = vld [vmem:[#allocation2 + $0x30] sm:$0xff]
  %v3043 = vld [vmem:[#allocation2 + $0x38] sm:$0xff]
  %v3044 = vld [vmem:[%s13] sm:$0xff]
  %v3045 = vld [vmem:[%s15] sm:$0x1]
  %v3047 = vlaneseq
  %v3048 = vshrl.u32 %v3047, 7
  %v3049 = vsub.s32 0, %v3048
  %v3050 = vrot.slane %v3045, %v3049
  %v3053 = vsel %vm78, %v3036, 0
  %v3056 = vsel %vm78, %v3037, 0
  %v3059 = vsel %vm78, %v3038, 0
  %v3062 = vsel %vm78, %v3039, 0
  %v3065 = vsel %vm78, %v3040, 0
  %v3068 = vsel %vm78, %v3041, 0
  %v3071 = vsel %vm78, %v3042, 0
  %v3074 = vsel %vm78, %v3043, 0
  %3076 = vmatprep.subr.mxu0 0.0
  %3077 = vmatpush1.msra.mxu0 %v3044
  %3078 = vmatprep.subr.mxu0 0.0
  %3079 = vmatpush1.msra.mxu0 0.0
  %3080 = vmatprep.subr.mxu0 0.0
  %3081 = vmatpush1.msra.mxu0 0.0
  %3082 = vmatprep.subr.mxu0 0.0
  %3083 = vmatpush1.msra.mxu0 0.0
  %3084 = vmatprep.subr.mxu0 0.0
  %3085 = vmatpush1.msra.mxu0 0.0
  %3086 = vmatprep.subr.mxu0 0.0
  %3087 = vmatpush1.msra.mxu0 0.0
  %3088 = vmatprep.subr.mxu0 0.0
  %3089 = vmatpush1.msra.mxu0 0.0
  %3090 = vmatprep.subr.mxu0 0.0
  %3091 = vmatpush1.msra.mxu0 0.0
  %3092 = vmatprep.subr.mxu0 0.0
  %3093 = vmatpush1.msra.mxu0 0.0
  %3094 = vmatprep.subr.mxu0 0.0
  %3095 = vmatpush1.msra.mxu0 0.0
  %3096 = vmatprep.subr.mxu0 0.0
  %3097 = vmatpush1.msra.mxu0 0.0
  %3098 = vmatprep.subr.mxu0 0.0
  %3099 = vmatpush1.msra.mxu0 0.0
  %3100 = vmatprep.subr.mxu0 0.0
  %3101 = vmatpush1.msra.mxu0 0.0
  %3102 = vmatprep.subr.mxu0 0.0
  %3103 = vmatpush1.msra.mxu0 0.0
  %3104 = vmatprep.subr.mxu0 0.0
  %3105 = vmatpush1.msra.mxu0 0.0
  %3106 = vmatprep.subr.mxu0 0.0
  %3107 = vmatpush1.msra.mxu0 0.0
  %3108 = vmatprep.subr.mxu0 0.0
  %3109 = vmatpush1.msra.mxu0 0.0
  %3110 = vmatprep.subr.mxu0 0.0
  %3111 = vmatpush1.msra.mxu0 0.0
  %3112 = vmatprep.subr.mxu0 0.0
  %3113 = vmatpush1.msra.mxu0 0.0
  %3114 = vmatprep.subr.mxu0 0.0
  %3115 = vmatpush1.msra.mxu0 0.0
  %3116 = vmatprep.subr.mxu0 0.0
  %3117 = vmatpush1.msra.mxu0 0.0
  %3118 = vmatprep.subr.mxu0 0.0
  %3119 = vmatpush1.msra.mxu0 0.0
  %3120 = vmatprep.subr.mxu0 0.0
  %3121 = vmatpush1.msra.mxu0 0.0
  %3122 = vmatprep.subr.mxu0 0.0
  %3123 = vmatpush1.msra.mxu0 0.0
  %3124 = vmatprep.subr.mxu0 0.0
  %3125 = vmatpush1.msra.mxu0 0.0
  %3126 = vmatprep.subr.mxu0 0.0
  %3127 = vmatpush1.msra.mxu0 0.0
  %3128 = vmatprep.subr.mxu0 0.0
  %3129 = vmatpush1.msra.mxu0 0.0
  %3130 = vmatprep.subr.mxu0 0.0
  %3131 = vmatpush1.msra.mxu0 0.0
  %3132 = vmatprep.subr.mxu0 0.0
  %3133 = vmatpush1.msra.mxu0 0.0
  %3134 = vmatprep.subr.mxu0 0.0
  %3135 = vmatpush1.msra.mxu0 0.0
  %3136 = vmatprep.subr.mxu0 0.0
  %3137 = vmatpush1.msra.mxu0 0.0
  %3138 = vmatprep.subr.mxu0 0.0
  %3139 = vmatpush1.msra.mxu0 0.0
  %3140 = vmatprep.mubr.f32.mxu0 0.0
  %3141 = vmatmul.mubr.f32.gmra.mrb[0].mxu0 %v3053
  %v3142 = vpop.f32.mrb[0].mxu0
  %v3143 = vadd.f32 %v3050, %v3142
  %v3144 = vpop.f32.mrb[0].mxu0
  %3145 = vmatprep.mubr.f32.mxu0 0.0
  %3146 = vmatmul.mubr.f32.gmra.mrb[0].mxu0 %v3056
  %v3147 = vpop.f32.mrb[0].mxu0
  %v3148 = vadd.f32 %v3050, %v3147
  %v3149 = vpop.f32.mrb[0].mxu0
  %3150 = vmatprep.mubr.f32.mxu0 0.0
  %3151 = vmatmul.mubr.f32.gmra.mrb[0].mxu0 %v3059
  %v3152 = vpop.f32.mrb[0].mxu0
  %v3153 = vadd.f32 %v3050, %v3152
  %v3154 = vpop.f32.mrb[0].mxu0
  %3155 = vmatprep.mubr.f32.mxu0 0.0
  %3156 = vmatmul.mubr.f32.gmra.mrb[0].mxu0 %v3062
  %v3157 = vpop.f32.mrb[0].mxu0
  %v3158 = vadd.f32 %v3050, %v3157
  %v3159 = vpop.f32.mrb[0].mxu0
  %3160 = vmatprep.mubr.f32.mxu0 0.0
  %3161 = vmatmul.mubr.f32.gmra.mrb[0].mxu0 %v3065
  %v3162 = vpop.f32.mrb[0].mxu0
  %v3163 = vadd.f32 %v3050, %v3162
  %v3164 = vpop.f32.mrb[0].mxu0
  %3165 = vmatprep.mubr.f32.mxu0 0.0
  %3166 = vmatmul.mubr.f32.gmra.mrb[0].mxu0 %v3068
  %v3167 = vpop.f32.mrb[0].mxu0
  %v3168 = vadd.f32 %v3050, %v3167
  %v3169 = vpop.f32.mrb[0].mxu0
  %3170 = vmatprep.mubr.f32.mxu0 0.0
  %3171 = vmatmul.mubr.f32.gmra.mrb[0].mxu0 %v3071
  %v3172 = vpop.f32.mrb[0].mxu0
  %v3173 = vadd.f32 %v3050, %v3172
  %v3174 = vpop.f32.mrb[0].mxu0
  %3175 = vmatprep.mubr.f32.mxu0 0.0
  %3176 = vmatmul.mubr.f32.gmra.mrb[0].mxu0 %v3074
  %v3177 = vpop.f32.mrb[0].mxu0
  %v3178 = vadd.f32 %v3050, %v3177
  %v3179 = vpop.f32.mrb[0].mxu0
  %3180 = vdwg.mxu0
  %v3181 = vld [vmem:[%s14] sm:$0xff]
  %v3182 = vld [vmem:[%s16] sm:$0x1]
  %v3184 = vlaneseq
  %v3185 = vshrl.u32 %v3184, 7
  %v3186 = vsub.s32 0, %v3185
  %v3187 = vrot.slane %v3182, %v3186
  %3188 = vmatprep.subr.mxu0 0.0
  %3189 = vmatpush1.msra.mxu0 %v3181
  %3190 = vmatprep.subr.mxu0 0.0
  %3191 = vmatpush1.msra.mxu0 0.0
  %3192 = vmatprep.subr.mxu0 0.0
  %3193 = vmatpush1.msra.mxu0 0.0
  %3194 = vmatprep.subr.mxu0 0.0
  %3195 = vmatpush1.msra.mxu0 0.0
  %3196 = vmatprep.subr.mxu0 0.0
  %3197 = vmatpush1.msra.mxu0 0.0
  %3198 = vmatprep.subr.mxu0 0.0
  %3199 = vmatpush1.msra.mxu0 0.0
  %3200 = vmatprep.subr.mxu0 0.0
  %3201 = vmatpush1.msra.mxu0 0.0
  %3202 = vmatprep.subr.mxu0 0.0
  %3203 = vmatpush1.msra.mxu0 0.0
  %3204 = vmatprep.subr.mxu0 0.0
  %3205 = vmatpush1.msra.mxu0 0.0
  %3206 = vmatprep.subr.mxu0 0.0
  %3207 = vmatpush1.msra.mxu0 0.0
  %3208 = vmatprep.subr.mxu0 0.0
  %3209 = vmatpush1.msra.mxu0 0.0
  %3210 = vmatprep.subr.mxu0 0.0
  %3211 = vmatpush1.msra.mxu0 0.0
  %3212 = vmatprep.subr.mxu0 0.0
  %3213 = vmatpush1.msra.mxu0 0.0
  %3214 = vmatprep.subr.mxu0 0.0
  %3215 = vmatpush1.msra.mxu0 0.0
  %3216 = vmatprep.subr.mxu0 0.0
  %3217 = vmatpush1.msra.mxu0 0.0
  %3218 = vmatprep.subr.mxu0 0.0
  %3219 = vmatpush1.msra.mxu0 0.0
  %3220 = vmatprep.subr.mxu0 0.0
  %3221 = vmatpush1.msra.mxu0 0.0
  %3222 = vmatprep.subr.mxu0 0.0
  %3223 = vmatpush1.msra.mxu0 0.0
  %3224 = vmatprep.subr.mxu0 0.0
  %3225 = vmatpush1.msra.mxu0 0.0
  %3226 = vmatprep.subr.mxu0 0.0
  %3227 = vmatpush1.msra.mxu0 0.0
  %3228 = vmatprep.subr.mxu0 0.0
  %3229 = vmatpush1.msra.mxu0 0.0
  %3230 = vmatprep.subr.mxu0 0.0
  %3231 = vmatpush1.msra.mxu0 0.0
  %3232 = vmatprep.subr.mxu0 0.0
  %3233 = vmatpush1.msra.mxu0 0.0
  %3234 = vmatprep.subr.mxu0 0.0
  %3235 = vmatpush1.msra.mxu0 0.0
  %3236 = vmatprep.subr.mxu0 0.0
  %3237 = vmatpush1.msra.mxu0 0.0
  %3238 = vmatprep.subr.mxu0 0.0
  %3239 = vmatpush1.msra.mxu0 0.0
  %3240 = vmatprep.subr.mxu0 0.0
  %3241 = vmatpush1.msra.mxu0 0.0
  %3242 = vmatprep.subr.mxu0 0.0
  %3243 = vmatpush1.msra.mxu0 0.0
  %3244 = vmatprep.subr.mxu0 0.0
  %3245 = vmatpush1.msra.mxu0 0.0
  %3246 = vmatprep.subr.mxu0 0.0
  %3247 = vmatpush1.msra.mxu0 0.0
  %3248 = vmatprep.subr.mxu0 0.0
  %3249 = vmatpush1.msra.mxu0 0.0
  %3250 = vmatprep.subr.mxu0 0.0
  %3251 = vmatpush1.msra.mxu0 0.0
  %3252 = vmatprep.mubr.f32.mxu0 0.0
  %3253 = vmatmul.mubr.f32.gmra.mrb[0].mxu0 %v2201
  %v3254 = vpop.f32.mrb[0].mxu0
  %v3255 = vadd.f32 0.0, %v3254
  %v3256 = vpop.f32.mrb[0].mxu0
  %3257 = vdwg.mxu0
  %v3258 = vadd.f32 %v3143, %v3255
  %v3259 = vxor.u32 %v3258, 2147483648
  %v3260 = vmul.f32 %v3259, 1.442695
  %v3261 = vpow.pop %v3260
  %v3262 = vadd.f32 %v3261, 1.0
  %v3263 = vrcp.pop %v3262
  %v3264 = vmul.f32 1.0, %v3263
  %3265 = vrot.lane.b32.xlu0 %v3187, 16
  %v3266 = vpop.permute.xlu0 %3265
  %v3268 = vadd.f32 %v3255, %v3266
  %3270 = vrot.lane.b32.xlu0 %v3268, 112
  %v3271 = vpop.permute.xlu0 %3270
  %v3273 = vmul.f32 %v3264, %v3271
  %3275 = vrot.lane.b32.xlu0 %v3273, 16
  %v3276 = vpop.permute.xlu0 %3275
  %v3278 = vadd.f32 %v3143, %v3276
  %v3279 = vtanh.pop %v3278
  %v3280 = vsub.f32 1.0, %v3264
  %3282 = vrot.lane.b32.xlu0 %v3279, 120
  %v3283 = vpop.permute.xlu0 %3282
  %v3285 = vmul.f32 %v3280, %v3283
  %v3286 = vmul.f32 %v3264, 0.0
  %v3287 = vadd.f32 %v3285, %v3286
  %3289 = vrot.lane.b32.xlu0 %v3287, 120
  %v3290 = vpop.permute.xlu0 %3289
  %3292 = vst.msk [vmem:[#allocation2] sm:$0xff] %vm78, %v3290
  %v3293 = vsel %vm78, %v3290, 0
  %3295 = vmatprep.subr.mxu0 0.0
  %3296 = vmatpush1.msra.mxu0 %v3181
  %3297 = vmatprep.subr.mxu0 0.0
  %3298 = vmatpush1.msra.mxu0 0.0
  %3299 = vmatprep.subr.mxu0 0.0
  %3300 = vmatpush1.msra.mxu0 0.0
  %3301 = vmatprep.subr.mxu0 0.0
  %3302 = vmatpush1.msra.mxu0 0.0
  %3303 = vmatprep.subr.mxu0 0.0
  %3304 = vmatpush1.msra.mxu0 0.0
  %3305 = vmatprep.subr.mxu0 0.0
  %3306 = vmatpush1.msra.mxu0 0.0
  %3307 = vmatprep.subr.mxu0 0.0
  %3308 = vmatpush1.msra.mxu0 0.0
  %3309 = vmatprep.subr.mxu0 0.0
  %3310 = vmatpush1.msra.mxu0 0.0
  %3311 = vmatprep.subr.mxu0 0.0
  %3312 = vmatpush1.msra.mxu0 0.0
  %3313 = vmatprep.subr.mxu0 0.0
  %3314 = vmatpush1.msra.mxu0 0.0
  %3315 = vmatprep.subr.mxu0 0.0
  %3316 = vmatpush1.msra.mxu0 0.0
  %3317 = vmatprep.subr.mxu0 0.0
  %3318 = vmatpush1.msra.mxu0 0.0
  %3319 = vmatprep.subr.mxu0 0.0
  %3320 = vmatpush1.msra.mxu0 0.0
  %3321 = vmatprep.subr.mxu0 0.0
  %3322 = vmatpush1.msra.mxu0 0.0
  %3323 = vmatprep.subr.mxu0 0.0
  %3324 = vmatpush1.msra.mxu0 0.0
  %3325 = vmatprep.subr.mxu0 0.0
  %3326 = vmatpush1.msra.mxu0 0.0
  %3327 = vmatprep.subr.mxu0 0.0
  %3328 = vmatpush1.msra.mxu0 0.0
  %3329 = vmatprep.subr.mxu0 0.0
  %3330 = vmatpush1.msra.mxu0 0.0
  %3331 = vmatprep.subr.mxu0 0.0
  %3332 = vmatpush1.msra.mxu0 0.0
  %3333 = vmatprep.subr.mxu0 0.0
  %3334 = vmatpush1.msra.mxu0 0.0
  %3335 = vmatprep.subr.mxu0 0.0
  %3336 = vmatpush1.msra.mxu0 0.0
  %3337 = vmatprep.subr.mxu0 0.0
  %3338 = vmatpush1.msra.mxu0 0.0
  %3339 = vmatprep.subr.mxu0 0.0
  %3340 = vmatpush1.msra.mxu0 0.0
  %3341 = vmatprep.subr.mxu0 0.0
  %3342 = vmatpush1.msra.mxu0 0.0
  %3343 = vmatprep.subr.mxu0 0.0
  %3344 = vmatpush1.msra.mxu0 0.0
  %3345 = vmatprep.subr.mxu0 0.0
  %3346 = vmatpush1.msra.mxu0 0.0
  %3347 = vmatprep.subr.mxu0 0.0
  %3348 = vmatpush1.msra.mxu0 0.0
  %3349 = vmatprep.subr.mxu0 0.0
  %3350 = vmatpush1.msra.mxu0 0.0
  %3351 = vmatprep.subr.mxu0 0.0
  %3352 = vmatpush1.msra.mxu0 0.0
  %3353 = vmatprep.subr.mxu0 0.0
  %3354 = vmatpush1.msra.mxu0 0.0
  %3355 = vmatprep.subr.mxu0 0.0
  %3356 = vmatpush1.msra.mxu0 0.0
  %3357 = vmatprep.subr.mxu0 0.0
  %3358 = vmatpush1.msra.mxu0 0.0
  %3359 = vmatprep.mubr.f32.mxu0 0.0
  %3360 = vmatmul.mubr.f32.gmra.mrb[0].mxu0 %v3293
  %v3361 = vpop.f32.mrb[0].mxu0
  %v3362 = vadd.f32 0.0, %v3361
  %v3363 = vpop.f32.mrb[0].mxu0
  %3364 = vdwg.mxu0
  %v3365 = vadd.f32 %v3148, %v3362
  %v3366 = vxor.u32 %v3365, 2147483648
  %v3367 = vmul.f32 %v3366, 1.442695
  %v3368 = vpow.pop %v3367
  %v3369 = vadd.f32 %v3368, 1.0
  %v3370 = vrcp.pop %v3369
  %v3371 = vmul.f32 1.0, %v3370
  %v3372 = vadd.f32 %v3362, %v3266
  %3374 = vrot.lane.b32.xlu0 %v3372, 112
  %v3375 = vpop.permute.xlu0 %3374
  %v3377 = vmul.f32 %v3371, %v3375
  %3379 = vrot.lane.b32.xlu0 %v3377, 16
  %v3380 = vpop.permute.xlu0 %3379
  %v3382 = vadd.f32 %v3148, %v3380
  %v3383 = vtanh.pop %v3382
  %v3384 = vsub.f32 1.0, %v3371
  %3386 = vrot.lane.b32.xlu0 %v3383, 120
  %v3387 = vpop.permute.xlu0 %3386
  %v3389 = vmul.f32 %v3384, %v3387
  %v3390 = vmul.f32 %v3371, %v3287
  %v3391 = vadd.f32 %v3389, %v3390
  %3393 = vrot.lane.b32.xlu0 %v3391, 120
  %v3394 = vpop.permute.xlu0 %3393
  %3396 = vst.msk [vmem:[#allocation2 + $0x8] sm:$0xff] %vm78, %v3394
  %v3397 = vsel %vm78, %v3394, 0
  %3399 = vmatprep.subr.mxu0 0.0
  %3400 = vmatpush1.msra.mxu0 %v3181
  %3401 = vmatprep.subr.mxu0 0.0
  %3402 = vmatpush1.msra.mxu0 0.0
  %3403 = vmatprep.subr.mxu0 0.0
  %3404 = vmatpush1.msra.mxu0 0.0
  %3405 = vmatprep.subr.mxu0 0.0
  %3406 = vmatpush1.msra.mxu0 0.0
  %3407 = vmatprep.subr.mxu0 0.0
  %3408 = vmatpush1.msra.mxu0 0.0
  %3409 = vmatprep.subr.mxu0 0.0
  %3410 = vmatpush1.msra.mxu0 0.0
  %3411 = vmatprep.subr.mxu0 0.0
  %3412 = vmatpush1.msra.mxu0 0.0
  %3413 = vmatprep.subr.mxu0 0.0
  %3414 = vmatpush1.msra.mxu0 0.0
  %3415 = vmatprep.subr.mxu0 0.0
  %3416 = vmatpush1.msra.mxu0 0.0
  %3417 = vmatprep.subr.mxu0 0.0
  %3418 = vmatpush1.msra.mxu0 0.0
  %3419 = vmatprep.subr.mxu0 0.0
  %3420 = vmatpush1.msra.mxu0 0.0
  %3421 = vmatprep.subr.mxu0 0.0
  %3422 = vmatpush1.msra.mxu0 0.0
  %3423 = vmatprep.subr.mxu0 0.0
  %3424 = vmatpush1.msra.mxu0 0.0
  %3425 = vmatprep.subr.mxu0 0.0
  %3426 = vmatpush1.msra.mxu0 0.0
  %3427 = vmatprep.subr.mxu0 0.0
  %3428 = vmatpush1.msra.mxu0 0.0
  %3429 = vmatprep.subr.mxu0 0.0
  %3430 = vmatpush1.msra.mxu0 0.0
  %3431 = vmatprep.subr.mxu0 0.0
  %3432 = vmatpush1.msra.mxu0 0.0
  %3433 = vmatprep.subr.mxu0 0.0
  %3434 = vmatpush1.msra.mxu0 0.0
  %3435 = vmatprep.subr.mxu0 0.0
  %3436 = vmatpush1.msra.mxu0 0.0
  %3437 = vmatprep.subr.mxu0 0.0
  %3438 = vmatpush1.msra.mxu0 0.0
  %3439 = vmatprep.subr.mxu0 0.0
  %3440 = vmatpush1.msra.mxu0 0.0
  %3441 = vmatprep.subr.mxu0 0.0
  %3442 = vmatpush1.msra.mxu0 0.0
  %3443 = vmatprep.subr.mxu0 0.0
  %3444 = vmatpush1.msra.mxu0 0.0
  %3445 = vmatprep.subr.mxu0 0.0
  %3446 = vmatpush1.msra.mxu0 0.0
  %3447 = vmatprep.subr.mxu0 0.0
  %3448 = vmatpush1.msra.mxu0 0.0
  %3449 = vmatprep.subr.mxu0 0.0
  %3450 = vmatpush1.msra.mxu0 0.0
  %3451 = vmatprep.subr.mxu0 0.0
  %3452 = vmatpush1.msra.mxu0 0.0
  %3453 = vmatprep.subr.mxu0 0.0
  %3454 = vmatpush1.msra.mxu0 0.0
  %3455 = vmatprep.subr.mxu0 0.0
  %3456 = vmatpush1.msra.mxu0 0.0
  %3457 = vmatprep.subr.mxu0 0.0
  %3458 = vmatpush1.msra.mxu0 0.0
  %3459 = vmatprep.subr.mxu0 0.0
  %3460 = vmatpush1.msra.mxu0 0.0
  %3461 = vmatprep.subr.mxu0 0.0
  %3462 = vmatpush1.msra.mxu0 0.0
  %3463 = vmatprep.mubr.f32.mxu0 0.0
  %3464 = vmatmul.mubr.f32.gmra.mrb[0].mxu0 %v3397
  %v3465 = vpop.f32.mrb[0].mxu0
  %v3466 = vadd.f32 0.0, %v3465
  %v3467 = vpop.f32.mrb[0].mxu0
  %3468 = vdwg.mxu0
  %v3469 = vadd.f32 %v3153, %v3466
  %v3470 = vxor.u32 %v3469, 2147483648
  %v3471 = vmul.f32 %v3470, 1.442695
  %v3472 = vpow.pop %v3471
  %v3473 = vadd.f32 %v3472, 1.0
  %v3474 = vrcp.pop %v3473
  %v3475 = vmul.f32 1.0, %v3474
  %v3476 = vadd.f32 %v3466, %v3266
  %3478 = vrot.lane.b32.xlu0 %v3476, 112
  %v3479 = vpop.permute.xlu0 %3478
  %v3481 = vmul.f32 %v3475, %v3479
  %3483 = vrot.lane.b32.xlu0 %v3481, 16
  %v3484 = vpop.permute.xlu0 %3483
  %v3486 = vadd.f32 %v3153, %v3484
  %v3487 = vtanh.pop %v3486
  %v3488 = vsub.f32 1.0, %v3475
  %3490 = vrot.lane.b32.xlu0 %v3487, 120
  %v3491 = vpop.permute.xlu0 %3490
  %v3493 = vmul.f32 %v3488, %v3491
  %v3494 = vmul.f32 %v3475, %v3391
  %v3495 = vadd.f32 %v3493, %v3494
  %3497 = vrot.lane.b32.xlu0 %v3495, 120
  %v3498 = vpop.permute.xlu0 %3497
  %3500 = vst.msk [vmem:[#allocation2 + $0x10] sm:$0xff] %vm78, %v3498
  %v3501 = vsel %vm78, %v3498, 0
  %3503 = vmatprep.subr.mxu0 0.0
  %3504 = vmatpush1.msra.mxu0 %v3181
  %3505 = vmatprep.subr.mxu0 0.0
  %3506 = vmatpush1.msra.mxu0 0.0
  %3507 = vmatprep.subr.mxu0 0.0
  %3508 = vmatpush1.msra.mxu0 0.0
  %3509 = vmatprep.subr.mxu0 0.0
  %3510 = vmatpush1.msra.mxu0 0.0
  %3511 = vmatprep.subr.mxu0 0.0
  %3512 = vmatpush1.msra.mxu0 0.0
  %3513 = vmatprep.subr.mxu0 0.0
  %3514 = vmatpush1.msra.mxu0 0.0
  %3515 = vmatprep.subr.mxu0 0.0
  %3516 = vmatpush1.msra.mxu0 0.0
  %3517 = vmatprep.subr.mxu0 0.0
  %3518 = vmatpush1.msra.mxu0 0.0
  %3519 = vmatprep.subr.mxu0 0.0
  %3520 = vmatpush1.msra.mxu0 0.0
  %3521 = vmatprep.subr.mxu0 0.0
  %3522 = vmatpush1.msra.mxu0 0.0
  %3523 = vmatprep.subr.mxu0 0.0
  %3524 = vmatpush1.msra.mxu0 0.0
  %3525 = vmatprep.subr.mxu0 0.0
  %3526 = vmatpush1.msra.mxu0 0.0
  %3527 = vmatprep.subr.mxu0 0.0
  %3528 = vmatpush1.msra.mxu0 0.0
  %3529 = vmatprep.subr.mxu0 0.0
  %3530 = vmatpush1.msra.mxu0 0.0
  %3531 = vmatprep.subr.mxu0 0.0
  %3532 = vmatpush1.msra.mxu0 0.0
  %3533 = vmatprep.subr.mxu0 0.0
  %3534 = vmatpush1.msra.mxu0 0.0
  %3535 = vmatprep.subr.mxu0 0.0
  %3536 = vmatpush1.msra.mxu0 0.0
  %3537 = vmatprep.subr.mxu0 0.0
  %3538 = vmatpush1.msra.mxu0 0.0
  %3539 = vmatprep.subr.mxu0 0.0
  %3540 = vmatpush1.msra.mxu0 0.0
  %3541 = vmatprep.subr.mxu0 0.0
  %3542 = vmatpush1.msra.mxu0 0.0
  %3543 = vmatprep.subr.mxu0 0.0
  %3544 = vmatpush1.msra.mxu0 0.0
  %3545 = vmatprep.subr.mxu0 0.0
  %3546 = vmatpush1.msra.mxu0 0.0
  %3547 = vmatprep.subr.mxu0 0.0
  %3548 = vmatpush1.msra.mxu0 0.0
  %3549 = vmatprep.subr.mxu0 0.0
  %3550 = vmatpush1.msra.mxu0 0.0
  %3551 = vmatprep.subr.mxu0 0.0
  %3552 = vmatpush1.msra.mxu0 0.0
  %3553 = vmatprep.subr.mxu0 0.0
  %3554 = vmatpush1.msra.mxu0 0.0
  %3555 = vmatprep.subr.mxu0 0.0
  %3556 = vmatpush1.msra.mxu0 0.0
  %3557 = vmatprep.subr.mxu0 0.0
  %3558 = vmatpush1.msra.mxu0 0.0
  %3559 = vmatprep.subr.mxu0 0.0
  %3560 = vmatpush1.msra.mxu0 0.0
  %3561 = vmatprep.subr.mxu0 0.0
  %3562 = vmatpush1.msra.mxu0 0.0
  %3563 = vmatprep.subr.mxu0 0.0
  %3564 = vmatpush1.msra.mxu0 0.0
  %3565 = vmatprep.subr.mxu0 0.0
  %3566 = vmatpush1.msra.mxu0 0.0
  %3567 = vmatprep.mubr.f32.mxu0 0.0
  %3568 = vmatmul.mubr.f32.gmra.mrb[0].mxu0 %v3501
  %v3569 = vpop.f32.mrb[0].mxu0
  %v3570 = vadd.f32 0.0, %v3569
  %v3571 = vpop.f32.mrb[0].mxu0
  %3572 = vdwg.mxu0
  %v3573 = vadd.f32 %v3158, %v3570
  %v3574 = vxor.u32 %v3573, 2147483648
  %v3575 = vmul.f32 %v3574, 1.442695
  %v3576 = vpow.pop %v3575
  %v3577 = vadd.f32 %v3576, 1.0
  %v3578 = vrcp.pop %v3577
  %v3579 = vmul.f32 1.0, %v3578
  %v3580 = vadd.f32 %v3570, %v3266
  %3582 = vrot.lane.b32.xlu0 %v3580, 112
  %v3583 = vpop.permute.xlu0 %3582
  %v3585 = vmul.f32 %v3579, %v3583
  %3587 = vrot.lane.b32.xlu0 %v3585, 16
  %v3588 = vpop.permute.xlu0 %3587
  %v3590 = vadd.f32 %v3158, %v3588
  %v3591 = vtanh.pop %v3590
  %v3592 = vsub.f32 1.0, %v3579
  %3594 = vrot.lane.b32.xlu0 %v3591, 120
  %v3595 = vpop.permute.xlu0 %3594
  %v3597 = vmul.f32 %v3592, %v3595
  %v3598 = vmul.f32 %v3579, %v3495
  %v3599 = vadd.f32 %v3597, %v3598
  %3601 = vrot.lane.b32.xlu0 %v3599, 120
  %v3602 = vpop.permute.xlu0 %3601
  %3604 = vst.msk [vmem:[#allocation2 + $0x18] sm:$0xff] %vm78, %v3602
  %v3605 = vsel %vm78, %v3602, 0
  %3607 = vmatprep.subr.mxu0 0.0
  %3608 = vmatpush1.msra.mxu0 %v3181
  %3609 = vmatprep.subr.mxu0 0.0
  %3610 = vmatpush1.msra.mxu0 0.0
  %3611 = vmatprep.subr.mxu0 0.0
  %3612 = vmatpush1.msra.mxu0 0.0
  %3613 = vmatprep.subr.mxu0 0.0
  %3614 = vmatpush1.msra.mxu0 0.0
  %3615 = vmatprep.subr.mxu0 0.0
  %3616 = vmatpush1.msra.mxu0 0.0
  %3617 = vmatprep.subr.mxu0 0.0
  %3618 = vmatpush1.msra.mxu0 0.0
  %3619 = vmatprep.subr.mxu0 0.0
  %3620 = vmatpush1.msra.mxu0 0.0
  %3621 = vmatprep.subr.mxu0 0.0
  %3622 = vmatpush1.msra.mxu0 0.0
  %3623 = vmatprep.subr.mxu0 0.0
  %3624 = vmatpush1.msra.mxu0 0.0
  %3625 = vmatprep.subr.mxu0 0.0
  %3626 = vmatpush1.msra.mxu0 0.0
  %3627 = vmatprep.subr.mxu0 0.0
  %3628 = vmatpush1.msra.mxu0 0.0
  %3629 = vmatprep.subr.mxu0 0.0
  %3630 = vmatpush1.msra.mxu0 0.0
  %3631 = vmatprep.subr.mxu0 0.0
  %3632 = vmatpush1.msra.mxu0 0.0
  %3633 = vmatprep.subr.mxu0 0.0
  %3634 = vmatpush1.msra.mxu0 0.0
  %3635 = vmatprep.subr.mxu0 0.0
  %3636 = vmatpush1.msra.mxu0 0.0
  %3637 = vmatprep.subr.mxu0 0.0
  %3638 = vmatpush1.msra.mxu0 0.0
  %3639 = vmatprep.subr.mxu0 0.0
  %3640 = vmatpush1.msra.mxu0 0.0
  %3641 = vmatprep.subr.mxu0 0.0
  %3642 = vmatpush1.msra.mxu0 0.0
  %3643 = vmatprep.subr.mxu0 0.0
  %3644 = vmatpush1.msra.mxu0 0.0
  %3645 = vmatprep.subr.mxu0 0.0
  %3646 = vmatpush1.msra.mxu0 0.0
  %3647 = vmatprep.subr.mxu0 0.0
  %3648 = vmatpush1.msra.mxu0 0.0
  %3649 = vmatprep.subr.mxu0 0.0
  %3650 = vmatpush1.msra.mxu0 0.0
  %3651 = vmatprep.subr.mxu0 0.0
  %3652 = vmatpush1.msra.mxu0 0.0
  %3653 = vmatprep.subr.mxu0 0.0
  %3654 = vmatpush1.msra.mxu0 0.0
  %3655 = vmatprep.subr.mxu0 0.0
  %3656 = vmatpush1.msra.mxu0 0.0
  %3657 = vmatprep.subr.mxu0 0.0
  %3658 = vmatpush1.msra.mxu0 0.0
  %3659 = vmatprep.subr.mxu0 0.0
  %3660 = vmatpush1.msra.mxu0 0.0
  %3661 = vmatprep.subr.mxu0 0.0
  %3662 = vmatpush1.msra.mxu0 0.0
  %3663 = vmatprep.subr.mxu0 0.0
  %3664 = vmatpush1.msra.mxu0 0.0
  %3665 = vmatprep.subr.mxu0 0.0
  %3666 = vmatpush1.msra.mxu0 0.0
  %3667 = vmatprep.subr.mxu0 0.0
  %3668 = vmatpush1.msra.mxu0 0.0
  %3669 = vmatprep.subr.mxu0 0.0
  %3670 = vmatpush1.msra.mxu0 0.0
  %3671 = vmatprep.mubr.f32.mxu0 0.0
  %3672 = vmatmul.mubr.f32.gmra.mrb[0].mxu0 %v3605
  %v3673 = vpop.f32.mrb[0].mxu0
  %v3674 = vadd.f32 0.0, %v3673
  %v3675 = vpop.f32.mrb[0].mxu0
  %3676 = vdwg.mxu0
  %v3677 = vadd.f32 %v3163, %v3674
  %v3678 = vxor.u32 %v3677, 2147483648
  %v3679 = vmul.f32 %v3678, 1.442695
  %v3680 = vpow.pop %v3679
  %v3681 = vadd.f32 %v3680, 1.0
  %v3682 = vrcp.pop %v3681
  %v3683 = vmul.f32 1.0, %v3682
  %v3684 = vadd.f32 %v3674, %v3266
  %3686 = vrot.lane.b32.xlu0 %v3684, 112
  %v3687 = vpop.permute.xlu0 %3686
  %v3689 = vmul.f32 %v3683, %v3687
  %3691 = vrot.lane.b32.xlu0 %v3689, 16
  %v3692 = vpop.permute.xlu0 %3691
  %v3694 = vadd.f32 %v3163, %v3692
  %v3695 = vtanh.pop %v3694
  %v3696 = vsub.f32 1.0, %v3683
  %3698 = vrot.lane.b32.xlu0 %v3695, 120
  %v3699 = vpop.permute.xlu0 %3698
  %v3701 = vmul.f32 %v3696, %v3699
  %v3702 = vmul.f32 %v3683, %v3599
  %v3703 = vadd.f32 %v3701, %v3702
  %3705 = vrot.lane.b32.xlu0 %v3703, 120
  %v3706 = vpop.permute.xlu0 %3705
  %3708 = vst.msk [vmem:[#allocation2 + $0x20] sm:$0xff] %vm78, %v3706
  %v3709 = vsel %vm78, %v3706, 0
  %3711 = vmatprep.subr.mxu0 0.0
  %3712 = vmatpush1.msra.mxu0 %v3181
  %3713 = vmatprep.subr.mxu0 0.0
  %3714 = vmatpush1.msra.mxu0 0.0
  %3715 = vmatprep.subr.mxu0 0.0
  %3716 = vmatpush1.msra.mxu0 0.0
  %3717 = vmatprep.subr.mxu0 0.0
  %3718 = vmatpush1.msra.mxu0 0.0
  %3719 = vmatprep.subr.mxu0 0.0
  %3720 = vmatpush1.msra.mxu0 0.0
  %3721 = vmatprep.subr.mxu0 0.0
  %3722 = vmatpush1.msra.mxu0 0.0
  %3723 = vmatprep.subr.mxu0 0.0
  %3724 = vmatpush1.msra.mxu0 0.0
  %3725 = vmatprep.subr.mxu0 0.0
  %3726 = vmatpush1.msra.mxu0 0.0
  %3727 = vmatprep.subr.mxu0 0.0
  %3728 = vmatpush1.msra.mxu0 0.0
  %3729 = vmatprep.subr.mxu0 0.0
  %3730 = vmatpush1.msra.mxu0 0.0
  %3731 = vmatprep.subr.mxu0 0.0
  %3732 = vmatpush1.msra.mxu0 0.0
  %3733 = vmatprep.subr.mxu0 0.0
  %3734 = vmatpush1.msra.mxu0 0.0
  %3735 = vmatprep.subr.mxu0 0.0
  %3736 = vmatpush1.msra.mxu0 0.0
  %3737 = vmatprep.subr.mxu0 0.0
  %3738 = vmatpush1.msra.mxu0 0.0
  %3739 = vmatprep.subr.mxu0 0.0
  %3740 = vmatpush1.msra.mxu0 0.0
  %3741 = vmatprep.subr.mxu0 0.0
  %3742 = vmatpush1.msra.mxu0 0.0
  %3743 = vmatprep.subr.mxu0 0.0
  %3744 = vmatpush1.msra.mxu0 0.0
  %3745 = vmatprep.subr.mxu0 0.0
  %3746 = vmatpush1.msra.mxu0 0.0
  %3747 = vmatprep.subr.mxu0 0.0
  %3748 = vmatpush1.msra.mxu0 0.0
  %3749 = vmatprep.subr.mxu0 0.0
  %3750 = vmatpush1.msra.mxu0 0.0
  %3751 = vmatprep.subr.mxu0 0.0
  %3752 = vmatpush1.msra.mxu0 0.0
  %3753 = vmatprep.subr.mxu0 0.0
  %3754 = vmatpush1.msra.mxu0 0.0
  %3755 = vmatprep.subr.mxu0 0.0
  %3756 = vmatpush1.msra.mxu0 0.0
  %3757 = vmatprep.subr.mxu0 0.0
  %3758 = vmatpush1.msra.mxu0 0.0
  %3759 = vmatprep.subr.mxu0 0.0
  %3760 = vmatpush1.msra.mxu0 0.0
  %3761 = vmatprep.subr.mxu0 0.0
  %3762 = vmatpush1.msra.mxu0 0.0
  %3763 = vmatprep.subr.mxu0 0.0
  %3764 = vmatpush1.msra.mxu0 0.0
  %3765 = vmatprep.subr.mxu0 0.0
  %3766 = vmatpush1.msra.mxu0 0.0
  %3767 = vmatprep.subr.mxu0 0.0
  %3768 = vmatpush1.msra.mxu0 0.0
  %3769 = vmatprep.subr.mxu0 0.0
  %3770 = vmatpush1.msra.mxu0 0.0
  %3771 = vmatprep.subr.mxu0 0.0
  %3772 = vmatpush1.msra.mxu0 0.0
  %3773 = vmatprep.subr.mxu0 0.0
  %3774 = vmatpush1.msra.mxu0 0.0
  %3775 = vmatprep.mubr.f32.mxu0 0.0
  %3776 = vmatmul.mubr.f32.gmra.mrb[0].mxu0 %v3709
  %v3777 = vpop.f32.mrb[0].mxu0
  %v3778 = vadd.f32 0.0, %v3777
  %v3779 = vpop.f32.mrb[0].mxu0
  %3780 = vdwg.mxu0
  %v3781 = vadd.f32 %v3168, %v3778
  %v3782 = vxor.u32 %v3781, 2147483648
  %v3783 = vmul.f32 %v3782, 1.442695
  %v3784 = vpow.pop %v3783
  %v3785 = vadd.f32 %v3784, 1.0
  %v3786 = vrcp.pop %v3785
  %v3787 = vmul.f32 1.0, %v3786
  %v3788 = vadd.f32 %v3778, %v3266
  %3790 = vrot.lane.b32.xlu0 %v3788, 112
  %v3791 = vpop.permute.xlu0 %3790
  %v3793 = vmul.f32 %v3787, %v3791
  %3795 = vrot.lane.b32.xlu0 %v3793, 16
  %v3796 = vpop.permute.xlu0 %3795
  %v3798 = vadd.f32 %v3168, %v3796
  %v3799 = vtanh.pop %v3798
  %v3800 = vsub.f32 1.0, %v3787
  %3802 = vrot.lane.b32.xlu0 %v3799, 120
  %v3803 = vpop.permute.xlu0 %3802
  %v3805 = vmul.f32 %v3800, %v3803
  %v3806 = vmul.f32 %v3787, %v3703
  %v3807 = vadd.f32 %v3805, %v3806
  %3809 = vrot.lane.b32.xlu0 %v3807, 120
  %v3810 = vpop.permute.xlu0 %3809
  %3812 = vst.msk [vmem:[#allocation2 + $0x28] sm:$0xff] %vm78, %v3810
  %v3813 = vsel %vm78, %v3810, 0
  %3815 = vmatprep.subr.mxu0 0.0
  %3816 = vmatpush1.msra.mxu0 %v3181
  %3817 = vmatprep.subr.mxu0 0.0
  %3818 = vmatpush1.msra.mxu0 0.0
  %3819 = vmatprep.subr.mxu0 0.0
  %3820 = vmatpush1.msra.mxu0 0.0
  %3821 = vmatprep.subr.mxu0 0.0
  %3822 = vmatpush1.msra.mxu0 0.0
  %3823 = vmatprep.subr.mxu0 0.0
  %3824 = vmatpush1.msra.mxu0 0.0
  %3825 = vmatprep.subr.mxu0 0.0
  %3826 = vmatpush1.msra.mxu0 0.0
  %3827 = vmatprep.subr.mxu0 0.0
  %3828 = vmatpush1.msra.mxu0 0.0
  %3829 = vmatprep.subr.mxu0 0.0
  %3830 = vmatpush1.msra.mxu0 0.0
  %3831 = vmatprep.subr.mxu0 0.0
  %3832 = vmatpush1.msra.mxu0 0.0
  %3833 = vmatprep.subr.mxu0 0.0
  %3834 = vmatpush1.msra.mxu0 0.0
  %3835 = vmatprep.subr.mxu0 0.0
  %3836 = vmatpush1.msra.mxu0 0.0
  %3837 = vmatprep.subr.mxu0 0.0
  %3838 = vmatpush1.msra.mxu0 0.0
  %3839 = vmatprep.subr.mxu0 0.0
  %3840 = vmatpush1.msra.mxu0 0.0
  %3841 = vmatprep.subr.mxu0 0.0
  %3842 = vmatpush1.msra.mxu0 0.0
  %3843 = vmatprep.subr.mxu0 0.0
  %3844 = vmatpush1.msra.mxu0 0.0
  %3845 = vmatprep.subr.mxu0 0.0
  %3846 = vmatpush1.msra.mxu0 0.0
  %3847 = vmatprep.subr.mxu0 0.0
  %3848 = vmatpush1.msra.mxu0 0.0
  %3849 = vmatprep.subr.mxu0 0.0
  %3850 = vmatpush1.msra.mxu0 0.0
  %3851 = vmatprep.subr.mxu0 0.0
  %3852 = vmatpush1.msra.mxu0 0.0
  %3853 = vmatprep.subr.mxu0 0.0
  %3854 = vmatpush1.msra.mxu0 0.0
  %3855 = vmatprep.subr.mxu0 0.0
  %3856 = vmatpush1.msra.mxu0 0.0
  %3857 = vmatprep.subr.mxu0 0.0
  %3858 = vmatpush1.msra.mxu0 0.0
  %3859 = vmatprep.subr.mxu0 0.0
  %3860 = vmatpush1.msra.mxu0 0.0
  %3861 = vmatprep.subr.mxu0 0.0
  %3862 = vmatpush1.msra.mxu0 0.0
  %3863 = vmatprep.subr.mxu0 0.0
  %3864 = vmatpush1.msra.mxu0 0.0
  %3865 = vmatprep.subr.mxu0 0.0
  %3866 = vmatpush1.msra.mxu0 0.0
  %3867 = vmatprep.subr.mxu0 0.0
  %3868 = vmatpush1.msra.mxu0 0.0
  %3869 = vmatprep.subr.mxu0 0.0
  %3870 = vmatpush1.msra.mxu0 0.0
  %3871 = vmatprep.subr.mxu0 0.0
  %3872 = vmatpush1.msra.mxu0 0.0
  %3873 = vmatprep.subr.mxu0 0.0
  %3874 = vmatpush1.msra.mxu0 0.0
  %3875 = vmatprep.subr.mxu0 0.0
  %3876 = vmatpush1.msra.mxu0 0.0
  %3877 = vmatprep.subr.mxu0 0.0
  %3878 = vmatpush1.msra.mxu0 0.0
  %3879 = vmatprep.mubr.f32.mxu0 0.0
  %3880 = vmatmul.mubr.f32.gmra.mrb[0].mxu0 %v3813
  %v3881 = vpop.f32.mrb[0].mxu0
  %v3882 = vadd.f32 0.0, %v3881
  %v3883 = vpop.f32.mrb[0].mxu0
  %3884 = vdwg.mxu0
  %v3885 = vadd.f32 %v3173, %v3882
  %v3886 = vxor.u32 %v3885, 2147483648
  %v3887 = vmul.f32 %v3886, 1.442695
  %v3888 = vpow.pop %v3887
  %v3889 = vadd.f32 %v3888, 1.0
  %v3890 = vrcp.pop %v3889
  %v3891 = vmul.f32 1.0, %v3890
  %v3892 = vadd.f32 %v3882, %v3266
  %3894 = vrot.lane.b32.xlu0 %v3892, 112
  %v3895 = vpop.permute.xlu0 %3894
  %v3897 = vmul.f32 %v3891, %v3895
  %3899 = vrot.lane.b32.xlu0 %v3897, 16
  %v3900 = vpop.permute.xlu0 %3899
  %v3902 = vadd.f32 %v3173, %v3900
  %v3903 = vtanh.pop %v3902
  %v3904 = vsub.f32 1.0, %v3891
  %3906 = vrot.lane.b32.xlu0 %v3903, 120
  %v3907 = vpop.permute.xlu0 %3906
  %v3909 = vmul.f32 %v3904, %v3907
  %v3910 = vmul.f32 %v3891, %v3807
  %v3911 = vadd.f32 %v3909, %v3910
  %3913 = vrot.lane.b32.xlu0 %v3911, 120
  %v3914 = vpop.permute.xlu0 %3913
  %3916 = vst.msk [vmem:[#allocation2 + $0x30] sm:$0xff] %vm78, %v3914
  %v3917 = vsel %vm78, %v3914, 0
  %3919 = vmatprep.subr.mxu0 0.0
  %3920 = vmatpush1.msra.mxu0 %v3181
  %3921 = vmatprep.subr.mxu0 0.0
  %3922 = vmatpush1.msra.mxu0 0.0
  %3923 = vmatprep.subr.mxu0 0.0
  %3924 = vmatpush1.msra.mxu0 0.0
  %3925 = vmatprep.subr.mxu0 0.0
  %3926 = vmatpush1.msra.mxu0 0.0
  %3927 = vmatprep.subr.mxu0 0.0
  %3928 = vmatpush1.msra.mxu0 0.0
  %3929 = vmatprep.subr.mxu0 0.0
  %3930 = vmatpush1.msra.mxu0 0.0
  %3931 = vmatprep.subr.mxu0 0.0
  %3932 = vmatpush1.msra.mxu0 0.0
  %3933 = vmatprep.subr.mxu0 0.0
  %3934 = vmatpush1.msra.mxu0 0.0
  %3935 = vmatprep.subr.mxu0 0.0
  %3936 = vmatpush1.msra.mxu0 0.0
  %3937 = vmatprep.subr.mxu0 0.0
  %3938 = vmatpush1.msra.mxu0 0.0
  %3939 = vmatprep.subr.mxu0 0.0
  %3940 = vmatpush1.msra.mxu0 0.0
  %3941 = vmatprep.subr.mxu0 0.0
  %3942 = vmatpush1.msra.mxu0 0.0
  %3943 = vmatprep.subr.mxu0 0.0
  %3944 = vmatpush1.msra.mxu0 0.0
  %3945 = vmatprep.subr.mxu0 0.0
  %3946 = vmatpush1.msra.mxu0 0.0
  %3947 = vmatprep.subr.mxu0 0.0
  %3948 = vmatpush1.msra.mxu0 0.0
  %3949 = vmatprep.subr.mxu0 0.0
  %3950 = vmatpush1.msra.mxu0 0.0
  %3951 = vmatprep.subr.mxu0 0.0
  %3952 = vmatpush1.msra.mxu0 0.0
  %3953 = vmatprep.subr.mxu0 0.0
  %3954 = vmatpush1.msra.mxu0 0.0
  %3955 = vmatprep.subr.mxu0 0.0
  %3956 = vmatpush1.msra.mxu0 0.0
  %3957 = vmatprep.subr.mxu0 0.0
  %3958 = vmatpush1.msra.mxu0 0.0
  %3959 = vmatprep.subr.mxu0 0.0
  %3960 = vmatpush1.msra.mxu0 0.0
  %3961 = vmatprep.subr.mxu0 0.0
  %3962 = vmatpush1.msra.mxu0 0.0
  %3963 = vmatprep.subr.mxu0 0.0
  %3964 = vmatpush1.msra.mxu0 0.0
  %3965 = vmatprep.subr.mxu0 0.0
  %3966 = vmatpush1.msra.mxu0 0.0
  %3967 = vmatprep.subr.mxu0 0.0
  %3968 = vmatpush1.msra.mxu0 0.0
  %3969 = vmatprep.subr.mxu0 0.0
  %3970 = vmatpush1.msra.mxu0 0.0
  %3971 = vmatprep.subr.mxu0 0.0
  %3972 = vmatpush1.msra.mxu0 0.0
  %3973 = vmatprep.subr.mxu0 0.0
  %3974 = vmatpush1.msra.mxu0 0.0
  %3975 = vmatprep.subr.mxu0 0.0
  %3976 = vmatpush1.msra.mxu0 0.0
  %3977 = vmatprep.subr.mxu0 0.0
  %3978 = vmatpush1.msra.mxu0 0.0
  %3979 = vmatprep.subr.mxu0 0.0
  %3980 = vmatpush1.msra.mxu0 0.0
  %3981 = vmatprep.subr.mxu0 0.0
  %3982 = vmatpush1.msra.mxu0 0.0
  %3983 = vmatprep.mubr.f32.mxu0 0.0
  %3984 = vmatmul.mubr.f32.gmra.mrb[0].mxu0 %v3917
  %v3985 = vpop.f32.mrb[0].mxu0
  %v3986 = vadd.f32 0.0, %v3985
  %v3987 = vpop.f32.mrb[0].mxu0
  %3988 = vdwg.mxu0
  %v3989 = vadd.f32 %v3178, %v3986
  %v3990 = vxor.u32 %v3989, 2147483648
  %v3991 = vmul.f32 %v3990, 1.442695
  %v3992 = vpow.pop %v3991
  %v3993 = vadd.f32 %v3992, 1.0
  %v3994 = vrcp.pop %v3993
  %v3995 = vmul.f32 1.0, %v3994
  %v3996 = vadd.f32 %v3986, %v3266
  %3998 = vrot.lane.b32.xlu0 %v3996, 112
  %v3999 = vpop.permute.xlu0 %3998
  %v4001 = vmul.f32 %v3995, %v3999
  %4003 = vrot.lane.b32.xlu0 %v4001, 16
  %v4004 = vpop.permute.xlu0 %4003
  %v4006 = vadd.f32 %v3178, %v4004
  %v4007 = vtanh.pop %v4006
  %v4008 = vsub.f32 1.0, %v3995
  %4010 = vrot.lane.b32.xlu0 %v4007, 120
  %v4011 = vpop.permute.xlu0 %4010
  %v4013 = vmul.f32 %v4008, %v4011
  %v4014 = vmul.f32 %v3995, %v3911
  %v4015 = vadd.f32 %v4013, %v4014
  %4017 = vrot.lane.b32.xlu0 %v4015, 120
  %v4018 = vpop.permute.xlu0 %4017
  %4020 = vst.msk [vmem:[#allocation2 + $0x38] sm:$0xff] %vm78, %v4018
  %v4021 = vld [vmem:[#allocation2] sm:$0xff]
  %v4022 = vld [vmem:[#allocation2 + $0x8] sm:$0xff]
  %v4023 = vld [vmem:[#allocation2 + $0x10] sm:$0xff]
  %v4024 = vld [vmem:[#allocation2 + $0x18] sm:$0xff]
  %v4025 = vld [vmem:[#allocation2 + $0x20] sm:$0xff]
  %v4026 = vld [vmem:[#allocation2 + $0x28] sm:$0xff]
  %v4027 = vld [vmem:[#allocation2 + $0x30] sm:$0xff]
  %v4028 = vld [vmem:[#allocation2 + $0x38] sm:$0xff]
  %v4029 = vld [vmem:[%s17] sm:$0xff]
  %v4030 = vld [vmem:[%s18] sm:$0x1]
  %v4032 = vlaneseq
  %v4033 = vshrl.u32 %v4032, 7
  %v4034 = vsub.s32 0, %v4033
  %v4035 = vrot.slane %v4030, %v4034
  %v4038 = vsel %vm78, %v4021, 0
  %v4041 = vsel %vm78, %v4022, 0
  %v4044 = vsel %vm78, %v4023, 0
  %v4047 = vsel %vm78, %v4024, 0
  %v4050 = vsel %vm78, %v4025, 0
  %v4053 = vsel %vm78, %v4026, 0
  %v4056 = vsel %vm78, %v4027, 0
  %v4059 = vsel %vm78, %v4028, 0
  %4061 = vmatprep.subr.mxu0 0.0
  %4062 = vmatpush1.msra.mxu0 %v4029
  %4063 = vmatprep.subr.mxu0 0.0
  %4064 = vmatpush1.msra.mxu0 0.0
  %4065 = vmatprep.subr.mxu0 0.0
  %4066 = vmatpush1.msra.mxu0 0.0
  %4067 = vmatprep.subr.mxu0 0.0
  %4068 = vmatpush1.msra.mxu0 0.0
  %4069 = vmatprep.subr.mxu0 0.0
  %4070 = vmatpush1.msra.mxu0 0.0
  %4071 = vmatprep.subr.mxu0 0.0
  %4072 = vmatpush1.msra.mxu0 0.0
  %4073 = vmatprep.subr.mxu0 0.0
  %4074 = vmatpush1.msra.mxu0 0.0
  %4075 = vmatprep.subr.mxu0 0.0
  %4076 = vmatpush1.msra.mxu0 0.0
  %4077 = vmatprep.subr.mxu0 0.0
  %4078 = vmatpush1.msra.mxu0 0.0
  %4079 = vmatprep.subr.mxu0 0.0
  %4080 = vmatpush1.msra.mxu0 0.0
  %4081 = vmatprep.subr.mxu0 0.0
  %4082 = vmatpush1.msra.mxu0 0.0
  %4083 = vmatprep.subr.mxu0 0.0
  %4084 = vmatpush1.msra.mxu0 0.0
  %4085 = vmatprep.subr.mxu0 0.0
  %4086 = vmatpush1.msra.mxu0 0.0
  %4087 = vmatprep.subr.mxu0 0.0
  %4088 = vmatpush1.msra.mxu0 0.0
  %4089 = vmatprep.subr.mxu0 0.0
  %4090 = vmatpush1.msra.mxu0 0.0
  %4091 = vmatprep.subr.mxu0 0.0
  %4092 = vmatpush1.msra.mxu0 0.0
  %4093 = vmatprep.subr.mxu0 0.0
  %4094 = vmatpush1.msra.mxu0 0.0
  %4095 = vmatprep.subr.mxu0 0.0
  %4096 = vmatpush1.msra.mxu0 0.0
  %4097 = vmatprep.subr.mxu0 0.0
  %4098 = vmatpush1.msra.mxu0 0.0
  %4099 = vmatprep.subr.mxu0 0.0
  %4100 = vmatpush1.msra.mxu0 0.0
  %4101 = vmatprep.subr.mxu0 0.0
  %4102 = vmatpush1.msra.mxu0 0.0
  %4103 = vmatprep.subr.mxu0 0.0
  %4104 = vmatpush1.msra.mxu0 0.0
  %4105 = vmatprep.subr.mxu0 0.0
  %4106 = vmatpush1.msra.mxu0 0.0
  %4107 = vmatprep.subr.mxu0 0.0
  %4108 = vmatpush1.msra.mxu0 0.0
  %4109 = vmatprep.subr.mxu0 0.0
  %4110 = vmatpush1.msra.mxu0 0.0
  %4111 = vmatprep.subr.mxu0 0.0
  %4112 = vmatpush1.msra.mxu0 0.0
  %4113 = vmatprep.subr.mxu0 0.0
  %4114 = vmatpush1.msra.mxu0 0.0
  %4115 = vmatprep.subr.mxu0 0.0
  %4116 = vmatpush1.msra.mxu0 0.0
  %4117 = vmatprep.subr.mxu0 0.0
  %4118 = vmatpush1.msra.mxu0 0.0
  %4119 = vmatprep.subr.mxu0 0.0
  %4120 = vmatpush1.msra.mxu0 0.0
  %4121 = vmatprep.subr.mxu0 0.0
  %4122 = vmatpush1.msra.mxu0 0.0
  %4123 = vmatprep.subr.mxu0 0.0
  %4124 = vmatpush1.msra.mxu0 0.0
  %4125 = vmatprep.mubr.f32.mxu0 0.0
  %4126 = vmatmul.mubr.f32.gmra.mrb[0].mxu0 %v4038
  %v4127 = vpop.f32.mrb[0].mxu0
  %v4128 = vadd.f32 %v4035, %v4127
  %v4129 = vpop.f32.mrb[0].mxu0
  %4130 = vmatprep.mubr.f32.mxu0 0.0
  %4131 = vmatmul.mubr.f32.gmra.mrb[0].mxu0 %v4041
  %v4132 = vpop.f32.mrb[0].mxu0
  %v4133 = vadd.f32 %v4035, %v4132
  %v4134 = vpop.f32.mrb[0].mxu0
  %4135 = vmatprep.mubr.f32.mxu0 0.0
  %4136 = vmatmul.mubr.f32.gmra.mrb[0].mxu0 %v4044
  %v4137 = vpop.f32.mrb[0].mxu0
  %v4138 = vadd.f32 %v4035, %v4137
  %v4139 = vpop.f32.mrb[0].mxu0
  %4140 = vmatprep.mubr.f32.mxu0 0.0
  %4141 = vmatmul.mubr.f32.gmra.mrb[0].mxu0 %v4047
  %v4142 = vpop.f32.mrb[0].mxu0
  %v4143 = vadd.f32 %v4035, %v4142
  %v4144 = vpop.f32.mrb[0].mxu0
  %4145 = vmatprep.mubr.f32.mxu0 0.0
  %4146 = vmatmul.mubr.f32.gmra.mrb[0].mxu0 %v4050
  %v4147 = vpop.f32.mrb[0].mxu0
  %v4148 = vadd.f32 %v4035, %v4147
  %v4149 = vpop.f32.mrb[0].mxu0
  %4150 = vmatprep.mubr.f32.mxu0 0.0
  %4151 = vmatmul.mubr.f32.gmra.mrb[0].mxu0 %v4053
  %v4152 = vpop.f32.mrb[0].mxu0
  %v4153 = vadd.f32 %v4035, %v4152
  %v4154 = vpop.f32.mrb[0].mxu0
  %4155 = vmatprep.mubr.f32.mxu0 0.0
  %4156 = vmatmul.mubr.f32.gmra.mrb[0].mxu0 %v4056
  %v4157 = vpop.f32.mrb[0].mxu0
  %v4158 = vadd.f32 %v4035, %v4157
  %v4159 = vpop.f32.mrb[0].mxu0
  %4160 = vmatprep.mubr.f32.mxu0 0.0
  %4161 = vmatmul.mubr.f32.gmra.mrb[0].mxu0 %v4059
  %v4162 = vpop.f32.mrb[0].mxu0
  %v4163 = vadd.f32 %v4035, %v4162
  %v4164 = vpop.f32.mrb[0].mxu0
  %4165 = vdwg.mxu0
  %4166 = vst.msk [vmem:[%s19] sm:$0xff] %vm78, %v4128
  %4167 = vst.msk [vmem:[%s19 + $0x8] sm:$0xff] %vm78, %v4133
  %4168 = vst.msk [vmem:[%s19 + $0x10] sm:$0xff] %vm78, %v4138
  %4169 = vst.msk [vmem:[%s19 + $0x18] sm:$0xff] %vm78, %v4143
  %4170 = vst.msk [vmem:[%s19 + $0x20] sm:$0xff] %vm78, %v4148
  %4171 = vst.msk [vmem:[%s19 + $0x28] sm:$0xff] %vm78, %v4153
  %4172 = vst.msk [vmem:[%s19 + $0x30] sm:$0xff] %vm78, %v4158
  %4173 = vst.msk [vmem:[%s19 + $0x38] sm:$0xff] %vm78, %v4163
  // Predicated region
  $region78: #{gru_autoencoder_forward.1} parent=0 // pred_check
    _
  $region79: #{gru_autoencoder_forward.1} parent=0 // pred_check_branch
    %4175 = sbr.rel (0) target = $region81
  $region80: #{gru_autoencoder_forward.1} parent=0 // pred_region
    _
  $region81: #{gru_autoencoder_forward.1} parent=0 // pred_fallthru
    _
  // Predicated region
  $region82: #{gru_autoencoder_forward.1} parent=0 // pred_check
    _
  $region83: #{gru_autoencoder_forward.1} parent=0 // pred_check_branch
    %4177 = sbr.rel (0) target = $region85
  $region84: #{gru_autoencoder_forward.1} parent=0 // pred_region
    _
  $region85: #{gru_autoencoder_forward.1} parent=0 // pred_fallthru
    _

</llo_original>
